<compile_context>
chip_gen: v7x
topology: tpu7x:2x2x1
jax: 0.10.0
libtpu: 0.0.40
codegen_flags: <defaults>
</compile_context>

<pallas_src>
import functools

import jax
import jax.numpy as jnp
from jax.experimental import pallas as pl
from jax.experimental.pallas import tpu as pltpu


def _fill_im2col_rows(im2_ref, src, *, H, W, C):
    """Build the ky-grouped, reflection-padded slab in VMEM.

    im2_ref : (H, W+2, 3*C) scratch;  im2[h, wp, ky*C + c] = xpad[h+ky, wp, c]
    src     : (H, W, C) ref or value (unpadded activations).

    Row reflection (pad=1) is folded into the per-ky row-sliced stores; the
    left/right reflected columns (incl. corners) are two column copies at the
    end.  Only static sliced loads/stores are used.
    """
    # ky = 0 : xpad rows [0 .. H-1]  ->  src rows [1, 0, 1, ..., H-2]
    im2_ref[0:1, 1:W + 1, 0:C] = src[1:2]
    im2_ref[1:H, 1:W + 1, 0:C] = src[0:H - 1]
    # ky = 1 : xpad rows [1 .. H]    ->  src rows [0 .. H-1]
    im2_ref[0:H, 1:W + 1, C:2 * C] = src[0:H]
    # ky = 2 : xpad rows [2 .. H+1]  ->  src rows [1, ..., H-1, H-2]
    im2_ref[0:H - 1, 1:W + 1, 2 * C:3 * C] = src[1:H]
    im2_ref[H - 1:H, 1:W + 1, 2 * C:3 * C] = src[H - 2:H - 1]
    # Reflected left/right columns (covers all three ky lane-groups at once).
    im2_ref[:, 0:1, :] = im2_ref[:, 2:3, :]
    im2_ref[:, W + 1:W + 2, :] = im2_ref[:, W - 1:W, :]


def _residual_block_kernel(x_ref, w1_ref, b1_ref, w2_ref, b2_ref, o_ref,
                           im2_ref, *, H, W, C, eps):
    """Fused ResidualBlock forward for ONE sample (one grid step).

    x_ref      : (H, W, C)        unpadded NHWC activations (also the residual)
    w{1,2}_ref : (3, 3*C, C)      conv weights grouped as [kx][ky*C + c_in, c_out]
    b{1,2}_ref : (1, C)           conv biases (f32)
    o_ref      : (H, W, C)        output (x + block(x))
    im2_ref    : (H, W+2, 3*C)    VMEM scratch for the ky-grouped padded slab
    """
    P = H * W
    f32 = jnp.float32

    def conv3x3_instancenorm(w_ref, b_ref, src, relu):
        # In-kernel reflect-pad + ky-grouping of the taps.
        _fill_im2col_rows(im2_ref, src, H=H, W=W, C=C)

        # 3 grouped-tap MXU matmuls (K = 3*C), accumulated in a local f32 value
        # (no VMEM read-modify-write).  Bias is added once at the end.
        acc = jnp.zeros((P, C), f32)
        for kx in range(3):
            slab = im2_ref[:, kx:kx + W, :]          # (H, W, 3C)
            slab = slab.reshape(P, 3 * C)            # layout-preserving
            acc = acc + jnp.dot(slab, w_ref[kx],
                                preferred_element_type=f32)
        acc = acc + b_ref[...].astype(f32)

        # InstanceNorm2d(affine=False): exact per-(sample, channel) stats.
        mean = jnp.mean(acc, axis=0, keepdims=True)
        cen = acc - mean
        var = jnp.mean(cen * cen, axis=0, keepdims=True)   # biased, like PyTorch
        h = cen * jax.lax.rsqrt(var + eps)
        if relu:
            h = jnp.maximum(h, 0.0)
        return h                                            # (P, C) f32

    # Stage 1: pad + conv + IN + ReLU  (reads x_ref directly).
    h1 = conv3x3_instancenorm(w1_ref, b1_ref, x_ref, relu=True)

    # Stage 2: pad + conv + IN, reusing the same im2col scratch for h1.
    h1_hwc = h1.reshape(H, W, C).astype(im2_ref.dtype)
    h2 = conv3x3_instancenorm(w2_ref, b2_ref, h1_hwc, relu=False)

    # Residual add and single output store.
    out = h2 + x_ref[...].reshape(P, C).astype(f32)
    o_ref[...] = out.reshape(H, W, C).astype(o_ref.dtype)


def _fused_residual_block(x_nhwc, w1, b1, w2, b2, *, eps):
    """pallas_call wrapper: whole ResidualBlock in one kernel, grid over batch."""
    N, H, W, C = x_nhwc.shape
    assert H >= 2 and W >= 2, "ReflectionPad2d(1) needs H, W >= 2"

    kernel = functools.partial(_residual_block_kernel, H=H, W=W, C=C, eps=eps)

    # NOTE: weight/bias blocks are grid-invariant (constant index_map), so they
    # are DMA'd once; at demo widths they are tiny, so we skip single-buffering.
    in_specs = [
        pl.BlockSpec((None, H, W, C), lambda n: (n, 0, 0, 0)),   # x (and residual)
        pl.BlockSpec((3, 3 * C, C), lambda n: (0, 0, 0)),        # w1 grouped
        pl.BlockSpec((1, C), lambda n: (0, 0)),                  # b1
        pl.BlockSpec((3, 3 * C, C), lambda n: (0, 0, 0)),        # w2 grouped
        pl.BlockSpec((1, C), lambda n: (0, 0)),                  # b2
    ]

    return pl.pallas_call(
        kernel,
        out_shape=jax.ShapeDtypeStruct((N, H, W, C), jnp.float32),
        grid_spec=pltpu.PrefetchScalarGridSpec(
            num_scalar_prefetch=0,
            grid=(N,),
            in_specs=in_specs,
            out_specs=pl.BlockSpec((None, H, W, C), lambda n: (n, 0, 0, 0)),
            scratch_shapes=[pltpu.VMEM((H, W + 2, 3 * C), x_nhwc.dtype)],
        ),
        compiler_params=pltpu.CompilerParams(
            dimension_semantics=("parallel",)),
    )(x_nhwc, w1, b1, w2, b2)


def residual_block(x_nchw, params, *, eps=1e-5, compute_dtype=jnp.float32):
    """inp + IN(conv3x3(pad(ReLU(IN(conv3x3(pad(inp))))))) ; NCHW in / NCHW out.

    compute_dtype=jnp.bfloat16 halves matmul-input DMA bytes and doubles MXU
    rate on v6e/v7x for production shapes; accumulation / norm / residual stay
    f32 (the demo runs f32 for a tight correctness check).
    """
    N, C, H, W = x_nchw.shape

    # NCHW -> NHWC once (channels on the lane axis).
    x = jnp.transpose(x_nchw, (0, 2, 3, 1)).astype(compute_dtype)

    # PyTorch weight (C_out, C_in, ky, kx) -> grouped (kx, ky*C_in + c_in, C_out)
    # so the kernel does slab @ w[kx] with NO per-step transpose and K = 3*C_in.
    def prep_w(w):
        return (jnp.transpose(w, (3, 2, 1, 0))        # (kx, ky, C_in, C_out)
                .reshape(3, 3 * C, C)
                .astype(compute_dtype))

    w1 = prep_w(params["w1"])
    w2 = prep_w(params["w2"])
    b1 = params["b1"].reshape(1, C).astype(jnp.float32)
    b2 = params["b2"].reshape(1, C).astype(jnp.float32)

    out = _fused_residual_block(x, w1, b1, w2, b2, eps=eps)

    # NHWC -> NCHW to match the PyTorch module's output layout.
    return jnp.transpose(out, (0, 3, 1, 2)).astype(x_nchw.dtype)


def init_params(key, nb_feat):
    """Synthetic params matching PyTorch Conv2d(nb_feat, nb_feat, 3) shapes/init."""
    ks = jax.random.split(key, 4)
    bound = (nb_feat * 3 * 3) ** -0.5  # U(-1/sqrt(fan_in), 1/sqrt(fan_in))

    def u(k, shape):
        return jax.random.uniform(k, shape, jnp.float32, -bound, bound)

    return {
        "w1": u(ks[0], (nb_feat, nb_feat, 3, 3)),
        "b1": u(ks[1], (nb_feat,)),
        "w2": u(ks[2], (nb_feat, nb_feat, 3, 3)),
        "b2": u(ks[3], (nb_feat,)),
    }


def reference_forward(x_nchw, params, *, eps=1e-5):
    """Plain-JAX/XLA reference (independent of the kernel's math)."""
    def conv3x3_reflect(h, w, b):
        hp = jnp.pad(h, ((0, 0), (0, 0), (1, 1), (1, 1)), mode="reflect")
        y = jax.lax.conv_general_dilated(
            hp, w, window_strides=(1, 1), padding="VALID",
            dimension_numbers=("NCHW", "OIHW", "NCHW"),
            precision=jax.lax.Precision.HIGHEST)
        return y + b.reshape(1, -1, 1, 1)

    def instance_norm(h):
        mean = jnp.mean(h, axis=(2, 3), keepdims=True)
        var = jnp.var(h, axis=(2, 3), keepdims=True)  # biased, like PyTorch IN
        return (h - mean) * jax.lax.rsqrt(var + eps)

    h = conv3x3_reflect(x_nchw, params["w1"], params["b1"])
    h = jax.nn.relu(instance_norm(h))
    h = conv3x3_reflect(h, params["w2"], params["b2"])
    h = instance_norm(h)
    return x_nchw + h


if __name__ == "__main__":
    NB_FEAT = 32           # nb_feat
    N, H, W = 2, 16, 16

    key = jax.random.PRNGKey(0)
    k_x, k_p = jax.random.split(key)
    x = jax.random.normal(k_x, (N, NB_FEAT, H, W), jnp.float32)
    params = init_params(k_p, NB_FEAT)

    out = jax.jit(residual_block)(x, params)
    out = jax.block_until_ready(out)

    ref = reference_forward(x, params)
    assert out.shape == (N, NB_FEAT, H, W), out.shape
    max_err = float(jnp.max(jnp.abs(out - ref)))
    assert jnp.allclose(out, ref, atol=1e-3, rtol=1e-3), f"max_err={max_err}"
    print("KERNEL_OK")
</pallas_src>

<mosaic_0001>
module attributes {stable_mosaic.version = 11 : i64} {
  func.func @_residual_block_kernel(%arg0: i32, %arg1: memref<1x16x16x32xf32, #tpu.memory_space<vmem>>, %arg2: memref<3x96x32xf32, #tpu.memory_space<vmem>>, %arg3: memref<1x32xf32, #tpu.memory_space<vmem>>, %arg4: memref<3x96x32xf32, #tpu.memory_space<vmem>>, %arg5: memref<1x32xf32, #tpu.memory_space<vmem>>, %arg6: memref<1x16x16x32xf32, #tpu.memory_space<vmem>>, %arg7: memref<16x18x96xf32, #tpu.memory_space<vmem>>) attributes {dimension_semantics = [#tpu.dimension_semantics<parallel>], iteration_bounds = array<i64: 2>, scalar_prefetch = 0 : i64, scratch_operands = 1 : i64, tpu.core_type = #tpu.core_type<tc>, window_params = [{transform_indices = @transform_0, window_bounds = array<i64: 1, 16, 16, 32>}, {pipeline_mode = #tpu.pipeline_mode<synchronous>, transform_indices = @transform_1, window_bounds = array<i64: 3, 96, 32>}, {pipeline_mode = #tpu.pipeline_mode<synchronous>, transform_indices = @transform_2, window_bounds = array<i64: 1, 32>}, {pipeline_mode = #tpu.pipeline_mode<synchronous>, transform_indices = @transform_3, window_bounds = array<i64: 3, 96, 32>}, {pipeline_mode = #tpu.pipeline_mode<synchronous>, transform_indices = @transform_4, window_bounds = array<i64: 1, 32>}, {transform_indices = @transform_5, window_bounds = array<i64: 1, 16, 16, 32>}]} {
    %c0 = arith.constant 0 : index
    %c1 = arith.constant 1 : index
    %c0_0 = arith.constant 0 : index
    %c0_1 = arith.constant 0 : index
    %0 = vector.load %arg1[%c0, %c1, %c0_0, %c0_1] : memref<1x16x16x32xf32, #tpu.memory_space<vmem>>, vector<1x1x16x32xf32>
    %1 = vector.shape_cast %0 : vector<1x1x16x32xf32> to vector<1x16x32xf32>
    %c0_2 = arith.constant 0 : index
    %c1_3 = arith.constant 1 : index
    %c0_4 = arith.constant 0 : index
    %2 = vector.load %arg7[%c0_2, %c1_3, %c0_4] : memref<16x18x96xf32, #tpu.memory_space<vmem>>, vector<1x16x32xf32>
    tpu.vector_store %arg7[%c0_2, %c1_3, %c0_4], %1 {strides = array<i32>} : memref<16x18x96xf32, #tpu.memory_space<vmem>>, vector<1x16x32xf32>,
    %c0_5 = arith.constant 0 : index
    %c0_6 = arith.constant 0 : index
    %c0_7 = arith.constant 0 : index
    %c0_8 = arith.constant 0 : index
    %3 = vector.load %arg1[%c0_5, %c0_6, %c0_7, %c0_8] : memref<1x16x16x32xf32, #tpu.memory_space<vmem>>, vector<1x15x16x32xf32>
    %4 = vector.shape_cast %3 : vector<1x15x16x32xf32> to vector<15x16x32xf32>
    %c1_9 = arith.constant 1 : index
    %c1_10 = arith.constant 1 : index
    %c0_11 = arith.constant 0 : index
    %5 = vector.load %arg7[%c1_9, %c1_10, %c0_11] : memref<16x18x96xf32, #tpu.memory_space<vmem>>, vector<15x16x32xf32>
    tpu.vector_store %arg7[%c1_9, %c1_10, %c0_11], %4 {strides = array<i32>} : memref<16x18x96xf32, #tpu.memory_space<vmem>>, vector<15x16x32xf32>,
    %c0_12 = arith.constant 0 : index
    %c0_13 = arith.constant 0 : index
    %c0_14 = arith.constant 0 : index
    %c0_15 = arith.constant 0 : index
    %6 = vector.load %arg1[%c0_12, %c0_13, %c0_14, %c0_15] : memref<1x16x16x32xf32, #tpu.memory_space<vmem>>, vector<1x16x16x32xf32>
    %7 = vector.shape_cast %6 : vector<1x16x16x32xf32> to vector<16x16x32xf32>
    %c0_16 = arith.constant 0 : index
    %c1_17 = arith.constant 1 : index
    %c32 = arith.constant 32 : index
    %8 = vector.load %arg7[%c0_16, %c1_17, %c32] : memref<16x18x96xf32, #tpu.memory_space<vmem>>, vector<16x16x32xf32>
    tpu.vector_store %arg7[%c0_16, %c1_17, %c32], %7 {strides = array<i32>} : memref<16x18x96xf32, #tpu.memory_space<vmem>>, vector<16x16x32xf32>,
    %c0_18 = arith.constant 0 : index
    %c1_19 = arith.constant 1 : index
    %c0_20 = arith.constant 0 : index
    %c0_21 = arith.constant 0 : index
    %9 = vector.load %arg1[%c0_18, %c1_19, %c0_20, %c0_21] : memref<1x16x16x32xf32, #tpu.memory_space<vmem>>, vector<1x15x16x32xf32>
    %10 = vector.shape_cast %9 : vector<1x15x16x32xf32> to vector<15x16x32xf32>
    %c0_22 = arith.constant 0 : index
    %c1_23 = arith.constant 1 : index
    %c64 = arith.constant 64 : index
    %11 = vector.load %arg7[%c0_22, %c1_23, %c64] : memref<16x18x96xf32, #tpu.memory_space<vmem>>, vector<15x16x32xf32>
    tpu.vector_store %arg7[%c0_22, %c1_23, %c64], %10 {strides = array<i32>} : memref<16x18x96xf32, #tpu.memory_space<vmem>>, vector<15x16x32xf32>,
    %c0_24 = arith.constant 0 : index
    %c14 = arith.constant 14 : index
    %c0_25 = arith.constant 0 : index
    %c0_26 = arith.constant 0 : index
    %12 = vector.load %arg1[%c0_24, %c14, %c0_25, %c0_26] : memref<1x16x16x32xf32, #tpu.memory_space<vmem>>, vector<1x1x16x32xf32>
    %13 = vector.shape_cast %12 : vector<1x1x16x32xf32> to vector<1x16x32xf32>
    %c15 = arith.constant 15 : index
    %c1_27 = arith.constant 1 : index
    %c64_28 = arith.constant 64 : index
    %14 = vector.load %arg7[%c15, %c1_27, %c64_28] : memref<16x18x96xf32, #tpu.memory_space<vmem>>, vector<1x16x32xf32>
    tpu.vector_store %arg7[%c15, %c1_27, %c64_28], %13 {strides = array<i32>} : memref<16x18x96xf32, #tpu.memory_space<vmem>>, vector<1x16x32xf32>,
    %c0_29 = arith.constant 0 : index
    %c2 = arith.constant 2 : index
    %c0_30 = arith.constant 0 : index
    %15 = vector.load %arg7[%c0_29, %c2, %c0_30] : memref<16x18x96xf32, #tpu.memory_space<vmem>>, vector<16x1x96xf32>
    %c0_31 = arith.constant 0 : index
    %c0_32 = arith.constant 0 : index
    %c0_33 = arith.constant 0 : index
    %16 = vector.load %arg7[%c0_31, %c0_32, %c0_33] : memref<16x18x96xf32, #tpu.memory_space<vmem>>, vector<16x1x96xf32>
    tpu.vector_store %arg7[%c0_31, %c0_32, %c0_33], %15 {strides = array<i32>} : memref<16x18x96xf32, #tpu.memory_space<vmem>>, vector<16x1x96xf32>,
    %c0_34 = arith.constant 0 : index
    %c15_35 = arith.constant 15 : index
    %c0_36 = arith.constant 0 : index
    %17 = vector.load %arg7[%c0_34, %c15_35, %c0_36] : memref<16x18x96xf32, #tpu.memory_space<vmem>>, vector<16x1x96xf32>
    %c0_37 = arith.constant 0 : index
    %c17 = arith.constant 17 : index
    %c0_38 = arith.constant 0 : index
    %18 = vector.load %arg7[%c0_37, %c17, %c0_38] : memref<16x18x96xf32, #tpu.memory_space<vmem>>, vector<16x1x96xf32>
    tpu.vector_store %arg7[%c0_37, %c17, %c0_38], %17 {strides = array<i32>} : memref<16x18x96xf32, #tpu.memory_space<vmem>>, vector<16x1x96xf32>,
    %cst = arith.constant 0.000000e+00 : f32
    %19 = vector.broadcast %cst : f32 to vector<256x32xf32>
    %c0_39 = arith.constant 0 : index
    %c0_40 = arith.constant 0 : index
    %c0_41 = arith.constant 0 : index
    %20 = vector.load %arg7[%c0_39, %c0_40, %c0_41] : memref<16x18x96xf32, #tpu.memory_space<vmem>>, vector<16x16x96xf32>
    %21 = vector.shape_cast %20 : vector<16x16x96xf32> to vector<256x96xf32>
    %c0_42 = arith.constant 0 : index
    %c0_43 = arith.constant 0 : index
    %c0_44 = arith.constant 0 : index
    %22 = vector.load %arg2[%c0_42, %c0_43, %c0_44] : memref<3x96x32xf32, #tpu.memory_space<vmem>>, vector<1x96x32xf32>
    %23 = vector.shape_cast %22 : vector<1x96x32xf32> to vector<96x32xf32>
    %cst_45 = arith.constant dense<0.000000e+00> : vector<256x32xf32>
    %24 = tpu.matmul %21, %23, %cst_45 {dimension_numbers = #tpu.dot_dimension_numbers<[1], [0], [0], [1], [0, 0, 1, 1], [], []>} : vector<256x96xf32>, vector<96x32xf32>, vector<256x32xf32> -> vector<256x32xf32>
    %25 = arith.addf %19, %24 : vector<256x32xf32>
    %c0_46 = arith.constant 0 : index
    %c1_47 = arith.constant 1 : index
    %c0_48 = arith.constant 0 : index
    %26 = vector.load %arg7[%c0_46, %c1_47, %c0_48] : memref<16x18x96xf32, #tpu.memory_space<vmem>>, vector<16x16x96xf32>
    %27 = vector.shape_cast %26 : vector<16x16x96xf32> to vector<256x96xf32>
    %c1_49 = arith.constant 1 : index
    %c0_50 = arith.constant 0 : index
    %c0_51 = arith.constant 0 : index
    %28 = vector.load %arg2[%c1_49, %c0_50, %c0_51] : memref<3x96x32xf32, #tpu.memory_space<vmem>>, vector<1x96x32xf32>
    %29 = vector.shape_cast %28 : vector<1x96x32xf32> to vector<96x32xf32>
    %cst_52 = arith.constant dense<0.000000e+00> : vector<256x32xf32>
    %30 = tpu.matmul %27, %29, %cst_52 {dimension_numbers = #tpu.dot_dimension_numbers<[1], [0], [0], [1], [0, 0, 1, 1], [], []>} : vector<256x96xf32>, vector<96x32xf32>, vector<256x32xf32> -> vector<256x32xf32>
    %31 = arith.addf %25, %30 : vector<256x32xf32>
    %c0_53 = arith.constant 0 : index
    %c2_54 = arith.constant 2 : index
    %c0_55 = arith.constant 0 : index
    %32 = vector.load %arg7[%c0_53, %c2_54, %c0_55] : memref<16x18x96xf32, #tpu.memory_space<vmem>>, vector<16x16x96xf32>
    %33 = vector.shape_cast %32 : vector<16x16x96xf32> to vector<256x96xf32>
    %c2_56 = arith.constant 2 : index
    %c0_57 = arith.constant 0 : index
    %c0_58 = arith.constant 0 : index
    %34 = vector.load %arg2[%c2_56, %c0_57, %c0_58] : memref<3x96x32xf32, #tpu.memory_space<vmem>>, vector<1x96x32xf32>
    %35 = vector.shape_cast %34 : vector<1x96x32xf32> to vector<96x32xf32>
    %cst_59 = arith.constant dense<0.000000e+00> : vector<256x32xf32>
    %36 = tpu.matmul %33, %35, %cst_59 {dimension_numbers = #tpu.dot_dimension_numbers<[1], [0], [0], [1], [0, 0, 1, 1], [], []>} : vector<256x96xf32>, vector<96x32xf32>, vector<256x32xf32> -> vector<256x32xf32>
    %37 = arith.addf %31, %36 : vector<256x32xf32>
    %c0_60 = arith.constant 0 : index
    %c0_61 = arith.constant 0 : index
    %38 = vector.load %arg3[%c0_60, %c0_61] : memref<1x32xf32, #tpu.memory_space<vmem>>, vector<1x32xf32>
    %39 = vector.broadcast %38 : vector<1x32xf32> to vector<256x32xf32>
    %40 = arith.addf %37, %39 : vector<256x32xf32>
    %cst_62 = arith.constant dense<0.000000e+00> : vector<32xf32>
    %41 = vector.multi_reduction <add>, %40, %cst_62 [0] : vector<256x32xf32> to vector<32xf32>
    %42 = vector.shape_cast %41 : vector<32xf32> to vector<1x32xf32>
    %cst_63 = arith.constant 2.560000e+02 : f32
    %43 = vector.broadcast %cst_63 : f32 to vector<1x32xf32>
    %44 = arith.divf %42, %43 : vector<1x32xf32>
    %45 = vector.broadcast %44 : vector<1x32xf32> to vector<256x32xf32>
    %46 = arith.subf %40, %45 : vector<256x32xf32>
    %47 = arith.mulf %46, %46 : vector<256x32xf32>
    %cst_64 = arith.constant dense<0.000000e+00> : vector<32xf32>
    %48 = vector.multi_reduction <add>, %47, %cst_64 [0] : vector<256x32xf32> to vector<32xf32>
    %49 = vector.shape_cast %48 : vector<32xf32> to vector<1x32xf32>
    %cst_65 = arith.constant 2.560000e+02 : f32
    %50 = vector.broadcast %cst_65 : f32 to vector<1x32xf32>
    %51 = arith.divf %49, %50 : vector<1x32xf32>
    %cst_66 = arith.constant 9.99999974E-6 : f32
    %52 = vector.broadcast %cst_66 : f32 to vector<1x32xf32>
    %53 = arith.addf %51, %52 : vector<1x32xf32>
    %54 = math.rsqrt %53 : vector<1x32xf32>
    %55 = vector.broadcast %54 : vector<1x32xf32> to vector<256x32xf32>
    %56 = arith.mulf %46, %55 : vector<256x32xf32>
    %cst_67 = arith.constant 0.000000e+00 : f32
    %57 = vector.broadcast %cst_67 : f32 to vector<256x32xf32>
    %58 = arith.maximumf %56, %57 : vector<256x32xf32>
    %59 = vector.shape_cast %58 : vector<256x32xf32> to vector<16x16x32xf32>
    %60 = vector.extract_strided_slice %59 {offsets = [1, 0, 0], sizes = [1, 16, 32], strides = [1, 1, 1]} : vector<16x16x32xf32> to vector<1x16x32xf32>
    %c0_68 = arith.constant 0 : index
    %c1_69 = arith.constant 1 : index
    %c0_70 = arith.constant 0 : index
    %61 = vector.load %arg7[%c0_68, %c1_69, %c0_70] : memref<16x18x96xf32, #tpu.memory_space<vmem>>, vector<1x16x32xf32>
    tpu.vector_store %arg7[%c0_68, %c1_69, %c0_70], %60 {strides = array<i32>} : memref<16x18x96xf32, #tpu.memory_space<vmem>>, vector<1x16x32xf32>,
    %62 = vector.extract_strided_slice %59 {offsets = [0, 0, 0], sizes = [15, 16, 32], strides = [1, 1, 1]} : vector<16x16x32xf32> to vector<15x16x32xf32>
    %c1_71 = arith.constant 1 : index
    %c1_72 = arith.constant 1 : index
    %c0_73 = arith.constant 0 : index
    %63 = vector.load %arg7[%c1_71, %c1_72, %c0_73] : memref<16x18x96xf32, #tpu.memory_space<vmem>>, vector<15x16x32xf32>
    tpu.vector_store %arg7[%c1_71, %c1_72, %c0_73], %62 {strides = array<i32>} : memref<16x18x96xf32, #tpu.memory_space<vmem>>, vector<15x16x32xf32>,
    %c0_74 = arith.constant 0 : index
    %c1_75 = arith.constant 1 : index
    %c32_76 = arith.constant 32 : index
    %64 = vector.load %arg7[%c0_74, %c1_75, %c32_76] : memref<16x18x96xf32, #tpu.memory_space<vmem>>, vector<16x16x32xf32>
    tpu.vector_store %arg7[%c0_74, %c1_75, %c32_76], %59 {strides = array<i32>} : memref<16x18x96xf32, #tpu.memory_space<vmem>>, vector<16x16x32xf32>,
    %65 = vector.extract_strided_slice %59 {offsets = [1, 0, 0], sizes = [15, 16, 32], strides = [1, 1, 1]} : vector<16x16x32xf32> to vector<15x16x32xf32>
    %c0_77 = arith.constant 0 : index
    %c1_78 = arith.constant 1 : index
    %c64_79 = arith.constant 64 : index
    %66 = vector.load %arg7[%c0_77, %c1_78, %c64_79] : memref<16x18x96xf32, #tpu.memory_space<vmem>>, vector<15x16x32xf32>
    tpu.vector_store %arg7[%c0_77, %c1_78, %c64_79], %65 {strides = array<i32>} : memref<16x18x96xf32, #tpu.memory_space<vmem>>, vector<15x16x32xf32>,
    %67 = vector.extract_strided_slice %59 {offsets = [14, 0, 0], sizes = [1, 16, 32], strides = [1, 1, 1]} : vector<16x16x32xf32> to vector<1x16x32xf32>
    %c15_80 = arith.constant 15 : index
    %c1_81 = arith.constant 1 : index
    %c64_82 = arith.constant 64 : index
    %68 = vector.load %arg7[%c15_80, %c1_81, %c64_82] : memref<16x18x96xf32, #tpu.memory_space<vmem>>, vector<1x16x32xf32>
    tpu.vector_store %arg7[%c15_80, %c1_81, %c64_82], %67 {strides = array<i32>} : memref<16x18x96xf32, #tpu.memory_space<vmem>>, vector<1x16x32xf32>,
    %c0_83 = arith.constant 0 : index
    %c2_84 = arith.constant 2 : index
    %c0_85 = arith.constant 0 : index
    %69 = vector.load %arg7[%c0_83, %c2_84, %c0_85] : memref<16x18x96xf32, #tpu.memory_space<vmem>>, vector<16x1x96xf32>
    %c0_86 = arith.constant 0 : index
    %c0_87 = arith.constant 0 : index
    %c0_88 = arith.constant 0 : index
    %70 = vector.load %arg7[%c0_86, %c0_87, %c0_88] : memref<16x18x96xf32, #tpu.memory_space<vmem>>, vector<16x1x96xf32>
    tpu.vector_store %arg7[%c0_86, %c0_87, %c0_88], %69 {strides = array<i32>} : memref<16x18x96xf32, #tpu.memory_space<vmem>>, vector<16x1x96xf32>,
    %c0_89 = arith.constant 0 : index
    %c15_90 = arith.constant 15 : index
    %c0_91 = arith.constant 0 : index
    %71 = vector.load %arg7[%c0_89, %c15_90, %c0_91] : memref<16x18x96xf32, #tpu.memory_space<vmem>>, vector<16x1x96xf32>
    %c0_92 = arith.constant 0 : index
    %c17_93 = arith.constant 17 : index
    %c0_94 = arith.constant 0 : index
    %72 = vector.load %arg7[%c0_92, %c17_93, %c0_94] : memref<16x18x96xf32, #tpu.memory_space<vmem>>, vector<16x1x96xf32>
    tpu.vector_store %arg7[%c0_92, %c17_93, %c0_94], %71 {strides = array<i32>} : memref<16x18x96xf32, #tpu.memory_space<vmem>>, vector<16x1x96xf32>,
    %cst_95 = arith.constant 0.000000e+00 : f32
    %73 = vector.broadcast %cst_95 : f32 to vector<256x32xf32>
    %c0_96 = arith.constant 0 : index
    %c0_97 = arith.constant 0 : index
    %c0_98 = arith.constant 0 : index
    %74 = vector.load %arg7[%c0_96, %c0_97, %c0_98] : memref<16x18x96xf32, #tpu.memory_space<vmem>>, vector<16x16x96xf32>
    %75 = vector.shape_cast %74 : vector<16x16x96xf32> to vector<256x96xf32>
    %c0_99 = arith.constant 0 : index
    %c0_100 = arith.constant 0 : index
    %c0_101 = arith.constant 0 : index
    %76 = vector.load %arg4[%c0_99, %c0_100, %c0_101] : memref<3x96x32xf32, #tpu.memory_space<vmem>>, vector<1x96x32xf32>
    %77 = vector.shape_cast %76 : vector<1x96x32xf32> to vector<96x32xf32>
    %cst_102 = arith.constant dense<0.000000e+00> : vector<256x32xf32>
    %78 = tpu.matmul %75, %77, %cst_102 {dimension_numbers = #tpu.dot_dimension_numbers<[1], [0], [0], [1], [0, 0, 1, 1], [], []>} : vector<256x96xf32>, vector<96x32xf32>, vector<256x32xf32> -> vector<256x32xf32>
    %79 = arith.addf %73, %78 : vector<256x32xf32>
    %c0_103 = arith.constant 0 : index
    %c1_104 = arith.constant 1 : index
    %c0_105 = arith.constant 0 : index
    %80 = vector.load %arg7[%c0_103, %c1_104, %c0_105] : memref<16x18x96xf32, #tpu.memory_space<vmem>>, vector<16x16x96xf32>
    %81 = vector.shape_cast %80 : vector<16x16x96xf32> to vector<256x96xf32>
    %c1_106 = arith.constant 1 : index
    %c0_107 = arith.constant 0 : index
    %c0_108 = arith.constant 0 : index
    %82 = vector.load %arg4[%c1_106, %c0_107, %c0_108] : memref<3x96x32xf32, #tpu.memory_space<vmem>>, vector<1x96x32xf32>
    %83 = vector.shape_cast %82 : vector<1x96x32xf32> to vector<96x32xf32>
    %cst_109 = arith.constant dense<0.000000e+00> : vector<256x32xf32>
    %84 = tpu.matmul %81, %83, %cst_109 {dimension_numbers = #tpu.dot_dimension_numbers<[1], [0], [0], [1], [0, 0, 1, 1], [], []>} : vector<256x96xf32>, vector<96x32xf32>, vector<256x32xf32> -> vector<256x32xf32>
    %85 = arith.addf %79, %84 : vector<256x32xf32>
    %c0_110 = arith.constant 0 : index
    %c2_111 = arith.constant 2 : index
    %c0_112 = arith.constant 0 : index
    %86 = vector.load %arg7[%c0_110, %c2_111, %c0_112] : memref<16x18x96xf32, #tpu.memory_space<vmem>>, vector<16x16x96xf32>
    %87 = vector.shape_cast %86 : vector<16x16x96xf32> to vector<256x96xf32>
    %c2_113 = arith.constant 2 : index
    %c0_114 = arith.constant 0 : index
    %c0_115 = arith.constant 0 : index
    %88 = vector.load %arg4[%c2_113, %c0_114, %c0_115] : memref<3x96x32xf32, #tpu.memory_space<vmem>>, vector<1x96x32xf32>
    %89 = vector.shape_cast %88 : vector<1x96x32xf32> to vector<96x32xf32>
    %cst_116 = arith.constant dense<0.000000e+00> : vector<256x32xf32>
    %90 = tpu.matmul %87, %89, %cst_116 {dimension_numbers = #tpu.dot_dimension_numbers<[1], [0], [0], [1], [0, 0, 1, 1], [], []>} : vector<256x96xf32>, vector<96x32xf32>, vector<256x32xf32> -> vector<256x32xf32>
    %91 = arith.addf %85, %90 : vector<256x32xf32>
    %c0_117 = arith.constant 0 : index
    %c0_118 = arith.constant 0 : index
    %92 = vector.load %arg5[%c0_117, %c0_118] : memref<1x32xf32, #tpu.memory_space<vmem>>, vector<1x32xf32>
    %93 = vector.broadcast %92 : vector<1x32xf32> to vector<256x32xf32>
    %94 = arith.addf %91, %93 : vector<256x32xf32>
    %cst_119 = arith.constant dense<0.000000e+00> : vector<32xf32>
    %95 = vector.multi_reduction <add>, %94, %cst_119 [0] : vector<256x32xf32> to vector<32xf32>
    %96 = vector.shape_cast %95 : vector<32xf32> to vector<1x32xf32>
    %cst_120 = arith.constant 2.560000e+02 : f32
    %97 = vector.broadcast %cst_120 : f32 to vector<1x32xf32>
    %98 = arith.divf %96, %97 : vector<1x32xf32>
    %99 = vector.broadcast %98 : vector<1x32xf32> to vector<256x32xf32>
    %100 = arith.subf %94, %99 : vector<256x32xf32>
    %101 = arith.mulf %100, %100 : vector<256x32xf32>
    %cst_121 = arith.constant dense<0.000000e+00> : vector<32xf32>
    %102 = vector.multi_reduction <add>, %101, %cst_121 [0] : vector<256x32xf32> to vector<32xf32>
    %103 = vector.shape_cast %102 : vector<32xf32> to vector<1x32xf32>
    %cst_122 = arith.constant 2.560000e+02 : f32
    %104 = vector.broadcast %cst_122 : f32 to vector<1x32xf32>
    %105 = arith.divf %103, %104 : vector<1x32xf32>
    %cst_123 = arith.constant 9.99999974E-6 : f32
    %106 = vector.broadcast %cst_123 : f32 to vector<1x32xf32>
    %107 = arith.addf %105, %106 : vector<1x32xf32>
    %108 = math.rsqrt %107 : vector<1x32xf32>
    %109 = vector.broadcast %108 : vector<1x32xf32> to vector<256x32xf32>
    %110 = arith.mulf %100, %109 : vector<256x32xf32>
    %c0_124 = arith.constant 0 : index
    %c0_125 = arith.constant 0 : index
    %c0_126 = arith.constant 0 : index
    %c0_127 = arith.constant 0 : index
    %111 = vector.load %arg1[%c0_124, %c0_125, %c0_126, %c0_127] : memref<1x16x16x32xf32, #tpu.memory_space<vmem>>, vector<1x16x16x32xf32>
    %112 = vector.shape_cast %111 : vector<1x16x16x32xf32> to vector<16x16x32xf32>
    %113 = vector.shape_cast %112 : vector<16x16x32xf32> to vector<256x32xf32>
    %114 = arith.addf %110, %113 : vector<256x32xf32>
    %115 = vector.shape_cast %114 : vector<256x32xf32> to vector<16x16x32xf32>
    %c0_128 = arith.constant 0 : index
    %c0_129 = arith.constant 0 : index
    %c0_130 = arith.constant 0 : index
    %c0_131 = arith.constant 0 : index
    %116 = vector.load %arg6[%c0_128, %c0_129, %c0_130, %c0_131] : memref<1x16x16x32xf32, #tpu.memory_space<vmem>>, vector<1x16x16x32xf32>
    %117 = vector.shape_cast %116 : vector<1x16x16x32xf32> to vector<16x16x32xf32>
    %118 = vector.shape_cast %115 : vector<16x16x32xf32> to vector<1x16x16x32xf32>
    tpu.vector_store %arg6[%c0_128, %c0_129, %c0_130, %c0_131], %118 {strides = array<i32>} : memref<1x16x16x32xf32, #tpu.memory_space<vmem>>, vector<1x16x16x32xf32>,
    return
  }
  func.func @transform_0(%arg0: i32) -> (i32, i32, i32, i32) {
    %c0_i32 = arith.constant 0 : i32
    %c0_i32_0 = arith.constant 0 : i32
    %c0_i32_1 = arith.constant 0 : i32
    %c0_i32_2 = arith.constant 0 : i32
    return %arg0, %c0_i32, %c0_i32_0, %c0_i32_1 : i32, i32, i32, i32
  }
  func.func @transform_1(%arg0: i32) -> (i32, i32, i32) {
    %c0_i32 = arith.constant 0 : i32
    %c0_i32_0 = arith.constant 0 : i32
    %c0_i32_1 = arith.constant 0 : i32
    %c0_i32_2 = arith.constant 0 : i32
    return %c0_i32, %c0_i32_0, %c0_i32_1 : i32, i32, i32
  }
  func.func @transform_2(%arg0: i32) -> (i32, i32) {
    %c0_i32 = arith.constant 0 : i32
    %c0_i32_0 = arith.constant 0 : i32
    %c0_i32_1 = arith.constant 0 : i32
    return %c0_i32, %c0_i32_0 : i32, i32
  }
  func.func @transform_3(%arg0: i32) -> (i32, i32, i32) {
    %c0_i32 = arith.constant 0 : i32
    %c0_i32_0 = arith.constant 0 : i32
    %c0_i32_1 = arith.constant 0 : i32
    %c0_i32_2 = arith.constant 0 : i32
    return %c0_i32, %c0_i32_0, %c0_i32_1 : i32, i32, i32
  }
  func.func @transform_4(%arg0: i32) -> (i32, i32) {
    %c0_i32 = arith.constant 0 : i32
    %c0_i32_0 = arith.constant 0 : i32
    %c0_i32_1 = arith.constant 0 : i32
    return %c0_i32, %c0_i32_0 : i32, i32
  }
  func.func @transform_5(%arg0: i32) -> (i32, i32, i32, i32) {
    %c0_i32 = arith.constant 0 : i32
    %c0_i32_0 = arith.constant 0 : i32
    %c0_i32_1 = arith.constant 0 : i32
    %c0_i32_2 = arith.constant 0 : i32
    return %arg0, %c0_i32, %c0_i32_0, %c0_i32_1 : i32, i32, i32, i32
  }
}

</mosaic_0001>

<llo_original>
// kernel: residual_block.1
$region0: #{residual_block.1}
  #allocation0 [shape = 'u32[]', space=smem, size = 0x4, offset = 0x4, fixed_abs, tag = 'smem constant byte address 0x4 - core index']
  #allocation1 [shape = 'u32[144,128]{1,0:T(1,128)}', space=vmem, size = 0x12000, scoped, tag = 'internal scratch']
  #allocation2 [shape = 'f32[16,18,96]{2,1,0:T(8,128)}', space=vmem, size = 0x30000, scoped, tag = 'scratch operand']
  %s0 = inlined_call_operand.vmem [shape: f32[2,16,16,32], index: 0, kind: input, shape index: {}]
  %s1 = inlined_call_operand.vmem [shape: f32[3,96,32], index: 1, kind: input, shape index: {}]
  %s2 = inlined_call_operand.vmem [shape: f32[1,32], index: 2, kind: input, shape index: {}]
  %s3 = inlined_call_operand.vmem [shape: f32[3,96,32], index: 3, kind: input, shape index: {}]
  %s4 = inlined_call_operand.vmem [shape: f32[1,32], index: 4, kind: input, shape index: {}]
  %s5 = inlined_call_operand.hbm [shape: f32[2,16,16,32], index: 5, kind: output, shape index: {}]
  %s6 = sld [smem:[#allocation0]]
  $region53: #{residual_block.1} parent=0
    _
  %s8 = ssub.s32 1, %s6
  %s9 = scalar_select 0, %s8, %s6
  $region1: #{residual_block.1} parent=0
    #allocation3 [shape = 'u8[262144]{0}', space=vmem, size = 0x40000, scoped, tag = 'output window, operand 0']
    #allocation4 [shape = 's32[2]{0}', space=sflag, size = 0x8, scoped, tag = 'scoped memory for residual_block.1']
    %10 = vsyncpa [#allocation4], 0
    %s11 = scalar_lea.sflag [#allocation4], 1
    %12 = vsyncpa %s11, 0
    loop: start=0, step=1, limit=4
    $region2: #{residual_block.1} parent=1 // loop_pre_header
      _
    $region3: #{residual_block.1} parent=1 // loop_header
      %s14 = sphi 0, %s18
      %p15 = scmp.ge.s32.totalorder %s14, 4
      %s24 = sphi 0, %s26
      %s27 = sphi 0, %s24
      %s28 = sphi 0, %s27
      %s44 = sphi 0, %s28
      %s48 = sphi 0, %s48
      %s50 = sphi 0, %s48
      %s51 = sphi 0, %s50
      %s65 = sphi 0, %s51
      %s69 = sphi 0, %s69
      %s71 = sphi 0, %s69
      %s72 = sphi 0, %s71
      %s86 = sphi 0, %s72
      %s90 = sphi 0, %s90
      %s92 = sphi 0, %s90
      %s93 = sphi 0, %s92
      %s107 = sphi 0, %s93
      %s111 = sphi 0, %s111
      %s113 = sphi 0, %s111
      %s114 = sphi 0, %s113
      %s128 = sphi 0, %s114
      %s134 = sphi 0, %s136
      %s137 = sphi 0, %s134
      %s138 = sphi 0, %s137
      %s154 = sphi 0, %s138
    $region4: #{residual_block.1} parent=1 // loop_header_branch
      %17 = sbr.rel (%p15) target = $region8
    $region5: #{residual_block.1} parent=1 // loop_body
      %s19 = ssub.s32 %s14, 1
      %s20 = ssub.s32 %s14, 2
      %s21 = sadd.s32 %s14, 1
      %s22 = ssub.s32 %s14, %s21
      %p23 = scmp.eq.s32.totalorder %s22, 0
      %s25 = sadd.s32 %s24, 1
      %s26 = scalar_select %p23, %s24, %s25
      %p29 = pneg %p23
      %p30 = scmp.eq.s32.totalorder %s14, 1
      %p31 = por %p29, %p30
      %p32 = scmp.ne.s32.totalorder %s24, %s27
      %p33 = scmp.eq.s32.totalorder %s14, 0
      %p34 = por %p32, %p33
      %p35 = scmp.ne.s32.totalorder %s24, %s27
      %p36 = scmp.eq.s32.totalorder %s19, 1
      %p37 = por %p35, %p36
      %p38 = scmp.ne.s32.totalorder %s27, %s28
      %p39 = scmp.eq.s32.totalorder %s19, 0
      %p40 = por %p38, %p39
      %p41 = scmp.ne.s32.totalorder %s27, %s28
      %p42 = scmp.eq.s32.totalorder %s20, 1
      %p43 = por %p41, %p42
      %p45 = scmp.ne.s32.totalorder %s28, %s44
      %p46 = scmp.eq.s32.totalorder %s20, 0
      %p47 = por %p45, %p46
      %s49 = sadd.s32 %s48, 1
      %p52 = scmp.eq.s32.totalorder %s14, 1
      %p53 = scmp.ne.s32.totalorder %s48, %s50
      %p54 = scmp.eq.s32.totalorder %s14, 0
      %p55 = por %p53, %p54
      %p56 = scmp.ne.s32.totalorder %s48, %s50
      %p57 = scmp.eq.s32.totalorder %s19, 1
      %p58 = por %p56, %p57
      %p59 = scmp.ne.s32.totalorder %s50, %s51
      %p60 = scmp.eq.s32.totalorder %s19, 0
      %p61 = por %p59, %p60
      %p62 = scmp.ne.s32.totalorder %s50, %s51
      %p63 = scmp.eq.s32.totalorder %s20, 1
      %p64 = por %p62, %p63
      %p66 = scmp.ne.s32.totalorder %s51, %s65
      %p67 = scmp.eq.s32.totalorder %s20, 0
      %p68 = por %p66, %p67
      %s70 = sadd.s32 %s69, 1
      %p73 = scmp.eq.s32.totalorder %s14, 1
      %p74 = scmp.ne.s32.totalorder %s69, %s71
      %p75 = scmp.eq.s32.totalorder %s14, 0
      %p76 = por %p74, %p75
      %p77 = scmp.ne.s32.totalorder %s69, %s71
      %p78 = scmp.eq.s32.totalorder %s19, 1
      %p79 = por %p77, %p78
      %p80 = scmp.ne.s32.totalorder %s71, %s72
      %p81 = scmp.eq.s32.totalorder %s19, 0
      %p82 = por %p80, %p81
      %p83 = scmp.ne.s32.totalorder %s71, %s72
      %p84 = scmp.eq.s32.totalorder %s20, 1
      %p85 = por %p83, %p84
      %p87 = scmp.ne.s32.totalorder %s72, %s86
      %p88 = scmp.eq.s32.totalorder %s20, 0
      %p89 = por %p87, %p88
      %s91 = sadd.s32 %s90, 1
      %p94 = scmp.eq.s32.totalorder %s14, 1
      %p95 = scmp.ne.s32.totalorder %s90, %s92
      %p96 = scmp.eq.s32.totalorder %s14, 0
      %p97 = por %p95, %p96
      %p98 = scmp.ne.s32.totalorder %s90, %s92
      %p99 = scmp.eq.s32.totalorder %s19, 1
      %p100 = por %p98, %p99
      %p101 = scmp.ne.s32.totalorder %s92, %s93
      %p102 = scmp.eq.s32.totalorder %s19, 0
      %p103 = por %p101, %p102
      %p104 = scmp.ne.s32.totalorder %s92, %s93
      %p105 = scmp.eq.s32.totalorder %s20, 1
      %p106 = por %p104, %p105
      %p108 = scmp.ne.s32.totalorder %s93, %s107
      %p109 = scmp.eq.s32.totalorder %s20, 0
      %p110 = por %p108, %p109
      %s112 = sadd.s32 %s111, 1
      %p115 = scmp.eq.s32.totalorder %s14, 1
      %p116 = scmp.ne.s32.totalorder %s111, %s113
      %p117 = scmp.eq.s32.totalorder %s14, 0
      %p118 = por %p116, %p117
      %p119 = scmp.ne.s32.totalorder %s111, %s113
      %p120 = scmp.eq.s32.totalorder %s19, 1
      %p121 = por %p119, %p120
      %p122 = scmp.ne.s32.totalorder %s113, %s114
      %p123 = scmp.eq.s32.totalorder %s19, 0
      %p124 = por %p122, %p123
      %p125 = scmp.ne.s32.totalorder %s113, %s114
      %p126 = scmp.eq.s32.totalorder %s20, 1
      %p127 = por %p125, %p126
      %p129 = scmp.ne.s32.totalorder %s114, %s128
      %p130 = scmp.eq.s32.totalorder %s20, 0
      %p131 = por %p129, %p130
      %s132 = ssub.s32 %s14, %s21
      %p133 = scmp.eq.s32.totalorder %s132, 0
      %s135 = sadd.s32 %s134, 1
      %s136 = scalar_select %p133, %s134, %s135
      %p139 = pneg %p133
      %p140 = scmp.eq.s32.totalorder %s14, 1
      %p141 = por %p139, %p140
      %p142 = scmp.ne.s32.totalorder %s134, %s137
      %p143 = scmp.eq.s32.totalorder %s14, 0
      %p144 = por %p142, %p143
      %p145 = scmp.ne.s32.totalorder %s134, %s137
      %p146 = scmp.eq.s32.totalorder %s19, 1
      %p147 = por %p145, %p146
      %p148 = scmp.ne.s32.totalorder %s137, %s138
      %p149 = scmp.eq.s32.totalorder %s19, 0
      %p150 = por %p148, %p149
      %p151 = scmp.ne.s32.totalorder %s137, %s138
      %p152 = scmp.eq.s32.totalorder %s20, 1
      %p153 = por %p151, %p152
      %p155 = scmp.ne.s32.totalorder %s138, %s154
      %p156 = scmp.eq.s32.totalorder %s20, 0
      %p157 = por %p155, %p156
      %p158 = scmp.le.s32.totalorder 1, %s14
      %p159 = scmp.lt.s32.totalorder %s14, 3
      %p160 = pnand %p158, %p159
      %p161 = pneg %p160
      // Predicated region
      $region9: #{residual_block.1} parent=5 // pred_check
        _
      $region10: #{residual_block.1} parent=5 // pred_check_branch
        %163 = sbr.rel (%p160) target = $region12
      $region11: #{residual_block.1} parent=5 // pred_region
        %s164 = ssub.s32 %s14, 1
        // Predicated region
        $region13: #{residual_block.1} parent=11 // pred_check
          %p165 = pneg %p61
        $region14: #{residual_block.1} parent=11 // pred_check_branch
          %167 = sbr.rel (%p165) target = $region16
        $region15: #{residual_block.1} parent=11 // pred_region
          _
        $region16: #{residual_block.1} parent=11 // pred_fallthru
          _
        // Predicated region
        $region17: #{residual_block.1} parent=11 // pred_check
          %p168 = pneg %p82
        $region18: #{residual_block.1} parent=11 // pred_check_branch
          %170 = sbr.rel (%p168) target = $region20
        $region19: #{residual_block.1} parent=11 // pred_region
          _
        $region20: #{residual_block.1} parent=11 // pred_fallthru
          _
        // Predicated region
        $region21: #{residual_block.1} parent=11 // pred_check
          %p171 = pneg %p103
        $region22: #{residual_block.1} parent=11 // pred_check_branch
          %173 = sbr.rel (%p171) target = $region24
        $region23: #{residual_block.1} parent=11 // pred_region
          _
        $region24: #{residual_block.1} parent=11 // pred_fallthru
          _
        // Predicated region
        $region25: #{residual_block.1} parent=11 // pred_check
          %p174 = pneg %p124
        $region26: #{residual_block.1} parent=11 // pred_check_branch
          %176 = sbr.rel (%p174) target = $region28
        $region27: #{residual_block.1} parent=11 // pred_region
          _
        $region28: #{residual_block.1} parent=11 // pred_fallthru
          _
      $region12: #{residual_block.1} parent=5 // pred_fallthru
        _
      %p177 = scmp.lt.s32.totalorder %s14, 2
      // Predicated region
      $region29: #{residual_block.1} parent=5 // pred_check
        %p178 = pneg %p177
      $region30: #{residual_block.1} parent=5 // pred_check_branch
        %180 = sbr.rel (%p178) target = $region32
      $region31: #{residual_block.1} parent=5 // pred_region
        // Predicated region
        $region33: #{residual_block.1} parent=31 // pred_check
          %p181 = pneg %p34
        $region34: #{residual_block.1} parent=31 // pred_check_branch
          %183 = sbr.rel (%p181) target = $region36
        $region35: #{residual_block.1} parent=31 // pred_region
          %p184 = scmp.lt.s32.totalorder %s14, 1
          %s185 = scalar_select %p184, %s14, 1
          %s186 = smul.addr %s185, 32
          %s187 = smul.addr %s186, 8
          %s188 = scalar_lea.vmem %s0, %s187
        $region36: #{residual_block.1} parent=31 // pred_fallthru
          _
      $region32: #{residual_block.1} parent=5 // pred_fallthru
        _
      %p189 = scmp.le.s32.totalorder 1, %s14
      %p190 = scmp.lt.s32.totalorder %s14, 3
      %p191 = pnand %p189, %p190
      %p192 = pneg %p191
      // Predicated region
      $region37: #{residual_block.1} parent=5 // pred_check
        _
      $region38: #{residual_block.1} parent=5 // pred_check_branch
        %194 = sbr.rel (%p191) target = $region40
      $region39: #{residual_block.1} parent=5 // pred_region
        %s195 = ssub.s32 %s14, 1
        %p196 = scmp.lt.s32.totalorder %s19, 1
        %s197 = scalar_select %p196, %s19, 1
        %s198 = smul.addr %s197, 32
        %s199 = smul.addr %s198, 8
        %s200 = scalar_lea.vmem %s0, %s199
        %p201 = pneg %p40
        %p202 = pneg %p37
        %p203 = pneg %p61
        %p204 = pneg %p58
        %p205 = pneg %p82
        %p206 = pneg %p79
        %p207 = pneg %p103
        %p208 = pneg %p100
        %p209 = pneg %p124
        %p210 = pneg %p121
        %p211 = pneg %p150
        %p212 = pneg %p147
        %s213 = sand.u32 %s137, 1
        %s214 = scalar_lea.sflag [#allocation4], %s213
        %s215 = sand.u32 %s137, 1
        %s216 = smul.addr %s215, 256
        %s217 = scalar_lea.vmem [#allocation3], %s216
        %p218 = scmp.lt.s32.totalorder %s19, 1
        %s219 = scalar_select %p218, %s19, 1
        %s220 = smul.addr %s219, 32
        %s221 = smul.addr %s220, 8
        %s222 = scalar_lea.vmem %s0, %s221
        %s223 = scalar_lea.vmem %s222, 16
        %v224 = vld [vmem:[%s223] sm:$0xff]
        %v225 = vld [vmem:[%s223 + $0x8] sm:$0xff]
        %vm226 = vcmask 261120
        %227 = vst.msk [vmem:[#allocation2 + $0x1] sm:$0xff] %vm226, %v224
        %228 = vst.msk [vmem:[#allocation2 + $0x9] sm:$0xff] %vm226, %v225
        %v229 = vld [vmem:[%s222] sm:$0xff]
        %v230 = vld [vmem:[%s222 + $0x8] sm:$0xff]
        %v231 = vld [vmem:[%s222 + $0x10] sm:$0xff]
        %v232 = vld [vmem:[%s222 + $0x18] sm:$0xff]
        %v233 = vld [vmem:[%s222 + $0x20] sm:$0xff]
        %v234 = vld [vmem:[%s222 + $0x28] sm:$0xff]
        %v235 = vld [vmem:[%s222 + $0x30] sm:$0xff]
        %v236 = vld [vmem:[%s222 + $0x38] sm:$0xff]
        %v237 = vld [vmem:[%s222 + $0x40] sm:$0xff]
        %v238 = vld [vmem:[%s222 + $0x48] sm:$0xff]
        %v239 = vld [vmem:[%s222 + $0x50] sm:$0xff]
        %v240 = vld [vmem:[%s222 + $0x58] sm:$0xff]
        %v241 = vld [vmem:[%s222 + $0x60] sm:$0xff]
        %v242 = vld [vmem:[%s222 + $0x68] sm:$0xff]
        %v243 = vld [vmem:[%s222 + $0x70] sm:$0xff]
        %v244 = vld [vmem:[%s222 + $0x78] sm:$0xff]
        %v245 = vld [vmem:[%s222 + $0x80] sm:$0xff]
        %v246 = vld [vmem:[%s222 + $0x88] sm:$0xff]
        %v247 = vld [vmem:[%s222 + $0x90] sm:$0xff]
        %v248 = vld [vmem:[%s222 + $0x98] sm:$0xff]
        %v249 = vld [vmem:[%s222 + $0xa0] sm:$0xff]
        %v250 = vld [vmem:[%s222 + $0xa8] sm:$0xff]
        %v251 = vld [vmem:[%s222 + $0xb0] sm:$0xff]
        %v252 = vld [vmem:[%s222 + $0xb8] sm:$0xff]
        %v253 = vld [vmem:[%s222 + $0xc0] sm:$0xff]
        %v254 = vld [vmem:[%s222 + $0xc8] sm:$0xff]
        %v255 = vld [vmem:[%s222 + $0xd0] sm:$0xff]
        %v256 = vld [vmem:[%s222 + $0xd8] sm:$0xff]
        %v257 = vld [vmem:[%s222 + $0xe0] sm:$0xff]
        %v258 = vld [vmem:[%s222 + $0xe8] sm:$0xff]
        %s259 = scalar_lea.vmem [#allocation2], 24
        %260 = vst.msk [vmem:[%s259 + $0x1] sm:$0xff] %vm226, %v229
        %261 = vst.msk [vmem:[%s259 + $0x9] sm:$0xff] %vm226, %v230
        %262 = vst.msk [vmem:[%s259 + $0x19] sm:$0xff] %vm226, %v231
        %263 = vst.msk [vmem:[%s259 + $0x21] sm:$0xff] %vm226, %v232
        %264 = vst.msk [vmem:[%s259 + $0x31] sm:$0xff] %vm226, %v233
        %265 = vst.msk [vmem:[%s259 + $0x39] sm:$0xff] %vm226, %v234
        %266 = vst.msk [vmem:[%s259 + $0x49] sm:$0xff] %vm226, %v235
        %267 = vst.msk [vmem:[%s259 + $0x51] sm:$0xff] %vm226, %v236
        %268 = vst.msk [vmem:[%s259 + $0x61] sm:$0xff] %vm226, %v237
        %269 = vst.msk [vmem:[%s259 + $0x69] sm:$0xff] %vm226, %v238
        %270 = vst.msk [vmem:[%s259 + $0x79] sm:$0xff] %vm226, %v239
        %271 = vst.msk [vmem:[%s259 + $0x81] sm:$0xff] %vm226, %v240
        %272 = vst.msk [vmem:[%s259 + $0x91] sm:$0xff] %vm226, %v241
        %273 = vst.msk [vmem:[%s259 + $0x99] sm:$0xff] %vm226, %v242
        %274 = vst.msk [vmem:[%s259 + $0xa9] sm:$0xff] %vm226, %v243
        %275 = vst.msk [vmem:[%s259 + $0xb1] sm:$0xff] %vm226, %v244
        %276 = vst.msk [vmem:[%s259 + $0xc1] sm:$0xff] %vm226, %v245
        %277 = vst.msk [vmem:[%s259 + $0xc9] sm:$0xff] %vm226, %v246
        %278 = vst.msk [vmem:[%s259 + $0xd9] sm:$0xff] %vm226, %v247
        %279 = vst.msk [vmem:[%s259 + $0xe1] sm:$0xff] %vm226, %v248
        %280 = vst.msk [vmem:[%s259 + $0xf1] sm:$0xff] %vm226, %v249
        %281 = vst.msk [vmem:[%s259 + $0xf9] sm:$0xff] %vm226, %v250
        %282 = vst.msk [vmem:[%s259 + $0x109] sm:$0xff] %vm226, %v251
        %283 = vst.msk [vmem:[%s259 + $0x111] sm:$0xff] %vm226, %v252
        %284 = vst.msk [vmem:[%s259 + $0x121] sm:$0xff] %vm226, %v253
        %285 = vst.msk [vmem:[%s259 + $0x129] sm:$0xff] %vm226, %v254
        %286 = vst.msk [vmem:[%s259 + $0x139] sm:$0xff] %vm226, %v255
        %287 = vst.msk [vmem:[%s259 + $0x141] sm:$0xff] %vm226, %v256
        %288 = vst.msk [vmem:[%s259 + $0x151] sm:$0xff] %vm226, %v257
        %289 = vst.msk [vmem:[%s259 + $0x159] sm:$0xff] %vm226, %v258
        %v290 = vld [vmem:[%s222] sm:$0xff]
        %v291 = vld [vmem:[%s222 + $0x8] sm:$0xff]
        %v292 = vld [vmem:[%s222 + $0x10] sm:$0xff]
        %v293 = vld [vmem:[%s222 + $0x18] sm:$0xff]
        %v294 = vld [vmem:[%s222 + $0x20] sm:$0xff]
        %v295 = vld [vmem:[%s222 + $0x28] sm:$0xff]
        %v296 = vld [vmem:[%s222 + $0x30] sm:$0xff]
        %v297 = vld [vmem:[%s222 + $0x38] sm:$0xff]
        %v298 = vld [vmem:[%s222 + $0x40] sm:$0xff]
        %v299 = vld [vmem:[%s222 + $0x48] sm:$0xff]
        %v300 = vld [vmem:[%s222 + $0x50] sm:$0xff]
        %v301 = vld [vmem:[%s222 + $0x58] sm:$0xff]
        %v302 = vld [vmem:[%s222 + $0x60] sm:$0xff]
        %v303 = vld [vmem:[%s222 + $0x68] sm:$0xff]
        %v304 = vld [vmem:[%s222 + $0x70] sm:$0xff]
        %v305 = vld [vmem:[%s222 + $0x78] sm:$0xff]
        %v306 = vld [vmem:[%s222 + $0x80] sm:$0xff]
        %v307 = vld [vmem:[%s222 + $0x88] sm:$0xff]
        %v308 = vld [vmem:[%s222 + $0x90] sm:$0xff]
        %v309 = vld [vmem:[%s222 + $0x98] sm:$0xff]
        %v310 = vld [vmem:[%s222 + $0xa0] sm:$0xff]
        %v311 = vld [vmem:[%s222 + $0xa8] sm:$0xff]
        %v312 = vld [vmem:[%s222 + $0xb0] sm:$0xff]
        %v313 = vld [vmem:[%s222 + $0xb8] sm:$0xff]
        %v314 = vld [vmem:[%s222 + $0xc0] sm:$0xff]
        %v315 = vld [vmem:[%s222 + $0xc8] sm:$0xff]
        %v316 = vld [vmem:[%s222 + $0xd0] sm:$0xff]
        %v317 = vld [vmem:[%s222 + $0xd8] sm:$0xff]
        %v318 = vld [vmem:[%s222 + $0xe0] sm:$0xff]
        %v319 = vld [vmem:[%s222 + $0xe8] sm:$0xff]
        %v320 = vld [vmem:[%s222 + $0xf0] sm:$0xff]
        %v321 = vld [vmem:[%s222 + $0xf8] sm:$0xff]
        %354 = vrot.lane.b32.xlu0 %v290, 32
        %v355 = vpop.permute.xlu0 %354
        %356 = vrot.lane.b32.xlu0 %v291, 32
        %v357 = vpop.permute.xlu0 %356
        %358 = vrot.lane.b32.xlu0 %v292, 32
        %v359 = vpop.permute.xlu0 %358
        %360 = vrot.lane.b32.xlu0 %v293, 32
        %v361 = vpop.permute.xlu0 %360
        %362 = vrot.lane.b32.xlu0 %v294, 32
        %v363 = vpop.permute.xlu0 %362
        %364 = vrot.lane.b32.xlu0 %v295, 32
        %v365 = vpop.permute.xlu0 %364
        %366 = vrot.lane.b32.xlu0 %v296, 32
        %v367 = vpop.permute.xlu0 %366
        %368 = vrot.lane.b32.xlu0 %v297, 32
        %v369 = vpop.permute.xlu0 %368
        %370 = vrot.lane.b32.xlu0 %v298, 32
        %v371 = vpop.permute.xlu0 %370
        %372 = vrot.lane.b32.xlu0 %v299, 32
        %v373 = vpop.permute.xlu0 %372
        %374 = vrot.lane.b32.xlu0 %v300, 32
        %v375 = vpop.permute.xlu0 %374
        %376 = vrot.lane.b32.xlu0 %v301, 32
        %v377 = vpop.permute.xlu0 %376
        %378 = vrot.lane.b32.xlu0 %v302, 32
        %v379 = vpop.permute.xlu0 %378
        %380 = vrot.lane.b32.xlu0 %v303, 32
        %v381 = vpop.permute.xlu0 %380
        %382 = vrot.lane.b32.xlu0 %v304, 32
        %v383 = vpop.permute.xlu0 %382
        %384 = vrot.lane.b32.xlu0 %v305, 32
        %v385 = vpop.permute.xlu0 %384
        %386 = vrot.lane.b32.xlu0 %v306, 32
        %v387 = vpop.permute.xlu0 %386
        %388 = vrot.lane.b32.xlu0 %v307, 32
        %v389 = vpop.permute.xlu0 %388
        %390 = vrot.lane.b32.xlu0 %v308, 32
        %v391 = vpop.permute.xlu0 %390
        %392 = vrot.lane.b32.xlu0 %v309, 32
        %v393 = vpop.permute.xlu0 %392
        %394 = vrot.lane.b32.xlu0 %v310, 32
        %v395 = vpop.permute.xlu0 %394
        %396 = vrot.lane.b32.xlu0 %v311, 32
        %v397 = vpop.permute.xlu0 %396
        %398 = vrot.lane.b32.xlu0 %v312, 32
        %v399 = vpop.permute.xlu0 %398
        %400 = vrot.lane.b32.xlu0 %v313, 32
        %v401 = vpop.permute.xlu0 %400
        %402 = vrot.lane.b32.xlu0 %v314, 32
        %v403 = vpop.permute.xlu0 %402
        %404 = vrot.lane.b32.xlu0 %v315, 32
        %v405 = vpop.permute.xlu0 %404
        %406 = vrot.lane.b32.xlu0 %v316, 32
        %v407 = vpop.permute.xlu0 %406
        %408 = vrot.lane.b32.xlu0 %v317, 32
        %v409 = vpop.permute.xlu0 %408
        %410 = vrot.lane.b32.xlu0 %v318, 32
        %v411 = vpop.permute.xlu0 %410
        %412 = vrot.lane.b32.xlu0 %v319, 32
        %v413 = vpop.permute.xlu0 %412
        %414 = vrot.lane.b32.xlu0 %v320, 32
        %v415 = vpop.permute.xlu0 %414
        %416 = vrot.lane.b32.xlu0 %v321, 32
        %v417 = vpop.permute.xlu0 %416
        %vm450 = vcmask 523520
        %451 = vst.msk [vmem:[#allocation2 + $0x1] sm:$0xff] %vm450, %v355
        %452 = vst.msk [vmem:[#allocation2 + $0x9] sm:$0xff] %vm450, %v357
        %453 = vst.msk [vmem:[#allocation2 + $0x19] sm:$0xff] %vm450, %v359
        %454 = vst.msk [vmem:[#allocation2 + $0x21] sm:$0xff] %vm450, %v361
        %455 = vst.msk [vmem:[#allocation2 + $0x31] sm:$0xff] %vm450, %v363
        %456 = vst.msk [vmem:[#allocation2 + $0x39] sm:$0xff] %vm450, %v365
        %457 = vst.msk [vmem:[#allocation2 + $0x49] sm:$0xff] %vm450, %v367
        %458 = vst.msk [vmem:[#allocation2 + $0x51] sm:$0xff] %vm450, %v369
        %459 = vst.msk [vmem:[#allocation2 + $0x61] sm:$0xff] %vm450, %v371
        %460 = vst.msk [vmem:[#allocation2 + $0x69] sm:$0xff] %vm450, %v373
        %461 = vst.msk [vmem:[#allocation2 + $0x79] sm:$0xff] %vm450, %v375
        %462 = vst.msk [vmem:[#allocation2 + $0x81] sm:$0xff] %vm450, %v377
        %463 = vst.msk [vmem:[#allocation2 + $0x91] sm:$0xff] %vm450, %v379
        %464 = vst.msk [vmem:[#allocation2 + $0x99] sm:$0xff] %vm450, %v381
        %465 = vst.msk [vmem:[#allocation2 + $0xa9] sm:$0xff] %vm450, %v383
        %466 = vst.msk [vmem:[#allocation2 + $0xb1] sm:$0xff] %vm450, %v385
        %467 = vst.msk [vmem:[#allocation2 + $0xc1] sm:$0xff] %vm450, %v387
        %468 = vst.msk [vmem:[#allocation2 + $0xc9] sm:$0xff] %vm450, %v389
        %469 = vst.msk [vmem:[#allocation2 + $0xd9] sm:$0xff] %vm450, %v391
        %470 = vst.msk [vmem:[#allocation2 + $0xe1] sm:$0xff] %vm450, %v393
        %471 = vst.msk [vmem:[#allocation2 + $0xf1] sm:$0xff] %vm450, %v395
        %472 = vst.msk [vmem:[#allocation2 + $0xf9] sm:$0xff] %vm450, %v397
        %473 = vst.msk [vmem:[#allocation2 + $0x109] sm:$0xff] %vm450, %v399
        %474 = vst.msk [vmem:[#allocation2 + $0x111] sm:$0xff] %vm450, %v401
        %475 = vst.msk [vmem:[#allocation2 + $0x121] sm:$0xff] %vm450, %v403
        %476 = vst.msk [vmem:[#allocation2 + $0x129] sm:$0xff] %vm450, %v405
        %477 = vst.msk [vmem:[#allocation2 + $0x139] sm:$0xff] %vm450, %v407
        %478 = vst.msk [vmem:[#allocation2 + $0x141] sm:$0xff] %vm450, %v409
        %479 = vst.msk [vmem:[#allocation2 + $0x151] sm:$0xff] %vm450, %v411
        %480 = vst.msk [vmem:[#allocation2 + $0x159] sm:$0xff] %vm450, %v413
        %481 = vst.msk [vmem:[#allocation2 + $0x169] sm:$0xff] %vm450, %v415
        %482 = vst.msk [vmem:[#allocation2 + $0x171] sm:$0xff] %vm450, %v417
        %v483 = vld [vmem:[%s223] sm:$0xff]
        %v484 = vld [vmem:[%s223 + $0x8] sm:$0xff]
        %v485 = vld [vmem:[%s223 + $0x10] sm:$0xff]
        %v486 = vld [vmem:[%s223 + $0x18] sm:$0xff]
        %v487 = vld [vmem:[%s223 + $0x20] sm:$0xff]
        %v488 = vld [vmem:[%s223 + $0x28] sm:$0xff]
        %v489 = vld [vmem:[%s223 + $0x30] sm:$0xff]
        %v490 = vld [vmem:[%s223 + $0x38] sm:$0xff]
        %v491 = vld [vmem:[%s223 + $0x40] sm:$0xff]
        %v492 = vld [vmem:[%s223 + $0x48] sm:$0xff]
        %v493 = vld [vmem:[%s223 + $0x50] sm:$0xff]
        %v494 = vld [vmem:[%s223 + $0x58] sm:$0xff]
        %v495 = vld [vmem:[%s223 + $0x60] sm:$0xff]
        %v496 = vld [vmem:[%s223 + $0x68] sm:$0xff]
        %v497 = vld [vmem:[%s223 + $0x70] sm:$0xff]
        %v498 = vld [vmem:[%s223 + $0x78] sm:$0xff]
        %v499 = vld [vmem:[%s223 + $0x80] sm:$0xff]
        %v500 = vld [vmem:[%s223 + $0x88] sm:$0xff]
        %v501 = vld [vmem:[%s223 + $0x90] sm:$0xff]
        %v502 = vld [vmem:[%s223 + $0x98] sm:$0xff]
        %v503 = vld [vmem:[%s223 + $0xa0] sm:$0xff]
        %v504 = vld [vmem:[%s223 + $0xa8] sm:$0xff]
        %v505 = vld [vmem:[%s223 + $0xb0] sm:$0xff]
        %v506 = vld [vmem:[%s223 + $0xb8] sm:$0xff]
        %v507 = vld [vmem:[%s223 + $0xc0] sm:$0xff]
        %v508 = vld [vmem:[%s223 + $0xc8] sm:$0xff]
        %v509 = vld [vmem:[%s223 + $0xd0] sm:$0xff]
        %v510 = vld [vmem:[%s223 + $0xd8] sm:$0xff]
        %v511 = vld [vmem:[%s223 + $0xe0] sm:$0xff]
        %v512 = vld [vmem:[%s223 + $0xe8] sm:$0xff]
        %543 = vrot.lane.b32.xlu0 %v483, 64
        %v544 = vpop.permute.xlu0 %543
        %545 = vrot.lane.b32.xlu0 %v484, 64
        %v546 = vpop.permute.xlu0 %545
        %547 = vrot.lane.b32.xlu0 %v485, 64
        %v548 = vpop.permute.xlu0 %547
        %549 = vrot.lane.b32.xlu0 %v486, 64
        %v550 = vpop.permute.xlu0 %549
        %551 = vrot.lane.b32.xlu0 %v487, 64
        %v552 = vpop.permute.xlu0 %551
        %553 = vrot.lane.b32.xlu0 %v488, 64
        %v554 = vpop.permute.xlu0 %553
        %555 = vrot.lane.b32.xlu0 %v489, 64
        %v556 = vpop.permute.xlu0 %555
        %557 = vrot.lane.b32.xlu0 %v490, 64
        %v558 = vpop.permute.xlu0 %557
        %559 = vrot.lane.b32.xlu0 %v491, 64
        %v560 = vpop.permute.xlu0 %559
        %561 = vrot.lane.b32.xlu0 %v492, 64
        %v562 = vpop.permute.xlu0 %561
        %563 = vrot.lane.b32.xlu0 %v493, 64
        %v564 = vpop.permute.xlu0 %563
        %565 = vrot.lane.b32.xlu0 %v494, 64
        %v566 = vpop.permute.xlu0 %565
        %567 = vrot.lane.b32.xlu0 %v495, 64
        %v568 = vpop.permute.xlu0 %567
        %569 = vrot.lane.b32.xlu0 %v496, 64
        %v570 = vpop.permute.xlu0 %569
        %571 = vrot.lane.b32.xlu0 %v497, 64
        %v572 = vpop.permute.xlu0 %571
        %573 = vrot.lane.b32.xlu0 %v498, 64
        %v574 = vpop.permute.xlu0 %573
        %575 = vrot.lane.b32.xlu0 %v499, 64
        %v576 = vpop.permute.xlu0 %575
        %577 = vrot.lane.b32.xlu0 %v500, 64
        %v578 = vpop.permute.xlu0 %577
        %579 = vrot.lane.b32.xlu0 %v501, 64
        %v580 = vpop.permute.xlu0 %579
        %581 = vrot.lane.b32.xlu0 %v502, 64
        %v582 = vpop.permute.xlu0 %581
        %583 = vrot.lane.b32.xlu0 %v503, 64
        %v584 = vpop.permute.xlu0 %583
        %585 = vrot.lane.b32.xlu0 %v504, 64
        %v586 = vpop.permute.xlu0 %585
        %587 = vrot.lane.b32.xlu0 %v505, 64
        %v588 = vpop.permute.xlu0 %587
        %589 = vrot.lane.b32.xlu0 %v506, 64
        %v590 = vpop.permute.xlu0 %589
        %591 = vrot.lane.b32.xlu0 %v507, 64
        %v592 = vpop.permute.xlu0 %591
        %593 = vrot.lane.b32.xlu0 %v508, 64
        %v594 = vpop.permute.xlu0 %593
        %595 = vrot.lane.b32.xlu0 %v509, 64
        %v596 = vpop.permute.xlu0 %595
        %597 = vrot.lane.b32.xlu0 %v510, 64
        %v598 = vpop.permute.xlu0 %597
        %599 = vrot.lane.b32.xlu0 %v511, 64
        %v600 = vpop.permute.xlu0 %599
        %601 = vrot.lane.b32.xlu0 %v512, 64
        %v602 = vpop.permute.xlu0 %601
        %vm633 = vcmask 785920
        %634 = vst.msk [vmem:[#allocation2 + $0x1] sm:$0xff] %vm633, %v544
        %635 = vst.msk [vmem:[#allocation2 + $0x9] sm:$0xff] %vm633, %v546
        %636 = vst.msk [vmem:[#allocation2 + $0x19] sm:$0xff] %vm633, %v548
        %637 = vst.msk [vmem:[#allocation2 + $0x21] sm:$0xff] %vm633, %v550
        %638 = vst.msk [vmem:[#allocation2 + $0x31] sm:$0xff] %vm633, %v552
        %639 = vst.msk [vmem:[#allocation2 + $0x39] sm:$0xff] %vm633, %v554
        %640 = vst.msk [vmem:[#allocation2 + $0x49] sm:$0xff] %vm633, %v556
        %641 = vst.msk [vmem:[#allocation2 + $0x51] sm:$0xff] %vm633, %v558
        %642 = vst.msk [vmem:[#allocation2 + $0x61] sm:$0xff] %vm633, %v560
        %643 = vst.msk [vmem:[#allocation2 + $0x69] sm:$0xff] %vm633, %v562
        %644 = vst.msk [vmem:[#allocation2 + $0x79] sm:$0xff] %vm633, %v564
        %645 = vst.msk [vmem:[#allocation2 + $0x81] sm:$0xff] %vm633, %v566
        %646 = vst.msk [vmem:[#allocation2 + $0x91] sm:$0xff] %vm633, %v568
        %647 = vst.msk [vmem:[#allocation2 + $0x99] sm:$0xff] %vm633, %v570
        %648 = vst.msk [vmem:[#allocation2 + $0xa9] sm:$0xff] %vm633, %v572
        %649 = vst.msk [vmem:[#allocation2 + $0xb1] sm:$0xff] %vm633, %v574
        %650 = vst.msk [vmem:[#allocation2 + $0xc1] sm:$0xff] %vm633, %v576
        %651 = vst.msk [vmem:[#allocation2 + $0xc9] sm:$0xff] %vm633, %v578
        %652 = vst.msk [vmem:[#allocation2 + $0xd9] sm:$0xff] %vm633, %v580
        %653 = vst.msk [vmem:[#allocation2 + $0xe1] sm:$0xff] %vm633, %v582
        %654 = vst.msk [vmem:[#allocation2 + $0xf1] sm:$0xff] %vm633, %v584
        %655 = vst.msk [vmem:[#allocation2 + $0xf9] sm:$0xff] %vm633, %v586
        %656 = vst.msk [vmem:[#allocation2 + $0x109] sm:$0xff] %vm633, %v588
        %657 = vst.msk [vmem:[#allocation2 + $0x111] sm:$0xff] %vm633, %v590
        %658 = vst.msk [vmem:[#allocation2 + $0x121] sm:$0xff] %vm633, %v592
        %659 = vst.msk [vmem:[#allocation2 + $0x129] sm:$0xff] %vm633, %v594
        %660 = vst.msk [vmem:[#allocation2 + $0x139] sm:$0xff] %vm633, %v596
        %661 = vst.msk [vmem:[#allocation2 + $0x141] sm:$0xff] %vm633, %v598
        %662 = vst.msk [vmem:[#allocation2 + $0x151] sm:$0xff] %vm633, %v600
        %663 = vst.msk [vmem:[#allocation2 + $0x159] sm:$0xff] %vm633, %v602
        %s664 = scalar_lea.vmem %s222, 224
        %v665 = vld [vmem:[%s664] sm:$0xff]
        %v666 = vld [vmem:[%s664 + $0x8] sm:$0xff]
        %669 = vrot.lane.b32.xlu0 %v665, 64
        %v670 = vpop.permute.xlu0 %669
        %671 = vrot.lane.b32.xlu0 %v666, 64
        %v672 = vpop.permute.xlu0 %671
        %s675 = scalar_lea.vmem [#allocation2], 360
        %676 = vst.msk [vmem:[%s675 + $0x1] sm:$0xff] %vm633, %v670
        %677 = vst.msk [vmem:[%s675 + $0x9] sm:$0xff] %vm633, %v672
        %v678 = vld [vmem:[#allocation2 + $0x2] sm:$0x1]
        %v679 = vld [vmem:[#allocation2 + $0x1a] sm:$0x1]
        %v680 = vld [vmem:[#allocation2 + $0x32] sm:$0x1]
        %v681 = vld [vmem:[#allocation2 + $0x4a] sm:$0x1]
        %v682 = vld [vmem:[#allocation2 + $0x62] sm:$0x1]
        %v683 = vld [vmem:[#allocation2 + $0x7a] sm:$0x1]
        %v684 = vld [vmem:[#allocation2 + $0x92] sm:$0x1]
        %v685 = vld [vmem:[#allocation2 + $0xaa] sm:$0x1]
        %v686 = vld [vmem:[#allocation2 + $0xc2] sm:$0x1]
        %v687 = vld [vmem:[#allocation2 + $0xda] sm:$0x1]
        %v688 = vld [vmem:[#allocation2 + $0xf2] sm:$0x1]
        %v689 = vld [vmem:[#allocation2 + $0x10a] sm:$0x1]
        %v690 = vld [vmem:[#allocation2 + $0x122] sm:$0x1]
        %v691 = vld [vmem:[#allocation2 + $0x13a] sm:$0x1]
        %v692 = vld [vmem:[#allocation2 + $0x152] sm:$0x1]
        %v693 = vld [vmem:[#allocation2 + $0x16a] sm:$0x1]
        %vm694 = vcmask 778240
        %695 = vst.msk [vmem:[#allocation2] sm:$0x1] %vm694, %v678
        %696 = vst.msk [vmem:[#allocation2 + $0x18] sm:$0x1] %vm694, %v679
        %697 = vst.msk [vmem:[#allocation2 + $0x30] sm:$0x1] %vm694, %v680
        %698 = vst.msk [vmem:[#allocation2 + $0x48] sm:$0x1] %vm694, %v681
        %699 = vst.msk [vmem:[#allocation2 + $0x60] sm:$0x1] %vm694, %v682
        %700 = vst.msk [vmem:[#allocation2 + $0x78] sm:$0x1] %vm694, %v683
        %701 = vst.msk [vmem:[#allocation2 + $0x90] sm:$0x1] %vm694, %v684
        %702 = vst.msk [vmem:[#allocation2 + $0xa8] sm:$0x1] %vm694, %v685
        %703 = vst.msk [vmem:[#allocation2 + $0xc0] sm:$0x1] %vm694, %v686
        %704 = vst.msk [vmem:[#allocation2 + $0xd8] sm:$0x1] %vm694, %v687
        %705 = vst.msk [vmem:[#allocation2 + $0xf0] sm:$0x1] %vm694, %v688
        %706 = vst.msk [vmem:[#allocation2 + $0x108] sm:$0x1] %vm694, %v689
        %707 = vst.msk [vmem:[#allocation2 + $0x120] sm:$0x1] %vm694, %v690
        %708 = vst.msk [vmem:[#allocation2 + $0x138] sm:$0x1] %vm694, %v691
        %709 = vst.msk [vmem:[#allocation2 + $0x150] sm:$0x1] %vm694, %v692
        %710 = vst.msk [vmem:[#allocation2 + $0x168] sm:$0x1] %vm694, %v693
        %v711 = vld [vmem:[#allocation2 + $0xf] sm:$0x1]
        %v712 = vld [vmem:[#allocation2 + $0x27] sm:$0x1]
        %v713 = vld [vmem:[#allocation2 + $0x3f] sm:$0x1]
        %v714 = vld [vmem:[#allocation2 + $0x57] sm:$0x1]
        %v715 = vld [vmem:[#allocation2 + $0x6f] sm:$0x1]
        %v716 = vld [vmem:[#allocation2 + $0x87] sm:$0x1]
        %v717 = vld [vmem:[#allocation2 + $0x9f] sm:$0x1]
        %v718 = vld [vmem:[#allocation2 + $0xb7] sm:$0x1]
        %v719 = vld [vmem:[#allocation2 + $0xcf] sm:$0x1]
        %v720 = vld [vmem:[#allocation2 + $0xe7] sm:$0x1]
        %v721 = vld [vmem:[#allocation2 + $0xff] sm:$0x1]
        %v722 = vld [vmem:[#allocation2 + $0x117] sm:$0x1]
        %v723 = vld [vmem:[#allocation2 + $0x12f] sm:$0x1]
        %v724 = vld [vmem:[#allocation2 + $0x147] sm:$0x1]
        %v725 = vld [vmem:[#allocation2 + $0x15f] sm:$0x1]
        %v726 = vld [vmem:[#allocation2 + $0x177] sm:$0x1]
        %727 = vst.msk [vmem:[#allocation2 + $0x11] sm:$0x1] %vm694, %v711
        %728 = vst.msk [vmem:[#allocation2 + $0x29] sm:$0x1] %vm694, %v712
        %729 = vst.msk [vmem:[#allocation2 + $0x41] sm:$0x1] %vm694, %v713
        %730 = vst.msk [vmem:[#allocation2 + $0x59] sm:$0x1] %vm694, %v714
        %731 = vst.msk [vmem:[#allocation2 + $0x71] sm:$0x1] %vm694, %v715
        %732 = vst.msk [vmem:[#allocation2 + $0x89] sm:$0x1] %vm694, %v716
        %733 = vst.msk [vmem:[#allocation2 + $0xa1] sm:$0x1] %vm694, %v717
        %734 = vst.msk [vmem:[#allocation2 + $0xb9] sm:$0x1] %vm694, %v718
        %735 = vst.msk [vmem:[#allocation2 + $0xd1] sm:$0x1] %vm694, %v719
        %736 = vst.msk [vmem:[#allocation2 + $0xe9] sm:$0x1] %vm694, %v720
        %737 = vst.msk [vmem:[#allocation2 + $0x101] sm:$0x1] %vm694, %v721
        %738 = vst.msk [vmem:[#allocation2 + $0x119] sm:$0x1] %vm694, %v722
        %739 = vst.msk [vmem:[#allocation2 + $0x131] sm:$0x1] %vm694, %v723
        %740 = vst.msk [vmem:[#allocation2 + $0x149] sm:$0x1] %vm694, %v724
        %741 = vst.msk [vmem:[#allocation2 + $0x161] sm:$0x1] %vm694, %v725
        %742 = vst.msk [vmem:[#allocation2 + $0x179] sm:$0x1] %vm694, %v726
        %v743 = vld [vmem:[#allocation2] sm:$0xff]
        %v744 = vld [vmem:[#allocation2 + $0x8] sm:$0xff]
        %v745 = vld [vmem:[#allocation2 + $0x18] sm:$0xff]
        %v746 = vld [vmem:[#allocation2 + $0x20] sm:$0xff]
        %v747 = vld [vmem:[#allocation2 + $0x30] sm:$0xff]
        %v748 = vld [vmem:[#allocation2 + $0x38] sm:$0xff]
        %v749 = vld [vmem:[#allocation2 + $0x48] sm:$0xff]
        %v750 = vld [vmem:[#allocation2 + $0x50] sm:$0xff]
        %v751 = vld [vmem:[#allocation2 + $0x60] sm:$0xff]
        %v752 = vld [vmem:[#allocation2 + $0x68] sm:$0xff]
        %v753 = vld [vmem:[#allocation2 + $0x78] sm:$0xff]
        %v754 = vld [vmem:[#allocation2 + $0x80] sm:$0xff]
        %v755 = vld [vmem:[#allocation2 + $0x90] sm:$0xff]
        %v756 = vld [vmem:[#allocation2 + $0x98] sm:$0xff]
        %v757 = vld [vmem:[#allocation2 + $0xa8] sm:$0xff]
        %v758 = vld [vmem:[#allocation2 + $0xb0] sm:$0xff]
        %v759 = vld [vmem:[#allocation2 + $0xc0] sm:$0xff]
        %v760 = vld [vmem:[#allocation2 + $0xc8] sm:$0xff]
        %v761 = vld [vmem:[#allocation2 + $0xd8] sm:$0xff]
        %v762 = vld [vmem:[#allocation2 + $0xe0] sm:$0xff]
        %v763 = vld [vmem:[#allocation2 + $0xf0] sm:$0xff]
        %v764 = vld [vmem:[#allocation2 + $0xf8] sm:$0xff]
        %v765 = vld [vmem:[#allocation2 + $0x108] sm:$0xff]
        %v766 = vld [vmem:[#allocation2 + $0x110] sm:$0xff]
        %v767 = vld [vmem:[#allocation2 + $0x120] sm:$0xff]
        %v768 = vld [vmem:[#allocation2 + $0x128] sm:$0xff]
        %v769 = vld [vmem:[#allocation2 + $0x138] sm:$0xff]
        %v770 = vld [vmem:[#allocation2 + $0x140] sm:$0xff]
        %v771 = vld [vmem:[#allocation2 + $0x150] sm:$0xff]
        %v772 = vld [vmem:[#allocation2 + $0x158] sm:$0xff]
        %v773 = vld [vmem:[#allocation2 + $0x168] sm:$0xff]
        %v774 = vld [vmem:[#allocation2 + $0x170] sm:$0xff]
        %v775 = vld [vmem:[%s1] sm:$0xff]
        %v776 = vld [vmem:[%s1 + $0x8] sm:$0xff]
        %v777 = vld [vmem:[%s1 + $0x10] sm:$0xff]
        %v778 = vld [vmem:[%s1 + $0x18] sm:$0xff]
        %v779 = vld [vmem:[%s1 + $0x20] sm:$0xff]
        %v780 = vld [vmem:[%s1 + $0x28] sm:$0xff]
        %v781 = vld [vmem:[%s1 + $0x30] sm:$0xff]
        %v782 = vld [vmem:[%s1 + $0x38] sm:$0xff]
        %v783 = vld [vmem:[%s1 + $0x40] sm:$0xff]
        %v784 = vld [vmem:[%s1 + $0x48] sm:$0xff]
        %v785 = vld [vmem:[%s1 + $0x50] sm:$0xff]
        %v786 = vld [vmem:[%s1 + $0x58] sm:$0xff]
        %v787 = vld [vmem:[#allocation2 + $0x1] sm:$0xff]
        %v788 = vld [vmem:[#allocation2 + $0x9] sm:$0xff]
        %v789 = vld [vmem:[#allocation2 + $0x19] sm:$0xff]
        %v790 = vld [vmem:[#allocation2 + $0x21] sm:$0xff]
        %v791 = vld [vmem:[#allocation2 + $0x31] sm:$0xff]
        %v792 = vld [vmem:[#allocation2 + $0x39] sm:$0xff]
        %v793 = vld [vmem:[#allocation2 + $0x49] sm:$0xff]
        %v794 = vld [vmem:[#allocation2 + $0x51] sm:$0xff]
        %v795 = vld [vmem:[#allocation2 + $0x61] sm:$0xff]
        %v796 = vld [vmem:[#allocation2 + $0x69] sm:$0xff]
        %v797 = vld [vmem:[#allocation2 + $0x79] sm:$0xff]
        %v798 = vld [vmem:[#allocation2 + $0x81] sm:$0xff]
        %v799 = vld [vmem:[#allocation2 + $0x91] sm:$0xff]
        %v800 = vld [vmem:[#allocation2 + $0x99] sm:$0xff]
        %v801 = vld [vmem:[#allocation2 + $0xa9] sm:$0xff]
        %v802 = vld [vmem:[#allocation2 + $0xb1] sm:$0xff]
        %v803 = vld [vmem:[#allocation2 + $0xc1] sm:$0xff]
        %v804 = vld [vmem:[#allocation2 + $0xc9] sm:$0xff]
        %v805 = vld [vmem:[#allocation2 + $0xd9] sm:$0xff]
        %v806 = vld [vmem:[#allocation2 + $0xe1] sm:$0xff]
        %v807 = vld [vmem:[#allocation2 + $0xf1] sm:$0xff]
        %v808 = vld [vmem:[#allocation2 + $0xf9] sm:$0xff]
        %v809 = vld [vmem:[#allocation2 + $0x109] sm:$0xff]
        %v810 = vld [vmem:[#allocation2 + $0x111] sm:$0xff]
        %v811 = vld [vmem:[#allocation2 + $0x121] sm:$0xff]
        %v812 = vld [vmem:[#allocation2 + $0x129] sm:$0xff]
        %v813 = vld [vmem:[#allocation2 + $0x139] sm:$0xff]
        %v814 = vld [vmem:[#allocation2 + $0x141] sm:$0xff]
        %v815 = vld [vmem:[#allocation2 + $0x151] sm:$0xff]
        %v816 = vld [vmem:[#allocation2 + $0x159] sm:$0xff]
        %v817 = vld [vmem:[#allocation2 + $0x169] sm:$0xff]
        %v818 = vld [vmem:[#allocation2 + $0x171] sm:$0xff]
        %s819 = scalar_lea.vmem %s1, 96
        %v820 = vld [vmem:[%s819] sm:$0xff]
        %v821 = vld [vmem:[%s819 + $0x8] sm:$0xff]
        %v822 = vld [vmem:[%s819 + $0x10] sm:$0xff]
        %v823 = vld [vmem:[%s819 + $0x18] sm:$0xff]
        %v824 = vld [vmem:[%s819 + $0x20] sm:$0xff]
        %v825 = vld [vmem:[%s819 + $0x28] sm:$0xff]
        %v826 = vld [vmem:[%s819 + $0x30] sm:$0xff]
        %v827 = vld [vmem:[%s819 + $0x38] sm:$0xff]
        %v828 = vld [vmem:[%s819 + $0x40] sm:$0xff]
        %v829 = vld [vmem:[%s819 + $0x48] sm:$0xff]
        %v830 = vld [vmem:[%s819 + $0x50] sm:$0xff]
        %v831 = vld [vmem:[%s819 + $0x58] sm:$0xff]
        %vm832 = vcmask 785408
        %v834 = vsel %vm832, %v787, 0
        %v837 = vsel %vm832, %v788, 0
        %v840 = vsel %vm832, %v789, 0
        %v843 = vsel %vm832, %v790, 0
        %v846 = vsel %vm832, %v791, 0
        %v849 = vsel %vm832, %v792, 0
        %v852 = vsel %vm832, %v793, 0
        %v855 = vsel %vm832, %v794, 0
        %v858 = vsel %vm832, %v795, 0
        %v861 = vsel %vm832, %v796, 0
        %v864 = vsel %vm832, %v797, 0
        %v867 = vsel %vm832, %v798, 0
        %v870 = vsel %vm832, %v799, 0
        %v873 = vsel %vm832, %v800, 0
        %v876 = vsel %vm832, %v801, 0
        %v879 = vsel %vm832, %v802, 0
        %v882 = vsel %vm832, %v803, 0
        %v885 = vsel %vm832, %v804, 0
        %v888 = vsel %vm832, %v805, 0
        %v891 = vsel %vm832, %v806, 0
        %v894 = vsel %vm832, %v807, 0
        %v897 = vsel %vm832, %v808, 0
        %v900 = vsel %vm832, %v809, 0
        %v903 = vsel %vm832, %v810, 0
        %v906 = vsel %vm832, %v811, 0
        %v909 = vsel %vm832, %v812, 0
        %v912 = vsel %vm832, %v813, 0
        %v915 = vsel %vm832, %v814, 0
        %v918 = vsel %vm832, %v815, 0
        %v921 = vsel %vm832, %v816, 0
        %v924 = vsel %vm832, %v817, 0
        %v927 = vsel %vm832, %v818, 0
        %929 = vmatprep.subr.mxu0 0.0
        %930 = vmatpush1.msra.mxu0 %v820
        %931 = vmatprep.subr.mxu0 0.0
        %932 = vmatpush1.msra.mxu0 %v821
        %933 = vmatprep.subr.mxu0 0.0
        %934 = vmatpush1.msra.mxu0 %v822
        %935 = vmatprep.subr.mxu0 0.0
        %936 = vmatpush1.msra.mxu0 %v823
        %937 = vmatprep.subr.mxu0 0.0
        %938 = vmatpush1.msra.mxu0 %v824
        %939 = vmatprep.subr.mxu0 0.0
        %940 = vmatpush1.msra.mxu0 %v825
        %941 = vmatprep.subr.mxu0 0.0
        %942 = vmatpush1.msra.mxu0 %v826
        %943 = vmatprep.subr.mxu0 0.0
        %944 = vmatpush1.msra.mxu0 %v827
        %945 = vmatprep.subr.mxu0 0.0
        %946 = vmatpush1.msra.mxu0 %v828
        %947 = vmatprep.subr.mxu0 0.0
        %948 = vmatpush1.msra.mxu0 %v829
        %949 = vmatprep.subr.mxu0 0.0
        %950 = vmatpush1.msra.mxu0 %v830
        %951 = vmatprep.subr.mxu0 0.0
        %952 = vmatpush1.msra.mxu0 %v831
        %953 = vmatprep.subr.mxu0 0.0
        %954 = vmatpush1.msra.mxu0 0.0
        %955 = vmatprep.subr.mxu0 0.0
        %956 = vmatpush1.msra.mxu0 0.0
        %957 = vmatprep.subr.mxu0 0.0
        %958 = vmatpush1.msra.mxu0 0.0
        %959 = vmatprep.subr.mxu0 0.0
        %960 = vmatpush1.msra.mxu0 0.0
        %961 = vmatprep.subr.mxu0 0.0
        %962 = vmatpush1.msra.mxu0 0.0
        %963 = vmatprep.subr.mxu0 0.0
        %964 = vmatpush1.msra.mxu0 0.0
        %965 = vmatprep.subr.mxu0 0.0
        %966 = vmatpush1.msra.mxu0 0.0
        %967 = vmatprep.subr.mxu0 0.0
        %968 = vmatpush1.msra.mxu0 0.0
        %969 = vmatprep.subr.mxu0 0.0
        %970 = vmatpush1.msra.mxu0 0.0
        %971 = vmatprep.subr.mxu0 0.0
        %972 = vmatpush1.msra.mxu0 0.0
        %973 = vmatprep.subr.mxu0 0.0
        %974 = vmatpush1.msra.mxu0 0.0
        %975 = vmatprep.subr.mxu0 0.0
        %976 = vmatpush1.msra.mxu0 0.0
        %977 = vmatprep.subr.mxu0 0.0
        %978 = vmatpush1.msra.mxu0 0.0
        %979 = vmatprep.subr.mxu0 0.0
        %980 = vmatpush1.msra.mxu0 0.0
        %981 = vmatprep.subr.mxu0 0.0
        %982 = vmatpush1.msra.mxu0 0.0
        %983 = vmatprep.subr.mxu0 0.0
        %984 = vmatpush1.msra.mxu0 0.0
        %985 = vmatprep.subr.mxu0 0.0
        %986 = vmatpush1.msra.mxu0 0.0
        %987 = vmatprep.subr.mxu0 0.0
        %988 = vmatpush1.msra.mxu0 0.0
        %989 = vmatprep.subr.mxu0 0.0
        %990 = vmatpush1.msra.mxu0 0.0
        %991 = vmatprep.subr.mxu0 0.0
        %992 = vmatpush1.msra.mxu0 0.0
        %993 = vmatprep.mubr.f32.mxu0 0.0
        %994 = vmatmul.mubr.f32.gmra.mrb[0].mxu0 %v834
        %v995 = vpop.f32.mrb[0].mxu0
        %v996 = vadd.f32 0.0, %v995
        %v997 = vpop.f32.mrb[0].mxu0
        %998 = vmatprep.mubr.f32.mxu0 0.0
        %999 = vmatmul.mubr.f32.gmra.mrb[0].mxu0 %v837
        %v1000 = vpop.f32.mrb[0].mxu0
        %v1001 = vadd.f32 0.0, %v1000
        %v1002 = vpop.f32.mrb[0].mxu0
        %1003 = vmatprep.mubr.f32.mxu0 0.0
        %1004 = vmatmul.mubr.f32.gmra.mrb[0].mxu0 %v840
        %v1005 = vpop.f32.mrb[0].mxu0
        %v1006 = vadd.f32 0.0, %v1005
        %v1007 = vpop.f32.mrb[0].mxu0
        %1008 = vmatprep.mubr.f32.mxu0 0.0
        %1009 = vmatmul.mubr.f32.gmra.mrb[0].mxu0 %v843
        %v1010 = vpop.f32.mrb[0].mxu0
        %v1011 = vadd.f32 0.0, %v1010
        %v1012 = vpop.f32.mrb[0].mxu0
        %1013 = vmatprep.mubr.f32.mxu0 0.0
        %1014 = vmatmul.mubr.f32.gmra.mrb[0].mxu0 %v846
        %v1015 = vpop.f32.mrb[0].mxu0
        %v1016 = vadd.f32 0.0, %v1015
        %v1017 = vpop.f32.mrb[0].mxu0
        %1018 = vmatprep.mubr.f32.mxu0 0.0
        %1019 = vmatmul.mubr.f32.gmra.mrb[0].mxu0 %v849
        %v1020 = vpop.f32.mrb[0].mxu0
        %v1021 = vadd.f32 0.0, %v1020
        %v1022 = vpop.f32.mrb[0].mxu0
        %1023 = vmatprep.mubr.f32.mxu0 0.0
        %1024 = vmatmul.mubr.f32.gmra.mrb[0].mxu0 %v852
        %v1025 = vpop.f32.mrb[0].mxu0
        %v1026 = vadd.f32 0.0, %v1025
        %v1027 = vpop.f32.mrb[0].mxu0
        %1028 = vmatprep.mubr.f32.mxu0 0.0
        %1029 = vmatmul.mubr.f32.gmra.mrb[0].mxu0 %v855
        %v1030 = vpop.f32.mrb[0].mxu0
        %v1031 = vadd.f32 0.0, %v1030
        %v1032 = vpop.f32.mrb[0].mxu0
        %1033 = vmatprep.mubr.f32.mxu0 0.0
        %1034 = vmatmul.mubr.f32.gmra.mrb[0].mxu0 %v858
        %v1035 = vpop.f32.mrb[0].mxu0
        %v1036 = vadd.f32 0.0, %v1035
        %v1037 = vpop.f32.mrb[0].mxu0
        %1038 = vmatprep.mubr.f32.mxu0 0.0
        %1039 = vmatmul.mubr.f32.gmra.mrb[0].mxu0 %v861
        %v1040 = vpop.f32.mrb[0].mxu0
        %v1041 = vadd.f32 0.0, %v1040
        %v1042 = vpop.f32.mrb[0].mxu0
        %1043 = vmatprep.mubr.f32.mxu0 0.0
        %1044 = vmatmul.mubr.f32.gmra.mrb[0].mxu0 %v864
        %v1045 = vpop.f32.mrb[0].mxu0
        %v1046 = vadd.f32 0.0, %v1045
        %v1047 = vpop.f32.mrb[0].mxu0
        %1048 = vmatprep.mubr.f32.mxu0 0.0
        %1049 = vmatmul.mubr.f32.gmra.mrb[0].mxu0 %v867
        %v1050 = vpop.f32.mrb[0].mxu0
        %v1051 = vadd.f32 0.0, %v1050
        %v1052 = vpop.f32.mrb[0].mxu0
        %1053 = vmatprep.mubr.f32.mxu0 0.0
        %1054 = vmatmul.mubr.f32.gmra.mrb[0].mxu0 %v870
        %v1055 = vpop.f32.mrb[0].mxu0
        %v1056 = vadd.f32 0.0, %v1055
        %v1057 = vpop.f32.mrb[0].mxu0
        %1058 = vmatprep.mubr.f32.mxu0 0.0
        %1059 = vmatmul.mubr.f32.gmra.mrb[0].mxu0 %v873
        %v1060 = vpop.f32.mrb[0].mxu0
        %v1061 = vadd.f32 0.0, %v1060
        %v1062 = vpop.f32.mrb[0].mxu0
        %1063 = vmatprep.mubr.f32.mxu0 0.0
        %1064 = vmatmul.mubr.f32.gmra.mrb[0].mxu0 %v876
        %v1065 = vpop.f32.mrb[0].mxu0
        %v1066 = vadd.f32 0.0, %v1065
        %v1067 = vpop.f32.mrb[0].mxu0
        %1068 = vmatprep.mubr.f32.mxu0 0.0
        %1069 = vmatmul.mubr.f32.gmra.mrb[0].mxu0 %v879
        %v1070 = vpop.f32.mrb[0].mxu0
        %v1071 = vadd.f32 0.0, %v1070
        %v1072 = vpop.f32.mrb[0].mxu0
        %1073 = vmatprep.mubr.f32.mxu0 0.0
        %1074 = vmatmul.mubr.f32.gmra.mrb[0].mxu0 %v882
        %v1075 = vpop.f32.mrb[0].mxu0
        %v1076 = vadd.f32 0.0, %v1075
        %v1077 = vpop.f32.mrb[0].mxu0
        %1078 = vmatprep.mubr.f32.mxu0 0.0
        %1079 = vmatmul.mubr.f32.gmra.mrb[0].mxu0 %v885
        %v1080 = vpop.f32.mrb[0].mxu0
        %v1081 = vadd.f32 0.0, %v1080
        %v1082 = vpop.f32.mrb[0].mxu0
        %1083 = vmatprep.mubr.f32.mxu0 0.0
        %1084 = vmatmul.mubr.f32.gmra.mrb[0].mxu0 %v888
        %v1085 = vpop.f32.mrb[0].mxu0
        %v1086 = vadd.f32 0.0, %v1085
        %v1087 = vpop.f32.mrb[0].mxu0
        %1088 = vmatprep.mubr.f32.mxu0 0.0
        %1089 = vmatmul.mubr.f32.gmra.mrb[0].mxu0 %v891
        %v1090 = vpop.f32.mrb[0].mxu0
        %v1091 = vadd.f32 0.0, %v1090
        %v1092 = vpop.f32.mrb[0].mxu0
        %1093 = vmatprep.mubr.f32.mxu0 0.0
        %1094 = vmatmul.mubr.f32.gmra.mrb[0].mxu0 %v894
        %v1095 = vpop.f32.mrb[0].mxu0
        %v1096 = vadd.f32 0.0, %v1095
        %v1097 = vpop.f32.mrb[0].mxu0
        %1098 = vmatprep.mubr.f32.mxu0 0.0
        %1099 = vmatmul.mubr.f32.gmra.mrb[0].mxu0 %v897
        %v1100 = vpop.f32.mrb[0].mxu0
        %v1101 = vadd.f32 0.0, %v1100
        %v1102 = vpop.f32.mrb[0].mxu0
        %1103 = vmatprep.mubr.f32.mxu0 0.0
        %1104 = vmatmul.mubr.f32.gmra.mrb[0].mxu0 %v900
        %v1105 = vpop.f32.mrb[0].mxu0
        %v1106 = vadd.f32 0.0, %v1105
        %v1107 = vpop.f32.mrb[0].mxu0
        %1108 = vmatprep.mubr.f32.mxu0 0.0
        %1109 = vmatmul.mubr.f32.gmra.mrb[0].mxu0 %v903
        %v1110 = vpop.f32.mrb[0].mxu0
        %v1111 = vadd.f32 0.0, %v1110
        %v1112 = vpop.f32.mrb[0].mxu0
        %1113 = vmatprep.mubr.f32.mxu0 0.0
        %1114 = vmatmul.mubr.f32.gmra.mrb[0].mxu0 %v906
        %v1115 = vpop.f32.mrb[0].mxu0
        %v1116 = vadd.f32 0.0, %v1115
        %v1117 = vpop.f32.mrb[0].mxu0
        %1118 = vmatprep.mubr.f32.mxu0 0.0
        %1119 = vmatmul.mubr.f32.gmra.mrb[0].mxu0 %v909
        %v1120 = vpop.f32.mrb[0].mxu0
        %v1121 = vadd.f32 0.0, %v1120
        %v1122 = vpop.f32.mrb[0].mxu0
        %1123 = vmatprep.mubr.f32.mxu0 0.0
        %1124 = vmatmul.mubr.f32.gmra.mrb[0].mxu0 %v912
        %v1125 = vpop.f32.mrb[0].mxu0
        %v1126 = vadd.f32 0.0, %v1125
        %v1127 = vpop.f32.mrb[0].mxu0
        %1128 = vmatprep.mubr.f32.mxu0 0.0
        %1129 = vmatmul.mubr.f32.gmra.mrb[0].mxu0 %v915
        %v1130 = vpop.f32.mrb[0].mxu0
        %v1131 = vadd.f32 0.0, %v1130
        %v1132 = vpop.f32.mrb[0].mxu0
        %1133 = vmatprep.mubr.f32.mxu0 0.0
        %1134 = vmatmul.mubr.f32.gmra.mrb[0].mxu0 %v918
        %v1135 = vpop.f32.mrb[0].mxu0
        %v1136 = vadd.f32 0.0, %v1135
        %v1137 = vpop.f32.mrb[0].mxu0
        %1138 = vmatprep.mubr.f32.mxu0 0.0
        %1139 = vmatmul.mubr.f32.gmra.mrb[0].mxu0 %v921
        %v1140 = vpop.f32.mrb[0].mxu0
        %v1141 = vadd.f32 0.0, %v1140
        %v1142 = vpop.f32.mrb[0].mxu0
        %1143 = vmatprep.mubr.f32.mxu0 0.0
        %1144 = vmatmul.mubr.f32.gmra.mrb[0].mxu0 %v924
        %v1145 = vpop.f32.mrb[0].mxu0
        %v1146 = vadd.f32 0.0, %v1145
        %v1147 = vpop.f32.mrb[0].mxu0
        %1148 = vmatprep.mubr.f32.mxu0 0.0
        %1149 = vmatmul.mubr.f32.gmra.mrb[0].mxu0 %v927
        %v1150 = vpop.f32.mrb[0].mxu0
        %v1151 = vadd.f32 0.0, %v1150
        %v1152 = vpop.f32.mrb[0].mxu0
        %1153 = vdwg.mxu0
        %v1155 = vsel %vm832, %v743, 0
        %v1158 = vsel %vm832, %v744, 0
        %v1161 = vsel %vm832, %v745, 0
        %v1164 = vsel %vm832, %v746, 0
        %v1167 = vsel %vm832, %v747, 0
        %v1170 = vsel %vm832, %v748, 0
        %v1173 = vsel %vm832, %v749, 0
        %v1176 = vsel %vm832, %v750, 0
        %v1179 = vsel %vm832, %v751, 0
        %v1182 = vsel %vm832, %v752, 0
        %v1185 = vsel %vm832, %v753, 0
        %v1188 = vsel %vm832, %v754, 0
        %v1191 = vsel %vm832, %v755, 0
        %v1194 = vsel %vm832, %v756, 0
        %v1197 = vsel %vm832, %v757, 0
        %v1200 = vsel %vm832, %v758, 0
        %v1203 = vsel %vm832, %v759, 0
        %v1206 = vsel %vm832, %v760, 0
        %v1209 = vsel %vm832, %v761, 0
        %v1212 = vsel %vm832, %v762, 0
        %v1215 = vsel %vm832, %v763, 0
        %v1218 = vsel %vm832, %v764, 0
        %v1221 = vsel %vm832, %v765, 0
        %v1224 = vsel %vm832, %v766, 0
        %v1227 = vsel %vm832, %v767, 0
        %v1230 = vsel %vm832, %v768, 0
        %v1233 = vsel %vm832, %v769, 0
        %v1236 = vsel %vm832, %v770, 0
        %v1239 = vsel %vm832, %v771, 0
        %v1242 = vsel %vm832, %v772, 0
        %v1245 = vsel %vm832, %v773, 0
        %v1248 = vsel %vm832, %v774, 0
        %1250 = vmatprep.subr.mxu0 0.0
        %1251 = vmatpush1.msra.mxu0 %v775
        %1252 = vmatprep.subr.mxu0 0.0
        %1253 = vmatpush1.msra.mxu0 %v776
        %1254 = vmatprep.subr.mxu0 0.0
        %1255 = vmatpush1.msra.mxu0 %v777
        %1256 = vmatprep.subr.mxu0 0.0
        %1257 = vmatpush1.msra.mxu0 %v778
        %1258 = vmatprep.subr.mxu0 0.0
        %1259 = vmatpush1.msra.mxu0 %v779
        %1260 = vmatprep.subr.mxu0 0.0
        %1261 = vmatpush1.msra.mxu0 %v780
        %1262 = vmatprep.subr.mxu0 0.0
        %1263 = vmatpush1.msra.mxu0 %v781
        %1264 = vmatprep.subr.mxu0 0.0
        %1265 = vmatpush1.msra.mxu0 %v782
        %1266 = vmatprep.subr.mxu0 0.0
        %1267 = vmatpush1.msra.mxu0 %v783
        %1268 = vmatprep.subr.mxu0 0.0
        %1269 = vmatpush1.msra.mxu0 %v784
        %1270 = vmatprep.subr.mxu0 0.0
        %1271 = vmatpush1.msra.mxu0 %v785
        %1272 = vmatprep.subr.mxu0 0.0
        %1273 = vmatpush1.msra.mxu0 %v786
        %1274 = vmatprep.subr.mxu0 0.0
        %1275 = vmatpush1.msra.mxu0 0.0
        %1276 = vmatprep.subr.mxu0 0.0
        %1277 = vmatpush1.msra.mxu0 0.0
        %1278 = vmatprep.subr.mxu0 0.0
        %1279 = vmatpush1.msra.mxu0 0.0
        %1280 = vmatprep.subr.mxu0 0.0
        %1281 = vmatpush1.msra.mxu0 0.0
        %1282 = vmatprep.subr.mxu0 0.0
        %1283 = vmatpush1.msra.mxu0 0.0
        %1284 = vmatprep.subr.mxu0 0.0
        %1285 = vmatpush1.msra.mxu0 0.0
        %1286 = vmatprep.subr.mxu0 0.0
        %1287 = vmatpush1.msra.mxu0 0.0
        %1288 = vmatprep.subr.mxu0 0.0
        %1289 = vmatpush1.msra.mxu0 0.0
        %1290 = vmatprep.subr.mxu0 0.0
        %1291 = vmatpush1.msra.mxu0 0.0
        %1292 = vmatprep.subr.mxu0 0.0
        %1293 = vmatpush1.msra.mxu0 0.0
        %1294 = vmatprep.subr.mxu0 0.0
        %1295 = vmatpush1.msra.mxu0 0.0
        %1296 = vmatprep.subr.mxu0 0.0
        %1297 = vmatpush1.msra.mxu0 0.0
        %1298 = vmatprep.subr.mxu0 0.0
        %1299 = vmatpush1.msra.mxu0 0.0
        %1300 = vmatprep.subr.mxu0 0.0
        %1301 = vmatpush1.msra.mxu0 0.0
        %1302 = vmatprep.subr.mxu0 0.0
        %1303 = vmatpush1.msra.mxu0 0.0
        %1304 = vmatprep.subr.mxu0 0.0
        %1305 = vmatpush1.msra.mxu0 0.0
        %1306 = vmatprep.subr.mxu0 0.0
        %1307 = vmatpush1.msra.mxu0 0.0
        %1308 = vmatprep.subr.mxu0 0.0
        %1309 = vmatpush1.msra.mxu0 0.0
        %1310 = vmatprep.subr.mxu0 0.0
        %1311 = vmatpush1.msra.mxu0 0.0
        %1312 = vmatprep.subr.mxu0 0.0
        %1313 = vmatpush1.msra.mxu0 0.0
        %1314 = vmatprep.mubr.f32.mxu0 0.0
        %1315 = vmatmul.mubr.f32.gmra.mrb[0].mxu0 %v1155
        %v1316 = vpop.f32.mrb[0].mxu0
        %v1317 = vadd.f32 %v996, %v1316
        %v1318 = vpop.f32.mrb[0].mxu0
        %1319 = vmatprep.mubr.f32.mxu0 0.0
        %1320 = vmatmul.mubr.f32.gmra.mrb[0].mxu0 %v1158
        %v1321 = vpop.f32.mrb[0].mxu0
        %v1322 = vadd.f32 %v1001, %v1321
        %v1323 = vpop.f32.mrb[0].mxu0
        %1324 = vmatprep.mubr.f32.mxu0 0.0
        %1325 = vmatmul.mubr.f32.gmra.mrb[0].mxu0 %v1161
        %v1326 = vpop.f32.mrb[0].mxu0
        %v1327 = vadd.f32 %v1006, %v1326
        %v1328 = vpop.f32.mrb[0].mxu0
        %1329 = vmatprep.mubr.f32.mxu0 0.0
        %1330 = vmatmul.mubr.f32.gmra.mrb[0].mxu0 %v1164
        %v1331 = vpop.f32.mrb[0].mxu0
        %v1332 = vadd.f32 %v1011, %v1331
        %v1333 = vpop.f32.mrb[0].mxu0
        %1334 = vmatprep.mubr.f32.mxu0 0.0
        %1335 = vmatmul.mubr.f32.gmra.mrb[0].mxu0 %v1167
        %v1336 = vpop.f32.mrb[0].mxu0
        %v1337 = vadd.f32 %v1016, %v1336
        %v1338 = vpop.f32.mrb[0].mxu0
        %1339 = vmatprep.mubr.f32.mxu0 0.0
        %1340 = vmatmul.mubr.f32.gmra.mrb[0].mxu0 %v1170
        %v1341 = vpop.f32.mrb[0].mxu0
        %v1342 = vadd.f32 %v1021, %v1341
        %v1343 = vpop.f32.mrb[0].mxu0
        %1344 = vmatprep.mubr.f32.mxu0 0.0
        %1345 = vmatmul.mubr.f32.gmra.mrb[0].mxu0 %v1173
        %v1346 = vpop.f32.mrb[0].mxu0
        %v1347 = vadd.f32 %v1026, %v1346
        %v1348 = vpop.f32.mrb[0].mxu0
        %1349 = vmatprep.mubr.f32.mxu0 0.0
        %1350 = vmatmul.mubr.f32.gmra.mrb[0].mxu0 %v1176
        %v1351 = vpop.f32.mrb[0].mxu0
        %v1352 = vadd.f32 %v1031, %v1351
        %v1353 = vpop.f32.mrb[0].mxu0
        %1354 = vmatprep.mubr.f32.mxu0 0.0
        %1355 = vmatmul.mubr.f32.gmra.mrb[0].mxu0 %v1179
        %v1356 = vpop.f32.mrb[0].mxu0
        %v1357 = vadd.f32 %v1036, %v1356
        %v1358 = vpop.f32.mrb[0].mxu0
        %1359 = vmatprep.mubr.f32.mxu0 0.0
        %1360 = vmatmul.mubr.f32.gmra.mrb[0].mxu0 %v1182
        %v1361 = vpop.f32.mrb[0].mxu0
        %v1362 = vadd.f32 %v1041, %v1361
        %v1363 = vpop.f32.mrb[0].mxu0
        %1364 = vmatprep.mubr.f32.mxu0 0.0
        %1365 = vmatmul.mubr.f32.gmra.mrb[0].mxu0 %v1185
        %v1366 = vpop.f32.mrb[0].mxu0
        %v1367 = vadd.f32 %v1046, %v1366
        %v1368 = vpop.f32.mrb[0].mxu0
        %1369 = vmatprep.mubr.f32.mxu0 0.0
        %1370 = vmatmul.mubr.f32.gmra.mrb[0].mxu0 %v1188
        %v1371 = vpop.f32.mrb[0].mxu0
        %v1372 = vadd.f32 %v1051, %v1371
        %v1373 = vpop.f32.mrb[0].mxu0
        %1374 = vmatprep.mubr.f32.mxu0 0.0
        %1375 = vmatmul.mubr.f32.gmra.mrb[0].mxu0 %v1191
        %v1376 = vpop.f32.mrb[0].mxu0
        %v1377 = vadd.f32 %v1056, %v1376
        %v1378 = vpop.f32.mrb[0].mxu0
        %1379 = vmatprep.mubr.f32.mxu0 0.0
        %1380 = vmatmul.mubr.f32.gmra.mrb[0].mxu0 %v1194
        %v1381 = vpop.f32.mrb[0].mxu0
        %v1382 = vadd.f32 %v1061, %v1381
        %v1383 = vpop.f32.mrb[0].mxu0
        %1384 = vmatprep.mubr.f32.mxu0 0.0
        %1385 = vmatmul.mubr.f32.gmra.mrb[0].mxu0 %v1197
        %v1386 = vpop.f32.mrb[0].mxu0
        %v1387 = vadd.f32 %v1066, %v1386
        %v1388 = vpop.f32.mrb[0].mxu0
        %1389 = vmatprep.mubr.f32.mxu0 0.0
        %1390 = vmatmul.mubr.f32.gmra.mrb[0].mxu0 %v1200
        %v1391 = vpop.f32.mrb[0].mxu0
        %v1392 = vadd.f32 %v1071, %v1391
        %v1393 = vpop.f32.mrb[0].mxu0
        %1394 = vmatprep.mubr.f32.mxu0 0.0
        %1395 = vmatmul.mubr.f32.gmra.mrb[0].mxu0 %v1203
        %v1396 = vpop.f32.mrb[0].mxu0
        %v1397 = vadd.f32 %v1076, %v1396
        %v1398 = vpop.f32.mrb[0].mxu0
        %1399 = vmatprep.mubr.f32.mxu0 0.0
        %1400 = vmatmul.mubr.f32.gmra.mrb[0].mxu0 %v1206
        %v1401 = vpop.f32.mrb[0].mxu0
        %v1402 = vadd.f32 %v1081, %v1401
        %v1403 = vpop.f32.mrb[0].mxu0
        %1404 = vmatprep.mubr.f32.mxu0 0.0
        %1405 = vmatmul.mubr.f32.gmra.mrb[0].mxu0 %v1209
        %v1406 = vpop.f32.mrb[0].mxu0
        %v1407 = vadd.f32 %v1086, %v1406
        %v1408 = vpop.f32.mrb[0].mxu0
        %1409 = vmatprep.mubr.f32.mxu0 0.0
        %1410 = vmatmul.mubr.f32.gmra.mrb[0].mxu0 %v1212
        %v1411 = vpop.f32.mrb[0].mxu0
        %v1412 = vadd.f32 %v1091, %v1411
        %v1413 = vpop.f32.mrb[0].mxu0
        %1414 = vmatprep.mubr.f32.mxu0 0.0
        %1415 = vmatmul.mubr.f32.gmra.mrb[0].mxu0 %v1215
        %v1416 = vpop.f32.mrb[0].mxu0
        %v1417 = vadd.f32 %v1096, %v1416
        %v1418 = vpop.f32.mrb[0].mxu0
        %1419 = vmatprep.mubr.f32.mxu0 0.0
        %1420 = vmatmul.mubr.f32.gmra.mrb[0].mxu0 %v1218
        %v1421 = vpop.f32.mrb[0].mxu0
        %v1422 = vadd.f32 %v1101, %v1421
        %v1423 = vpop.f32.mrb[0].mxu0
        %1424 = vmatprep.mubr.f32.mxu0 0.0
        %1425 = vmatmul.mubr.f32.gmra.mrb[0].mxu0 %v1221
        %v1426 = vpop.f32.mrb[0].mxu0
        %v1427 = vadd.f32 %v1106, %v1426
        %v1428 = vpop.f32.mrb[0].mxu0
        %1429 = vmatprep.mubr.f32.mxu0 0.0
        %1430 = vmatmul.mubr.f32.gmra.mrb[0].mxu0 %v1224
        %v1431 = vpop.f32.mrb[0].mxu0
        %v1432 = vadd.f32 %v1111, %v1431
        %v1433 = vpop.f32.mrb[0].mxu0
        %1434 = vmatprep.mubr.f32.mxu0 0.0
        %1435 = vmatmul.mubr.f32.gmra.mrb[0].mxu0 %v1227
        %v1436 = vpop.f32.mrb[0].mxu0
        %v1437 = vadd.f32 %v1116, %v1436
        %v1438 = vpop.f32.mrb[0].mxu0
        %1439 = vmatprep.mubr.f32.mxu0 0.0
        %1440 = vmatmul.mubr.f32.gmra.mrb[0].mxu0 %v1230
        %v1441 = vpop.f32.mrb[0].mxu0
        %v1442 = vadd.f32 %v1121, %v1441
        %v1443 = vpop.f32.mrb[0].mxu0
        %1444 = vmatprep.mubr.f32.mxu0 0.0
        %1445 = vmatmul.mubr.f32.gmra.mrb[0].mxu0 %v1233
        %v1446 = vpop.f32.mrb[0].mxu0
        %v1447 = vadd.f32 %v1126, %v1446
        %v1448 = vpop.f32.mrb[0].mxu0
        %1449 = vmatprep.mubr.f32.mxu0 0.0
        %1450 = vmatmul.mubr.f32.gmra.mrb[0].mxu0 %v1236
        %v1451 = vpop.f32.mrb[0].mxu0
        %v1452 = vadd.f32 %v1131, %v1451
        %v1453 = vpop.f32.mrb[0].mxu0
        %1454 = vmatprep.mubr.f32.mxu0 0.0
        %1455 = vmatmul.mubr.f32.gmra.mrb[0].mxu0 %v1239
        %v1456 = vpop.f32.mrb[0].mxu0
        %v1457 = vadd.f32 %v1136, %v1456
        %v1458 = vpop.f32.mrb[0].mxu0
        %1459 = vmatprep.mubr.f32.mxu0 0.0
        %1460 = vmatmul.mubr.f32.gmra.mrb[0].mxu0 %v1242
        %v1461 = vpop.f32.mrb[0].mxu0
        %v1462 = vadd.f32 %v1141, %v1461
        %v1463 = vpop.f32.mrb[0].mxu0
        %1464 = vmatprep.mubr.f32.mxu0 0.0
        %1465 = vmatmul.mubr.f32.gmra.mrb[0].mxu0 %v1245
        %v1466 = vpop.f32.mrb[0].mxu0
        %v1467 = vadd.f32 %v1146, %v1466
        %v1468 = vpop.f32.mrb[0].mxu0
        %1469 = vmatprep.mubr.f32.mxu0 0.0
        %1470 = vmatmul.mubr.f32.gmra.mrb[0].mxu0 %v1248
        %v1471 = vpop.f32.mrb[0].mxu0
        %v1472 = vadd.f32 %v1151, %v1471
        %v1473 = vpop.f32.mrb[0].mxu0
        %1474 = vdwg.mxu0
        %v1475 = vld [vmem:[#allocation2 + $0x2] sm:$0xff]
        %v1476 = vld [vmem:[#allocation2 + $0xa] sm:$0xff]
        %v1477 = vld [vmem:[#allocation2 + $0x1a] sm:$0xff]
        %v1478 = vld [vmem:[#allocation2 + $0x22] sm:$0xff]
        %v1479 = vld [vmem:[#allocation2 + $0x32] sm:$0xff]
        %v1480 = vld [vmem:[#allocation2 + $0x3a] sm:$0xff]
        %v1481 = vld [vmem:[#allocation2 + $0x4a] sm:$0xff]
        %v1482 = vld [vmem:[#allocation2 + $0x52] sm:$0xff]
        %v1483 = vld [vmem:[#allocation2 + $0x62] sm:$0xff]
        %v1484 = vld [vmem:[#allocation2 + $0x6a] sm:$0xff]
        %v1485 = vld [vmem:[#allocation2 + $0x7a] sm:$0xff]
        %v1486 = vld [vmem:[#allocation2 + $0x82] sm:$0xff]
        %v1487 = vld [vmem:[#allocation2 + $0x92] sm:$0xff]
        %v1488 = vld [vmem:[#allocation2 + $0x9a] sm:$0xff]
        %v1489 = vld [vmem:[#allocation2 + $0xaa] sm:$0xff]
        %v1490 = vld [vmem:[#allocation2 + $0xb2] sm:$0xff]
        %v1491 = vld [vmem:[#allocation2 + $0xc2] sm:$0xff]
        %v1492 = vld [vmem:[#allocation2 + $0xca] sm:$0xff]
        %v1493 = vld [vmem:[#allocation2 + $0xda] sm:$0xff]
        %v1494 = vld [vmem:[#allocation2 + $0xe2] sm:$0xff]
        %v1495 = vld [vmem:[#allocation2 + $0xf2] sm:$0xff]
        %v1496 = vld [vmem:[#allocation2 + $0xfa] sm:$0xff]
        %v1497 = vld [vmem:[#allocation2 + $0x10a] sm:$0xff]
        %v1498 = vld [vmem:[#allocation2 + $0x112] sm:$0xff]
        %v1499 = vld [vmem:[#allocation2 + $0x122] sm:$0xff]
        %v1500 = vld [vmem:[#allocation2 + $0x12a] sm:$0xff]
        %v1501 = vld [vmem:[#allocation2 + $0x13a] sm:$0xff]
        %v1502 = vld [vmem:[#allocation2 + $0x142] sm:$0xff]
        %v1503 = vld [vmem:[#allocation2 + $0x152] sm:$0xff]
        %v1504 = vld [vmem:[#allocation2 + $0x15a] sm:$0xff]
        %v1505 = vld [vmem:[#allocation2 + $0x16a] sm:$0xff]
        %v1506 = vld [vmem:[#allocation2 + $0x172] sm:$0xff]
        %s1507 = scalar_lea.vmem %s1, 192
        %v1508 = vld [vmem:[%s1507] sm:$0xff]
        %v1509 = vld [vmem:[%s1507 + $0x8] sm:$0xff]
        %v1510 = vld [vmem:[%s1507 + $0x10] sm:$0xff]
        %v1511 = vld [vmem:[%s1507 + $0x18] sm:$0xff]
        %v1512 = vld [vmem:[%s1507 + $0x20] sm:$0xff]
        %v1513 = vld [vmem:[%s1507 + $0x28] sm:$0xff]
        %v1514 = vld [vmem:[%s1507 + $0x30] sm:$0xff]
        %v1515 = vld [vmem:[%s1507 + $0x38] sm:$0xff]
        %v1516 = vld [vmem:[%s1507 + $0x40] sm:$0xff]
        %v1517 = vld [vmem:[%s1507 + $0x48] sm:$0xff]
        %v1518 = vld [vmem:[%s1507 + $0x50] sm:$0xff]
        %v1519 = vld [vmem:[%s1507 + $0x58] sm:$0xff]
        %v1521 = vsel %vm832, %v1475, 0
        %v1524 = vsel %vm832, %v1476, 0
        %v1527 = vsel %vm832, %v1477, 0
        %v1530 = vsel %vm832, %v1478, 0
        %v1533 = vsel %vm832, %v1479, 0
        %v1536 = vsel %vm832, %v1480, 0
        %v1539 = vsel %vm832, %v1481, 0
        %v1542 = vsel %vm832, %v1482, 0
        %v1545 = vsel %vm832, %v1483, 0
        %v1548 = vsel %vm832, %v1484, 0
        %v1551 = vsel %vm832, %v1485, 0
        %v1554 = vsel %vm832, %v1486, 0
        %v1557 = vsel %vm832, %v1487, 0
        %v1560 = vsel %vm832, %v1488, 0
        %v1563 = vsel %vm832, %v1489, 0
        %v1566 = vsel %vm832, %v1490, 0
        %v1569 = vsel %vm832, %v1491, 0
        %v1572 = vsel %vm832, %v1492, 0
        %v1575 = vsel %vm832, %v1493, 0
        %v1578 = vsel %vm832, %v1494, 0
        %v1581 = vsel %vm832, %v1495, 0
        %v1584 = vsel %vm832, %v1496, 0
        %v1587 = vsel %vm832, %v1497, 0
        %v1590 = vsel %vm832, %v1498, 0
        %v1593 = vsel %vm832, %v1499, 0
        %v1596 = vsel %vm832, %v1500, 0
        %v1599 = vsel %vm832, %v1501, 0
        %v1602 = vsel %vm832, %v1502, 0
        %v1605 = vsel %vm832, %v1503, 0
        %v1608 = vsel %vm832, %v1504, 0
        %v1611 = vsel %vm832, %v1505, 0
        %v1614 = vsel %vm832, %v1506, 0
        %1616 = vmatprep.subr.mxu0 0.0
        %1617 = vmatpush1.msra.mxu0 %v1508
        %1618 = vmatprep.subr.mxu0 0.0
        %1619 = vmatpush1.msra.mxu0 %v1509
        %1620 = vmatprep.subr.mxu0 0.0
        %1621 = vmatpush1.msra.mxu0 %v1510
        %1622 = vmatprep.subr.mxu0 0.0
        %1623 = vmatpush1.msra.mxu0 %v1511
        %1624 = vmatprep.subr.mxu0 0.0
        %1625 = vmatpush1.msra.mxu0 %v1512
        %1626 = vmatprep.subr.mxu0 0.0
        %1627 = vmatpush1.msra.mxu0 %v1513
        %1628 = vmatprep.subr.mxu0 0.0
        %1629 = vmatpush1.msra.mxu0 %v1514
        %1630 = vmatprep.subr.mxu0 0.0
        %1631 = vmatpush1.msra.mxu0 %v1515
        %1632 = vmatprep.subr.mxu0 0.0
        %1633 = vmatpush1.msra.mxu0 %v1516
        %1634 = vmatprep.subr.mxu0 0.0
        %1635 = vmatpush1.msra.mxu0 %v1517
        %1636 = vmatprep.subr.mxu0 0.0
        %1637 = vmatpush1.msra.mxu0 %v1518
        %1638 = vmatprep.subr.mxu0 0.0
        %1639 = vmatpush1.msra.mxu0 %v1519
        %1640 = vmatprep.subr.mxu0 0.0
        %1641 = vmatpush1.msra.mxu0 0.0
        %1642 = vmatprep.subr.mxu0 0.0
        %1643 = vmatpush1.msra.mxu0 0.0
        %1644 = vmatprep.subr.mxu0 0.0
        %1645 = vmatpush1.msra.mxu0 0.0
        %1646 = vmatprep.subr.mxu0 0.0
        %1647 = vmatpush1.msra.mxu0 0.0
        %1648 = vmatprep.subr.mxu0 0.0
        %1649 = vmatpush1.msra.mxu0 0.0
        %1650 = vmatprep.subr.mxu0 0.0
        %1651 = vmatpush1.msra.mxu0 0.0
        %1652 = vmatprep.subr.mxu0 0.0
        %1653 = vmatpush1.msra.mxu0 0.0
        %1654 = vmatprep.subr.mxu0 0.0
        %1655 = vmatpush1.msra.mxu0 0.0
        %1656 = vmatprep.subr.mxu0 0.0
        %1657 = vmatpush1.msra.mxu0 0.0
        %1658 = vmatprep.subr.mxu0 0.0
        %1659 = vmatpush1.msra.mxu0 0.0
        %1660 = vmatprep.subr.mxu0 0.0
        %1661 = vmatpush1.msra.mxu0 0.0
        %1662 = vmatprep.subr.mxu0 0.0
        %1663 = vmatpush1.msra.mxu0 0.0
        %1664 = vmatprep.subr.mxu0 0.0
        %1665 = vmatpush1.msra.mxu0 0.0
        %1666 = vmatprep.subr.mxu0 0.0
        %1667 = vmatpush1.msra.mxu0 0.0
        %1668 = vmatprep.subr.mxu0 0.0
        %1669 = vmatpush1.msra.mxu0 0.0
        %1670 = vmatprep.subr.mxu0 0.0
        %1671 = vmatpush1.msra.mxu0 0.0
        %1672 = vmatprep.subr.mxu0 0.0
        %1673 = vmatpush1.msra.mxu0 0.0
        %1674 = vmatprep.subr.mxu0 0.0
        %1675 = vmatpush1.msra.mxu0 0.0
        %1676 = vmatprep.subr.mxu0 0.0
        %1677 = vmatpush1.msra.mxu0 0.0
        %1678 = vmatprep.subr.mxu0 0.0
        %1679 = vmatpush1.msra.mxu0 0.0
        %1680 = vmatprep.mubr.f32.mxu0 0.0
        %1681 = vmatmul.mubr.f32.gmra.mrb[0].mxu0 %v1521
        %v1682 = vpop.f32.mrb[0].mxu0
        %v1683 = vadd.f32 0.0, %v1682
        %v1684 = vpop.f32.mrb[0].mxu0
        %1685 = vmatprep.mubr.f32.mxu0 0.0
        %1686 = vmatmul.mubr.f32.gmra.mrb[0].mxu0 %v1524
        %v1687 = vpop.f32.mrb[0].mxu0
        %v1688 = vadd.f32 0.0, %v1687
        %v1689 = vpop.f32.mrb[0].mxu0
        %1690 = vmatprep.mubr.f32.mxu0 0.0
        %1691 = vmatmul.mubr.f32.gmra.mrb[0].mxu0 %v1527
        %v1692 = vpop.f32.mrb[0].mxu0
        %v1693 = vadd.f32 0.0, %v1692
        %v1694 = vpop.f32.mrb[0].mxu0
        %1695 = vmatprep.mubr.f32.mxu0 0.0
        %1696 = vmatmul.mubr.f32.gmra.mrb[0].mxu0 %v1530
        %v1697 = vpop.f32.mrb[0].mxu0
        %v1698 = vadd.f32 0.0, %v1697
        %v1699 = vpop.f32.mrb[0].mxu0
        %1700 = vmatprep.mubr.f32.mxu0 0.0
        %1701 = vmatmul.mubr.f32.gmra.mrb[0].mxu0 %v1533
        %v1702 = vpop.f32.mrb[0].mxu0
        %v1703 = vadd.f32 0.0, %v1702
        %v1704 = vpop.f32.mrb[0].mxu0
        %1705 = vmatprep.mubr.f32.mxu0 0.0
        %1706 = vmatmul.mubr.f32.gmra.mrb[0].mxu0 %v1536
        %v1707 = vpop.f32.mrb[0].mxu0
        %v1708 = vadd.f32 0.0, %v1707
        %v1709 = vpop.f32.mrb[0].mxu0
        %1710 = vmatprep.mubr.f32.mxu0 0.0
        %1711 = vmatmul.mubr.f32.gmra.mrb[0].mxu0 %v1539
        %v1712 = vpop.f32.mrb[0].mxu0
        %v1713 = vadd.f32 0.0, %v1712
        %v1714 = vpop.f32.mrb[0].mxu0
        %1715 = vmatprep.mubr.f32.mxu0 0.0
        %1716 = vmatmul.mubr.f32.gmra.mrb[0].mxu0 %v1542
        %v1717 = vpop.f32.mrb[0].mxu0
        %v1718 = vadd.f32 0.0, %v1717
        %v1719 = vpop.f32.mrb[0].mxu0
        %1720 = vmatprep.mubr.f32.mxu0 0.0
        %1721 = vmatmul.mubr.f32.gmra.mrb[0].mxu0 %v1545
        %v1722 = vpop.f32.mrb[0].mxu0
        %v1723 = vadd.f32 0.0, %v1722
        %v1724 = vpop.f32.mrb[0].mxu0
        %1725 = vmatprep.mubr.f32.mxu0 0.0
        %1726 = vmatmul.mubr.f32.gmra.mrb[0].mxu0 %v1548
        %v1727 = vpop.f32.mrb[0].mxu0
        %v1728 = vadd.f32 0.0, %v1727
        %v1729 = vpop.f32.mrb[0].mxu0
        %1730 = vmatprep.mubr.f32.mxu0 0.0
        %1731 = vmatmul.mubr.f32.gmra.mrb[0].mxu0 %v1551
        %v1732 = vpop.f32.mrb[0].mxu0
        %v1733 = vadd.f32 0.0, %v1732
        %v1734 = vpop.f32.mrb[0].mxu0
        %1735 = vmatprep.mubr.f32.mxu0 0.0
        %1736 = vmatmul.mubr.f32.gmra.mrb[0].mxu0 %v1554
        %v1737 = vpop.f32.mrb[0].mxu0
        %v1738 = vadd.f32 0.0, %v1737
        %v1739 = vpop.f32.mrb[0].mxu0
        %1740 = vmatprep.mubr.f32.mxu0 0.0
        %1741 = vmatmul.mubr.f32.gmra.mrb[0].mxu0 %v1557
        %v1742 = vpop.f32.mrb[0].mxu0
        %v1743 = vadd.f32 0.0, %v1742
        %v1744 = vpop.f32.mrb[0].mxu0
        %1745 = vmatprep.mubr.f32.mxu0 0.0
        %1746 = vmatmul.mubr.f32.gmra.mrb[0].mxu0 %v1560
        %v1747 = vpop.f32.mrb[0].mxu0
        %v1748 = vadd.f32 0.0, %v1747
        %v1749 = vpop.f32.mrb[0].mxu0
        %1750 = vmatprep.mubr.f32.mxu0 0.0
        %1751 = vmatmul.mubr.f32.gmra.mrb[0].mxu0 %v1563
        %v1752 = vpop.f32.mrb[0].mxu0
        %v1753 = vadd.f32 0.0, %v1752
        %v1754 = vpop.f32.mrb[0].mxu0
        %1755 = vmatprep.mubr.f32.mxu0 0.0
        %1756 = vmatmul.mubr.f32.gmra.mrb[0].mxu0 %v1566
        %v1757 = vpop.f32.mrb[0].mxu0
        %v1758 = vadd.f32 0.0, %v1757
        %v1759 = vpop.f32.mrb[0].mxu0
        %1760 = vmatprep.mubr.f32.mxu0 0.0
        %1761 = vmatmul.mubr.f32.gmra.mrb[0].mxu0 %v1569
        %v1762 = vpop.f32.mrb[0].mxu0
        %v1763 = vadd.f32 0.0, %v1762
        %v1764 = vpop.f32.mrb[0].mxu0
        %1765 = vmatprep.mubr.f32.mxu0 0.0
        %1766 = vmatmul.mubr.f32.gmra.mrb[0].mxu0 %v1572
        %v1767 = vpop.f32.mrb[0].mxu0
        %v1768 = vadd.f32 0.0, %v1767
        %v1769 = vpop.f32.mrb[0].mxu0
        %1770 = vmatprep.mubr.f32.mxu0 0.0
        %1771 = vmatmul.mubr.f32.gmra.mrb[0].mxu0 %v1575
        %v1772 = vpop.f32.mrb[0].mxu0
        %v1773 = vadd.f32 0.0, %v1772
        %v1774 = vpop.f32.mrb[0].mxu0
        %1775 = vmatprep.mubr.f32.mxu0 0.0
        %1776 = vmatmul.mubr.f32.gmra.mrb[0].mxu0 %v1578
        %v1777 = vpop.f32.mrb[0].mxu0
        %v1778 = vadd.f32 0.0, %v1777
        %v1779 = vpop.f32.mrb[0].mxu0
        %1780 = vmatprep.mubr.f32.mxu0 0.0
        %1781 = vmatmul.mubr.f32.gmra.mrb[0].mxu0 %v1581
        %v1782 = vpop.f32.mrb[0].mxu0
        %v1783 = vadd.f32 0.0, %v1782
        %v1784 = vpop.f32.mrb[0].mxu0
        %1785 = vmatprep.mubr.f32.mxu0 0.0
        %1786 = vmatmul.mubr.f32.gmra.mrb[0].mxu0 %v1584
        %v1787 = vpop.f32.mrb[0].mxu0
        %v1788 = vadd.f32 0.0, %v1787
        %v1789 = vpop.f32.mrb[0].mxu0
        %1790 = vmatprep.mubr.f32.mxu0 0.0
        %1791 = vmatmul.mubr.f32.gmra.mrb[0].mxu0 %v1587
        %v1792 = vpop.f32.mrb[0].mxu0
        %v1793 = vadd.f32 0.0, %v1792
        %v1794 = vpop.f32.mrb[0].mxu0
        %1795 = vmatprep.mubr.f32.mxu0 0.0
        %1796 = vmatmul.mubr.f32.gmra.mrb[0].mxu0 %v1590
        %v1797 = vpop.f32.mrb[0].mxu0
        %v1798 = vadd.f32 0.0, %v1797
        %v1799 = vpop.f32.mrb[0].mxu0
        %1800 = vmatprep.mubr.f32.mxu0 0.0
        %1801 = vmatmul.mubr.f32.gmra.mrb[0].mxu0 %v1593
        %v1802 = vpop.f32.mrb[0].mxu0
        %v1803 = vadd.f32 0.0, %v1802
        %v1804 = vpop.f32.mrb[0].mxu0
        %1805 = vmatprep.mubr.f32.mxu0 0.0
        %1806 = vmatmul.mubr.f32.gmra.mrb[0].mxu0 %v1596
        %v1807 = vpop.f32.mrb[0].mxu0
        %v1808 = vadd.f32 0.0, %v1807
        %v1809 = vpop.f32.mrb[0].mxu0
        %1810 = vmatprep.mubr.f32.mxu0 0.0
        %1811 = vmatmul.mubr.f32.gmra.mrb[0].mxu0 %v1599
        %v1812 = vpop.f32.mrb[0].mxu0
        %v1813 = vadd.f32 0.0, %v1812
        %v1814 = vpop.f32.mrb[0].mxu0
        %1815 = vmatprep.mubr.f32.mxu0 0.0
        %1816 = vmatmul.mubr.f32.gmra.mrb[0].mxu0 %v1602
        %v1817 = vpop.f32.mrb[0].mxu0
        %v1818 = vadd.f32 0.0, %v1817
        %v1819 = vpop.f32.mrb[0].mxu0
        %1820 = vmatprep.mubr.f32.mxu0 0.0
        %1821 = vmatmul.mubr.f32.gmra.mrb[0].mxu0 %v1605
        %v1822 = vpop.f32.mrb[0].mxu0
        %v1823 = vadd.f32 0.0, %v1822
        %v1824 = vpop.f32.mrb[0].mxu0
        %1825 = vmatprep.mubr.f32.mxu0 0.0
        %1826 = vmatmul.mubr.f32.gmra.mrb[0].mxu0 %v1608
        %v1827 = vpop.f32.mrb[0].mxu0
        %v1828 = vadd.f32 0.0, %v1827
        %v1829 = vpop.f32.mrb[0].mxu0
        %1830 = vmatprep.mubr.f32.mxu0 0.0
        %1831 = vmatmul.mubr.f32.gmra.mrb[0].mxu0 %v1611
        %v1832 = vpop.f32.mrb[0].mxu0
        %v1833 = vadd.f32 0.0, %v1832
        %v1834 = vpop.f32.mrb[0].mxu0
        %1835 = vmatprep.mubr.f32.mxu0 0.0
        %1836 = vmatmul.mubr.f32.gmra.mrb[0].mxu0 %v1614
        %v1837 = vpop.f32.mrb[0].mxu0
        %v1838 = vadd.f32 0.0, %v1837
        %v1839 = vpop.f32.mrb[0].mxu0
        %1840 = vdwg.mxu0
        %v1841 = vadd.f32 %v1317, %v1683
        %v1842 = vadd.f32 %v1322, %v1688
        %v1843 = vadd.f32 %v1327, %v1693
        %v1844 = vadd.f32 %v1332, %v1698
        %v1845 = vadd.f32 %v1337, %v1703
        %v1846 = vadd.f32 %v1342, %v1708
        %v1847 = vadd.f32 %v1347, %v1713
        %v1848 = vadd.f32 %v1352, %v1718
        %v1849 = vadd.f32 %v1357, %v1723
        %v1850 = vadd.f32 %v1362, %v1728
        %v1851 = vadd.f32 %v1367, %v1733
        %v1852 = vadd.f32 %v1372, %v1738
        %v1853 = vadd.f32 %v1377, %v1743
        %v1854 = vadd.f32 %v1382, %v1748
        %v1855 = vadd.f32 %v1387, %v1753
        %v1856 = vadd.f32 %v1392, %v1758
        %v1857 = vadd.f32 %v1397, %v1763
        %v1858 = vadd.f32 %v1402, %v1768
        %v1859 = vadd.f32 %v1407, %v1773
        %v1860 = vadd.f32 %v1412, %v1778
        %v1861 = vadd.f32 %v1417, %v1783
        %v1862 = vadd.f32 %v1422, %v1788
        %v1863 = vadd.f32 %v1427, %v1793
        %v1864 = vadd.f32 %v1432, %v1798
        %v1865 = vadd.f32 %v1437, %v1803
        %v1866 = vadd.f32 %v1442, %v1808
        %v1867 = vadd.f32 %v1447, %v1813
        %v1868 = vadd.f32 %v1452, %v1818
        %v1869 = vadd.f32 %v1457, %v1823
        %v1870 = vadd.f32 %v1462, %v1828
        %v1871 = vadd.f32 %v1467, %v1833
        %v1872 = vadd.f32 %v1472, %v1838
        %v1873 = vld [vmem:[%s2] sm:$0x1]
        %v1875 = vlaneseq
        %v1876 = vshrl.u32 %v1875, 7
        %v1877 = vsub.s32 0, %v1876
        %v1878 = vrot.slane %v1873, %v1877
        %v1880 = vadd.f32 %v1841, %v1878
        %v1881 = vadd.f32 %v1842, %v1878
        %v1882 = vadd.f32 %v1843, %v1878
        %v1883 = vadd.f32 %v1844, %v1878
        %v1884 = vadd.f32 %v1845, %v1878
        %v1885 = vadd.f32 %v1846, %v1878
        %v1886 = vadd.f32 %v1847, %v1878
        %v1887 = vadd.f32 %v1848, %v1878
        %v1888 = vadd.f32 %v1849, %v1878
        %v1889 = vadd.f32 %v1850, %v1878
        %v1890 = vadd.f32 %v1851, %v1878
        %v1891 = vadd.f32 %v1852, %v1878
        %v1892 = vadd.f32 %v1853, %v1878
        %v1893 = vadd.f32 %v1854, %v1878
        %v1894 = vadd.f32 %v1855, %v1878
        %v1895 = vadd.f32 %v1856, %v1878
        %v1896 = vadd.f32 %v1857, %v1878
        %v1897 = vadd.f32 %v1858, %v1878
        %v1898 = vadd.f32 %v1859, %v1878
        %v1899 = vadd.f32 %v1860, %v1878
        %v1900 = vadd.f32 %v1861, %v1878
        %v1901 = vadd.f32 %v1862, %v1878
        %v1902 = vadd.f32 %v1863, %v1878
        %v1903 = vadd.f32 %v1864, %v1878
        %v1904 = vadd.f32 %v1865, %v1878
        %v1905 = vadd.f32 %v1866, %v1878
        %v1906 = vadd.f32 %v1867, %v1878
        %v1907 = vadd.f32 %v1868, %v1878
        %v1908 = vadd.f32 %v1869, %v1878
        %v1909 = vadd.f32 %v1870, %v1878
        %v1910 = vadd.f32 %v1871, %v1878
        %v1911 = vadd.f32 %v1872, %v1878
        %v1912 = vsel %vm226, %v1880, 0.0
        %v1913 = vsel %vm226, %v1881, 0.0
        %v1914 = vadd.f32 %v1912, %v1913
        %v1915 = vsel %vm226, %v1882, 0.0
        %v1916 = vadd.f32 %v1914, %v1915
        %v1917 = vsel %vm226, %v1883, 0.0
        %v1918 = vadd.f32 %v1916, %v1917
        %v1919 = vsel %vm226, %v1884, 0.0
        %v1920 = vadd.f32 %v1918, %v1919
        %v1921 = vsel %vm226, %v1885, 0.0
        %v1922 = vadd.f32 %v1920, %v1921
        %v1923 = vsel %vm226, %v1886, 0.0
        %v1924 = vadd.f32 %v1922, %v1923
        %v1925 = vsel %vm226, %v1887, 0.0
        %v1926 = vadd.f32 %v1924, %v1925
        %v1927 = vsel %vm226, %v1888, 0.0
        %v1928 = vadd.f32 %v1926, %v1927
        %v1929 = vsel %vm226, %v1889, 0.0
        %v1930 = vadd.f32 %v1928, %v1929
        %v1931 = vsel %vm226, %v1890, 0.0
        %v1932 = vadd.f32 %v1930, %v1931
        %v1933 = vsel %vm226, %v1891, 0.0
        %v1934 = vadd.f32 %v1932, %v1933
        %v1935 = vsel %vm226, %v1892, 0.0
        %v1936 = vadd.f32 %v1934, %v1935
        %v1937 = vsel %vm226, %v1893, 0.0
        %v1938 = vadd.f32 %v1936, %v1937
        %v1939 = vsel %vm226, %v1894, 0.0
        %v1940 = vadd.f32 %v1938, %v1939
        %v1941 = vsel %vm226, %v1895, 0.0
        %v1942 = vadd.f32 %v1940, %v1941
        %v1943 = vsel %vm226, %v1896, 0.0
        %v1944 = vadd.f32 %v1942, %v1943
        %v1945 = vsel %vm226, %v1897, 0.0
        %v1946 = vadd.f32 %v1944, %v1945
        %v1947 = vsel %vm226, %v1898, 0.0
        %v1948 = vadd.f32 %v1946, %v1947
        %v1949 = vsel %vm226, %v1899, 0.0
        %v1950 = vadd.f32 %v1948, %v1949
        %v1951 = vsel %vm226, %v1900, 0.0
        %v1952 = vadd.f32 %v1950, %v1951
        %v1953 = vsel %vm226, %v1901, 0.0
        %v1954 = vadd.f32 %v1952, %v1953
        %v1955 = vsel %vm226, %v1902, 0.0
        %v1956 = vadd.f32 %v1954, %v1955
        %v1957 = vsel %vm226, %v1903, 0.0
        %v1958 = vadd.f32 %v1956, %v1957
        %v1959 = vsel %vm226, %v1904, 0.0
        %v1960 = vadd.f32 %v1958, %v1959
        %v1961 = vsel %vm226, %v1905, 0.0
        %v1962 = vadd.f32 %v1960, %v1961
        %v1963 = vsel %vm226, %v1906, 0.0
        %v1964 = vadd.f32 %v1962, %v1963
        %v1965 = vsel %vm226, %v1907, 0.0
        %v1966 = vadd.f32 %v1964, %v1965
        %v1967 = vsel %vm226, %v1908, 0.0
        %v1968 = vadd.f32 %v1966, %v1967
        %v1969 = vsel %vm226, %v1909, 0.0
        %v1970 = vadd.f32 %v1968, %v1969
        %v1971 = vsel %vm226, %v1910, 0.0
        %v1972 = vadd.f32 %v1970, %v1971
        %v1973 = vsel %vm226, %v1911, 0.0
        %v1974 = vadd.f32 %v1972, %v1973
        %v1975 = vrot.slane %v1974, 4
        %v1976 = vadd.f32 %v1974, %v1975
        %v1977 = vrot.slane %v1976, 2
        %v1978 = vadd.f32 %v1976, %v1977
        %v1979 = vrot.slane %v1978, 1
        %v1980 = vadd.f32 %v1978, %v1979
        %v1981 = vrcp.pop 256.0
        %v1982 = vmul.f32 %v1980, %v1981
        %v1983 = vsub.f32 %v1880, %v1982
        %v1984 = vsub.f32 %v1881, %v1982
        %v1985 = vsub.f32 %v1882, %v1982
        %v1986 = vsub.f32 %v1883, %v1982
        %v1987 = vsub.f32 %v1884, %v1982
        %v1988 = vsub.f32 %v1885, %v1982
        %v1989 = vsub.f32 %v1886, %v1982
        %v1990 = vsub.f32 %v1887, %v1982
        %v1991 = vsub.f32 %v1888, %v1982
        %v1992 = vsub.f32 %v1889, %v1982
        %v1993 = vsub.f32 %v1890, %v1982
        %v1994 = vsub.f32 %v1891, %v1982
        %v1995 = vsub.f32 %v1892, %v1982
        %v1996 = vsub.f32 %v1893, %v1982
        %v1997 = vsub.f32 %v1894, %v1982
        %v1998 = vsub.f32 %v1895, %v1982
        %v1999 = vsub.f32 %v1896, %v1982
        %v2000 = vsub.f32 %v1897, %v1982
        %v2001 = vsub.f32 %v1898, %v1982
        %v2002 = vsub.f32 %v1899, %v1982
        %v2003 = vsub.f32 %v1900, %v1982
        %v2004 = vsub.f32 %v1901, %v1982
        %v2005 = vsub.f32 %v1902, %v1982
        %v2006 = vsub.f32 %v1903, %v1982
        %v2007 = vsub.f32 %v1904, %v1982
        %v2008 = vsub.f32 %v1905, %v1982
        %v2009 = vsub.f32 %v1906, %v1982
        %v2010 = vsub.f32 %v1907, %v1982
        %v2011 = vsub.f32 %v1908, %v1982
        %v2012 = vsub.f32 %v1909, %v1982
        %v2013 = vsub.f32 %v1910, %v1982
        %v2014 = vsub.f32 %v1911, %v1982
        %v2015 = vmul.f32 %v1983, %v1983
        %v2016 = vmul.f32 %v1984, %v1984
        %v2017 = vmul.f32 %v1985, %v1985
        %v2018 = vmul.f32 %v1986, %v1986
        %v2019 = vmul.f32 %v1987, %v1987
        %v2020 = vmul.f32 %v1988, %v1988
        %v2021 = vmul.f32 %v1989, %v1989
        %v2022 = vmul.f32 %v1990, %v1990
        %v2023 = vmul.f32 %v1991, %v1991
        %v2024 = vmul.f32 %v1992, %v1992
        %v2025 = vmul.f32 %v1993, %v1993
        %v2026 = vmul.f32 %v1994, %v1994
        %v2027 = vmul.f32 %v1995, %v1995
        %v2028 = vmul.f32 %v1996, %v1996
        %v2029 = vmul.f32 %v1997, %v1997
        %v2030 = vmul.f32 %v1998, %v1998
        %v2031 = vmul.f32 %v1999, %v1999
        %v2032 = vmul.f32 %v2000, %v2000
        %v2033 = vmul.f32 %v2001, %v2001
        %v2034 = vmul.f32 %v2002, %v2002
        %v2035 = vmul.f32 %v2003, %v2003
        %v2036 = vmul.f32 %v2004, %v2004
        %v2037 = vmul.f32 %v2005, %v2005
        %v2038 = vmul.f32 %v2006, %v2006
        %v2039 = vmul.f32 %v2007, %v2007
        %v2040 = vmul.f32 %v2008, %v2008
        %v2041 = vmul.f32 %v2009, %v2009
        %v2042 = vmul.f32 %v2010, %v2010
        %v2043 = vmul.f32 %v2011, %v2011
        %v2044 = vmul.f32 %v2012, %v2012
        %v2045 = vmul.f32 %v2013, %v2013
        %v2046 = vmul.f32 %v2014, %v2014
        %v2047 = vsel %vm226, %v2015, 0.0
        %v2048 = vsel %vm226, %v2016, 0.0
        %v2049 = vadd.f32 %v2047, %v2048
        %v2050 = vsel %vm226, %v2017, 0.0
        %v2051 = vadd.f32 %v2049, %v2050
        %v2052 = vsel %vm226, %v2018, 0.0
        %v2053 = vadd.f32 %v2051, %v2052
        %v2054 = vsel %vm226, %v2019, 0.0
        %v2055 = vadd.f32 %v2053, %v2054
        %v2056 = vsel %vm226, %v2020, 0.0
        %v2057 = vadd.f32 %v2055, %v2056
        %v2058 = vsel %vm226, %v2021, 0.0
        %v2059 = vadd.f32 %v2057, %v2058
        %v2060 = vsel %vm226, %v2022, 0.0
        %v2061 = vadd.f32 %v2059, %v2060
        %v2062 = vsel %vm226, %v2023, 0.0
        %v2063 = vadd.f32 %v2061, %v2062
        %v2064 = vsel %vm226, %v2024, 0.0
        %v2065 = vadd.f32 %v2063, %v2064
        %v2066 = vsel %vm226, %v2025, 0.0
        %v2067 = vadd.f32 %v2065, %v2066
        %v2068 = vsel %vm226, %v2026, 0.0
        %v2069 = vadd.f32 %v2067, %v2068
        %v2070 = vsel %vm226, %v2027, 0.0
        %v2071 = vadd.f32 %v2069, %v2070
        %v2072 = vsel %vm226, %v2028, 0.0
        %v2073 = vadd.f32 %v2071, %v2072
        %v2074 = vsel %vm226, %v2029, 0.0
        %v2075 = vadd.f32 %v2073, %v2074
        %v2076 = vsel %vm226, %v2030, 0.0
        %v2077 = vadd.f32 %v2075, %v2076
        %v2078 = vsel %vm226, %v2031, 0.0
        %v2079 = vadd.f32 %v2077, %v2078
        %v2080 = vsel %vm226, %v2032, 0.0
        %v2081 = vadd.f32 %v2079, %v2080
        %v2082 = vsel %vm226, %v2033, 0.0
        %v2083 = vadd.f32 %v2081, %v2082
        %v2084 = vsel %vm226, %v2034, 0.0
        %v2085 = vadd.f32 %v2083, %v2084
        %v2086 = vsel %vm226, %v2035, 0.0
        %v2087 = vadd.f32 %v2085, %v2086
        %v2088 = vsel %vm226, %v2036, 0.0
        %v2089 = vadd.f32 %v2087, %v2088
        %v2090 = vsel %vm226, %v2037, 0.0
        %v2091 = vadd.f32 %v2089, %v2090
        %v2092 = vsel %vm226, %v2038, 0.0
        %v2093 = vadd.f32 %v2091, %v2092
        %v2094 = vsel %vm226, %v2039, 0.0
        %v2095 = vadd.f32 %v2093, %v2094
        %v2096 = vsel %vm226, %v2040, 0.0
        %v2097 = vadd.f32 %v2095, %v2096
        %v2098 = vsel %vm226, %v2041, 0.0
        %v2099 = vadd.f32 %v2097, %v2098
        %v2100 = vsel %vm226, %v2042, 0.0
        %v2101 = vadd.f32 %v2099, %v2100
        %v2102 = vsel %vm226, %v2043, 0.0
        %v2103 = vadd.f32 %v2101, %v2102
        %v2104 = vsel %vm226, %v2044, 0.0
        %v2105 = vadd.f32 %v2103, %v2104
        %v2106 = vsel %vm226, %v2045, 0.0
        %v2107 = vadd.f32 %v2105, %v2106
        %v2108 = vsel %vm226, %v2046, 0.0
        %v2109 = vadd.f32 %v2107, %v2108
        %v2110 = vrot.slane %v2109, 4
        %v2111 = vadd.f32 %v2109, %v2110
        %v2112 = vrot.slane %v2111, 2
        %v2113 = vadd.f32 %v2111, %v2112
        %v2114 = vrot.slane %v2113, 1
        %v2115 = vadd.f32 %v2113, %v2114
        %v2116 = vmul.f32 %v2115, %v1981
        %v2117 = vadd.f32 %v2116, 1e-05
        %v2118 = vrsqrt.pop %v2117
        %v2119 = vmul.f32 %v1983, %v2118
        %v2120 = vmul.f32 %v1984, %v2118
        %v2121 = vmul.f32 %v1985, %v2118
        %v2122 = vmul.f32 %v1986, %v2118
        %v2123 = vmul.f32 %v1987, %v2118
        %v2124 = vmul.f32 %v1988, %v2118
        %v2125 = vmul.f32 %v1989, %v2118
        %v2126 = vmul.f32 %v1990, %v2118
        %v2127 = vmul.f32 %v1991, %v2118
        %v2128 = vmul.f32 %v1992, %v2118
        %v2129 = vmul.f32 %v1993, %v2118
        %v2130 = vmul.f32 %v1994, %v2118
        %v2131 = vmul.f32 %v1995, %v2118
        %v2132 = vmul.f32 %v1996, %v2118
        %v2133 = vmul.f32 %v1997, %v2118
        %v2134 = vmul.f32 %v1998, %v2118
        %v2135 = vmul.f32 %v1999, %v2118
        %v2136 = vmul.f32 %v2000, %v2118
        %v2137 = vmul.f32 %v2001, %v2118
        %v2138 = vmul.f32 %v2002, %v2118
        %v2139 = vmul.f32 %v2003, %v2118
        %v2140 = vmul.f32 %v2004, %v2118
        %v2141 = vmul.f32 %v2005, %v2118
        %v2142 = vmul.f32 %v2006, %v2118
        %v2143 = vmul.f32 %v2007, %v2118
        %v2144 = vmul.f32 %v2008, %v2118
        %v2145 = vmul.f32 %v2009, %v2118
        %v2146 = vmul.f32 %v2010, %v2118
        %v2147 = vmul.f32 %v2011, %v2118
        %v2148 = vmul.f32 %v2012, %v2118
        %v2149 = vmul.f32 %v2013, %v2118
        %v2150 = vmul.f32 %v2014, %v2118
        %v2151 = vmax.f32 %v2119, 0.0
        %v2152 = vmax.f32 %v2120, 0.0
        %v2153 = vmax.f32 %v2121, 0.0
        %v2154 = vmax.f32 %v2122, 0.0
        %v2155 = vmax.f32 %v2123, 0.0
        %v2156 = vmax.f32 %v2124, 0.0
        %v2157 = vmax.f32 %v2125, 0.0
        %v2158 = vmax.f32 %v2126, 0.0
        %v2159 = vmax.f32 %v2127, 0.0
        %v2160 = vmax.f32 %v2128, 0.0
        %v2161 = vmax.f32 %v2129, 0.0
        %v2162 = vmax.f32 %v2130, 0.0
        %v2163 = vmax.f32 %v2131, 0.0
        %v2164 = vmax.f32 %v2132, 0.0
        %v2165 = vmax.f32 %v2133, 0.0
        %v2166 = vmax.f32 %v2134, 0.0
        %v2167 = vmax.f32 %v2135, 0.0
        %v2168 = vmax.f32 %v2136, 0.0
        %v2169 = vmax.f32 %v2137, 0.0
        %v2170 = vmax.f32 %v2138, 0.0
        %v2171 = vmax.f32 %v2139, 0.0
        %v2172 = vmax.f32 %v2140, 0.0
        %v2173 = vmax.f32 %v2141, 0.0
        %v2174 = vmax.f32 %v2142, 0.0
        %v2175 = vmax.f32 %v2143, 0.0
        %v2176 = vmax.f32 %v2144, 0.0
        %v2177 = vmax.f32 %v2145, 0.0
        %v2178 = vmax.f32 %v2146, 0.0
        %v2179 = vmax.f32 %v2147, 0.0
        %v2180 = vmax.f32 %v2148, 0.0
        %v2181 = vmax.f32 %v2149, 0.0
        %v2182 = vmax.f32 %v2150, 0.0
        %2183 = vst.msk [vmem:[#allocation2 + $0x1] sm:$0xff] %vm226, %v2153
        %2184 = vst.msk [vmem:[#allocation2 + $0x9] sm:$0xff] %vm226, %v2154
        %2185 = vst.msk [vmem:[%s259 + $0x1] sm:$0xff] %vm226, %v2151
        %2186 = vst.msk [vmem:[%s259 + $0x9] sm:$0xff] %vm226, %v2152
        %2187 = vst.msk [vmem:[%s259 + $0x19] sm:$0xff] %vm226, %v2153
        %2188 = vst.msk [vmem:[%s259 + $0x21] sm:$0xff] %vm226, %v2154
        %2189 = vst.msk [vmem:[%s259 + $0x31] sm:$0xff] %vm226, %v2155
        %2190 = vst.msk [vmem:[%s259 + $0x39] sm:$0xff] %vm226, %v2156
        %2191 = vst.msk [vmem:[%s259 + $0x49] sm:$0xff] %vm226, %v2157
        %2192 = vst.msk [vmem:[%s259 + $0x51] sm:$0xff] %vm226, %v2158
        %2193 = vst.msk [vmem:[%s259 + $0x61] sm:$0xff] %vm226, %v2159
        %2194 = vst.msk [vmem:[%s259 + $0x69] sm:$0xff] %vm226, %v2160
        %2195 = vst.msk [vmem:[%s259 + $0x79] sm:$0xff] %vm226, %v2161
        %2196 = vst.msk [vmem:[%s259 + $0x81] sm:$0xff] %vm226, %v2162
        %2197 = vst.msk [vmem:[%s259 + $0x91] sm:$0xff] %vm226, %v2163
        %2198 = vst.msk [vmem:[%s259 + $0x99] sm:$0xff] %vm226, %v2164
        %2199 = vst.msk [vmem:[%s259 + $0xa9] sm:$0xff] %vm226, %v2165
        %2200 = vst.msk [vmem:[%s259 + $0xb1] sm:$0xff] %vm226, %v2166
        %2201 = vst.msk [vmem:[%s259 + $0xc1] sm:$0xff] %vm226, %v2167
        %2202 = vst.msk [vmem:[%s259 + $0xc9] sm:$0xff] %vm226, %v2168
        %2203 = vst.msk [vmem:[%s259 + $0xd9] sm:$0xff] %vm226, %v2169
        %2204 = vst.msk [vmem:[%s259 + $0xe1] sm:$0xff] %vm226, %v2170
        %2205 = vst.msk [vmem:[%s259 + $0xf1] sm:$0xff] %vm226, %v2171
        %2206 = vst.msk [vmem:[%s259 + $0xf9] sm:$0xff] %vm226, %v2172
        %2207 = vst.msk [vmem:[%s259 + $0x109] sm:$0xff] %vm226, %v2173
        %2208 = vst.msk [vmem:[%s259 + $0x111] sm:$0xff] %vm226, %v2174
        %2209 = vst.msk [vmem:[%s259 + $0x121] sm:$0xff] %vm226, %v2175
        %2210 = vst.msk [vmem:[%s259 + $0x129] sm:$0xff] %vm226, %v2176
        %2211 = vst.msk [vmem:[%s259 + $0x139] sm:$0xff] %vm226, %v2177
        %2212 = vst.msk [vmem:[%s259 + $0x141] sm:$0xff] %vm226, %v2178
        %2213 = vst.msk [vmem:[%s259 + $0x151] sm:$0xff] %vm226, %v2179
        %2214 = vst.msk [vmem:[%s259 + $0x159] sm:$0xff] %vm226, %v2180
        %2247 = vrot.lane.b32.xlu0 %v2151, 32
        %v2248 = vpop.permute.xlu0 %2247
        %2249 = vrot.lane.b32.xlu0 %v2152, 32
        %v2250 = vpop.permute.xlu0 %2249
        %2251 = vrot.lane.b32.xlu0 %v2153, 32
        %v2252 = vpop.permute.xlu0 %2251
        %2253 = vrot.lane.b32.xlu0 %v2154, 32
        %v2254 = vpop.permute.xlu0 %2253
        %2255 = vrot.lane.b32.xlu0 %v2155, 32
        %v2256 = vpop.permute.xlu0 %2255
        %2257 = vrot.lane.b32.xlu0 %v2156, 32
        %v2258 = vpop.permute.xlu0 %2257
        %2259 = vrot.lane.b32.xlu0 %v2157, 32
        %v2260 = vpop.permute.xlu0 %2259
        %2261 = vrot.lane.b32.xlu0 %v2158, 32
        %v2262 = vpop.permute.xlu0 %2261
        %2263 = vrot.lane.b32.xlu0 %v2159, 32
        %v2264 = vpop.permute.xlu0 %2263
        %2265 = vrot.lane.b32.xlu0 %v2160, 32
        %v2266 = vpop.permute.xlu0 %2265
        %2267 = vrot.lane.b32.xlu0 %v2161, 32
        %v2268 = vpop.permute.xlu0 %2267
        %2269 = vrot.lane.b32.xlu0 %v2162, 32
        %v2270 = vpop.permute.xlu0 %2269
        %2271 = vrot.lane.b32.xlu0 %v2163, 32
        %v2272 = vpop.permute.xlu0 %2271
        %2273 = vrot.lane.b32.xlu0 %v2164, 32
        %v2274 = vpop.permute.xlu0 %2273
        %2275 = vrot.lane.b32.xlu0 %v2165, 32
        %v2276 = vpop.permute.xlu0 %2275
        %2277 = vrot.lane.b32.xlu0 %v2166, 32
        %v2278 = vpop.permute.xlu0 %2277
        %2279 = vrot.lane.b32.xlu0 %v2167, 32
        %v2280 = vpop.permute.xlu0 %2279
        %2281 = vrot.lane.b32.xlu0 %v2168, 32
        %v2282 = vpop.permute.xlu0 %2281
        %2283 = vrot.lane.b32.xlu0 %v2169, 32
        %v2284 = vpop.permute.xlu0 %2283
        %2285 = vrot.lane.b32.xlu0 %v2170, 32
        %v2286 = vpop.permute.xlu0 %2285
        %2287 = vrot.lane.b32.xlu0 %v2171, 32
        %v2288 = vpop.permute.xlu0 %2287
        %2289 = vrot.lane.b32.xlu0 %v2172, 32
        %v2290 = vpop.permute.xlu0 %2289
        %2291 = vrot.lane.b32.xlu0 %v2173, 32
        %v2292 = vpop.permute.xlu0 %2291
        %2293 = vrot.lane.b32.xlu0 %v2174, 32
        %v2294 = vpop.permute.xlu0 %2293
        %2295 = vrot.lane.b32.xlu0 %v2175, 32
        %v2296 = vpop.permute.xlu0 %2295
        %2297 = vrot.lane.b32.xlu0 %v2176, 32
        %v2298 = vpop.permute.xlu0 %2297
        %2299 = vrot.lane.b32.xlu0 %v2177, 32
        %v2300 = vpop.permute.xlu0 %2299
        %2301 = vrot.lane.b32.xlu0 %v2178, 32
        %v2302 = vpop.permute.xlu0 %2301
        %2303 = vrot.lane.b32.xlu0 %v2179, 32
        %v2304 = vpop.permute.xlu0 %2303
        %2305 = vrot.lane.b32.xlu0 %v2180, 32
        %v2306 = vpop.permute.xlu0 %2305
        %2307 = vrot.lane.b32.xlu0 %v2181, 32
        %v2308 = vpop.permute.xlu0 %2307
        %2309 = vrot.lane.b32.xlu0 %v2182, 32
        %v2310 = vpop.permute.xlu0 %2309
        %2343 = vst.msk [vmem:[#allocation2 + $0x1] sm:$0xff] %vm450, %v2248
        %2344 = vst.msk [vmem:[#allocation2 + $0x9] sm:$0xff] %vm450, %v2250
        %2345 = vst.msk [vmem:[#allocation2 + $0x19] sm:$0xff] %vm450, %v2252
        %2346 = vst.msk [vmem:[#allocation2 + $0x21] sm:$0xff] %vm450, %v2254
        %2347 = vst.msk [vmem:[#allocation2 + $0x31] sm:$0xff] %vm450, %v2256
        %2348 = vst.msk [vmem:[#allocation2 + $0x39] sm:$0xff] %vm450, %v2258
        %2349 = vst.msk [vmem:[#allocation2 + $0x49] sm:$0xff] %vm450, %v2260
        %2350 = vst.msk [vmem:[#allocation2 + $0x51] sm:$0xff] %vm450, %v2262
        %2351 = vst.msk [vmem:[#allocation2 + $0x61] sm:$0xff] %vm450, %v2264
        %2352 = vst.msk [vmem:[#allocation2 + $0x69] sm:$0xff] %vm450, %v2266
        %2353 = vst.msk [vmem:[#allocation2 + $0x79] sm:$0xff] %vm450, %v2268
        %2354 = vst.msk [vmem:[#allocation2 + $0x81] sm:$0xff] %vm450, %v2270
        %2355 = vst.msk [vmem:[#allocation2 + $0x91] sm:$0xff] %vm450, %v2272
        %2356 = vst.msk [vmem:[#allocation2 + $0x99] sm:$0xff] %vm450, %v2274
        %2357 = vst.msk [vmem:[#allocation2 + $0xa9] sm:$0xff] %vm450, %v2276
        %2358 = vst.msk [vmem:[#allocation2 + $0xb1] sm:$0xff] %vm450, %v2278
        %2359 = vst.msk [vmem:[#allocation2 + $0xc1] sm:$0xff] %vm450, %v2280
        %2360 = vst.msk [vmem:[#allocation2 + $0xc9] sm:$0xff] %vm450, %v2282
        %2361 = vst.msk [vmem:[#allocation2 + $0xd9] sm:$0xff] %vm450, %v2284
        %2362 = vst.msk [vmem:[#allocation2 + $0xe1] sm:$0xff] %vm450, %v2286
        %2363 = vst.msk [vmem:[#allocation2 + $0xf1] sm:$0xff] %vm450, %v2288
        %2364 = vst.msk [vmem:[#allocation2 + $0xf9] sm:$0xff] %vm450, %v2290
        %2365 = vst.msk [vmem:[#allocation2 + $0x109] sm:$0xff] %vm450, %v2292
        %2366 = vst.msk [vmem:[#allocation2 + $0x111] sm:$0xff] %vm450, %v2294
        %2367 = vst.msk [vmem:[#allocation2 + $0x121] sm:$0xff] %vm450, %v2296
        %2368 = vst.msk [vmem:[#allocation2 + $0x129] sm:$0xff] %vm450, %v2298
        %2369 = vst.msk [vmem:[#allocation2 + $0x139] sm:$0xff] %vm450, %v2300
        %2370 = vst.msk [vmem:[#allocation2 + $0x141] sm:$0xff] %vm450, %v2302
        %2371 = vst.msk [vmem:[#allocation2 + $0x151] sm:$0xff] %vm450, %v2304
        %2372 = vst.msk [vmem:[#allocation2 + $0x159] sm:$0xff] %vm450, %v2306
        %2373 = vst.msk [vmem:[#allocation2 + $0x169] sm:$0xff] %vm450, %v2308
        %2374 = vst.msk [vmem:[#allocation2 + $0x171] sm:$0xff] %vm450, %v2310
        %2375 = vrot.lane.b32.xlu0 %v2153, 64
        %v2376 = vpop.permute.xlu0 %2375
        %2377 = vrot.lane.b32.xlu0 %v2154, 64
        %v2378 = vpop.permute.xlu0 %2377
        %2379 = vrot.lane.b32.xlu0 %v2155, 64
        %v2380 = vpop.permute.xlu0 %2379
        %2381 = vrot.lane.b32.xlu0 %v2156, 64
        %v2382 = vpop.permute.xlu0 %2381
        %2383 = vrot.lane.b32.xlu0 %v2157, 64
        %v2384 = vpop.permute.xlu0 %2383
        %2385 = vrot.lane.b32.xlu0 %v2158, 64
        %v2386 = vpop.permute.xlu0 %2385
        %2387 = vrot.lane.b32.xlu0 %v2159, 64
        %v2388 = vpop.permute.xlu0 %2387
        %2389 = vrot.lane.b32.xlu0 %v2160, 64
        %v2390 = vpop.permute.xlu0 %2389
        %2391 = vrot.lane.b32.xlu0 %v2161, 64
        %v2392 = vpop.permute.xlu0 %2391
        %2393 = vrot.lane.b32.xlu0 %v2162, 64
        %v2394 = vpop.permute.xlu0 %2393
        %2395 = vrot.lane.b32.xlu0 %v2163, 64
        %v2396 = vpop.permute.xlu0 %2395
        %2397 = vrot.lane.b32.xlu0 %v2164, 64
        %v2398 = vpop.permute.xlu0 %2397
        %2399 = vrot.lane.b32.xlu0 %v2165, 64
        %v2400 = vpop.permute.xlu0 %2399
        %2401 = vrot.lane.b32.xlu0 %v2166, 64
        %v2402 = vpop.permute.xlu0 %2401
        %2403 = vrot.lane.b32.xlu0 %v2167, 64
        %v2404 = vpop.permute.xlu0 %2403
        %2405 = vrot.lane.b32.xlu0 %v2168, 64
        %v2406 = vpop.permute.xlu0 %2405
        %2407 = vrot.lane.b32.xlu0 %v2169, 64
        %v2408 = vpop.permute.xlu0 %2407
        %2409 = vrot.lane.b32.xlu0 %v2170, 64
        %v2410 = vpop.permute.xlu0 %2409
        %2411 = vrot.lane.b32.xlu0 %v2171, 64
        %v2412 = vpop.permute.xlu0 %2411
        %2413 = vrot.lane.b32.xlu0 %v2172, 64
        %v2414 = vpop.permute.xlu0 %2413
        %2415 = vrot.lane.b32.xlu0 %v2173, 64
        %v2416 = vpop.permute.xlu0 %2415
        %2417 = vrot.lane.b32.xlu0 %v2174, 64
        %v2418 = vpop.permute.xlu0 %2417
        %2419 = vrot.lane.b32.xlu0 %v2175, 64
        %v2420 = vpop.permute.xlu0 %2419
        %2421 = vrot.lane.b32.xlu0 %v2176, 64
        %v2422 = vpop.permute.xlu0 %2421
        %2423 = vrot.lane.b32.xlu0 %v2177, 64
        %v2424 = vpop.permute.xlu0 %2423
        %2425 = vrot.lane.b32.xlu0 %v2178, 64
        %v2426 = vpop.permute.xlu0 %2425
        %2427 = vrot.lane.b32.xlu0 %v2179, 64
        %v2428 = vpop.permute.xlu0 %2427
        %2429 = vrot.lane.b32.xlu0 %v2180, 64
        %v2430 = vpop.permute.xlu0 %2429
        %2431 = vrot.lane.b32.xlu0 %v2181, 64
        %v2432 = vpop.permute.xlu0 %2431
        %2433 = vrot.lane.b32.xlu0 %v2182, 64
        %v2434 = vpop.permute.xlu0 %2433
        %2465 = vst.msk [vmem:[#allocation2 + $0x1] sm:$0xff] %vm633, %v2376
        %2466 = vst.msk [vmem:[#allocation2 + $0x9] sm:$0xff] %vm633, %v2378
        %2467 = vst.msk [vmem:[#allocation2 + $0x19] sm:$0xff] %vm633, %v2380
        %2468 = vst.msk [vmem:[#allocation2 + $0x21] sm:$0xff] %vm633, %v2382
        %2469 = vst.msk [vmem:[#allocation2 + $0x31] sm:$0xff] %vm633, %v2384
        %2470 = vst.msk [vmem:[#allocation2 + $0x39] sm:$0xff] %vm633, %v2386
        %2471 = vst.msk [vmem:[#allocation2 + $0x49] sm:$0xff] %vm633, %v2388
        %2472 = vst.msk [vmem:[#allocation2 + $0x51] sm:$0xff] %vm633, %v2390
        %2473 = vst.msk [vmem:[#allocation2 + $0x61] sm:$0xff] %vm633, %v2392
        %2474 = vst.msk [vmem:[#allocation2 + $0x69] sm:$0xff] %vm633, %v2394
        %2475 = vst.msk [vmem:[#allocation2 + $0x79] sm:$0xff] %vm633, %v2396
        %2476 = vst.msk [vmem:[#allocation2 + $0x81] sm:$0xff] %vm633, %v2398
        %2477 = vst.msk [vmem:[#allocation2 + $0x91] sm:$0xff] %vm633, %v2400
        %2478 = vst.msk [vmem:[#allocation2 + $0x99] sm:$0xff] %vm633, %v2402
        %2479 = vst.msk [vmem:[#allocation2 + $0xa9] sm:$0xff] %vm633, %v2404
        %2480 = vst.msk [vmem:[#allocation2 + $0xb1] sm:$0xff] %vm633, %v2406
        %2481 = vst.msk [vmem:[#allocation2 + $0xc1] sm:$0xff] %vm633, %v2408
        %2482 = vst.msk [vmem:[#allocation2 + $0xc9] sm:$0xff] %vm633, %v2410
        %2483 = vst.msk [vmem:[#allocation2 + $0xd9] sm:$0xff] %vm633, %v2412
        %2484 = vst.msk [vmem:[#allocation2 + $0xe1] sm:$0xff] %vm633, %v2414
        %2485 = vst.msk [vmem:[#allocation2 + $0xf1] sm:$0xff] %vm633, %v2416
        %2486 = vst.msk [vmem:[#allocation2 + $0xf9] sm:$0xff] %vm633, %v2418
        %2487 = vst.msk [vmem:[#allocation2 + $0x109] sm:$0xff] %vm633, %v2420
        %2488 = vst.msk [vmem:[#allocation2 + $0x111] sm:$0xff] %vm633, %v2422
        %2489 = vst.msk [vmem:[#allocation2 + $0x121] sm:$0xff] %vm633, %v2424
        %2490 = vst.msk [vmem:[#allocation2 + $0x129] sm:$0xff] %vm633, %v2426
        %2491 = vst.msk [vmem:[#allocation2 + $0x139] sm:$0xff] %vm633, %v2428
        %2492 = vst.msk [vmem:[#allocation2 + $0x141] sm:$0xff] %vm633, %v2430
        %2493 = vst.msk [vmem:[#allocation2 + $0x151] sm:$0xff] %vm633, %v2432
        %2494 = vst.msk [vmem:[#allocation2 + $0x159] sm:$0xff] %vm633, %v2434
        %2495 = vst.msk [vmem:[%s675 + $0x1] sm:$0xff] %vm633, %v2428
        %2496 = vst.msk [vmem:[%s675 + $0x9] sm:$0xff] %vm633, %v2430
        %v2497 = vld [vmem:[#allocation2 + $0x2] sm:$0x1]
        %v2498 = vld [vmem:[#allocation2 + $0x1a] sm:$0x1]
        %v2499 = vld [vmem:[#allocation2 + $0x32] sm:$0x1]
        %v2500 = vld [vmem:[#allocation2 + $0x4a] sm:$0x1]
        %v2501 = vld [vmem:[#allocation2 + $0x62] sm:$0x1]
        %v2502 = vld [vmem:[#allocation2 + $0x7a] sm:$0x1]
        %v2503 = vld [vmem:[#allocation2 + $0x92] sm:$0x1]
        %v2504 = vld [vmem:[#allocation2 + $0xaa] sm:$0x1]
        %v2505 = vld [vmem:[#allocation2 + $0xc2] sm:$0x1]
        %v2506 = vld [vmem:[#allocation2 + $0xda] sm:$0x1]
        %v2507 = vld [vmem:[#allocation2 + $0xf2] sm:$0x1]
        %v2508 = vld [vmem:[#allocation2 + $0x10a] sm:$0x1]
        %v2509 = vld [vmem:[#allocation2 + $0x122] sm:$0x1]
        %v2510 = vld [vmem:[#allocation2 + $0x13a] sm:$0x1]
        %v2511 = vld [vmem:[#allocation2 + $0x152] sm:$0x1]
        %v2512 = vld [vmem:[#allocation2 + $0x16a] sm:$0x1]
        %2513 = vst.msk [vmem:[#allocation2] sm:$0x1] %vm694, %v2497
        %2514 = vst.msk [vmem:[#allocation2 + $0x18] sm:$0x1] %vm694, %v2498
        %2515 = vst.msk [vmem:[#allocation2 + $0x30] sm:$0x1] %vm694, %v2499
        %2516 = vst.msk [vmem:[#allocation2 + $0x48] sm:$0x1] %vm694, %v2500
        %2517 = vst.msk [vmem:[#allocation2 + $0x60] sm:$0x1] %vm694, %v2501
        %2518 = vst.msk [vmem:[#allocation2 + $0x78] sm:$0x1] %vm694, %v2502
        %2519 = vst.msk [vmem:[#allocation2 + $0x90] sm:$0x1] %vm694, %v2503
        %2520 = vst.msk [vmem:[#allocation2 + $0xa8] sm:$0x1] %vm694, %v2504
        %2521 = vst.msk [vmem:[#allocation2 + $0xc0] sm:$0x1] %vm694, %v2505
        %2522 = vst.msk [vmem:[#allocation2 + $0xd8] sm:$0x1] %vm694, %v2506
        %2523 = vst.msk [vmem:[#allocation2 + $0xf0] sm:$0x1] %vm694, %v2507
        %2524 = vst.msk [vmem:[#allocation2 + $0x108] sm:$0x1] %vm694, %v2508
        %2525 = vst.msk [vmem:[#allocation2 + $0x120] sm:$0x1] %vm694, %v2509
        %2526 = vst.msk [vmem:[#allocation2 + $0x138] sm:$0x1] %vm694, %v2510
        %2527 = vst.msk [vmem:[#allocation2 + $0x150] sm:$0x1] %vm694, %v2511
        %2528 = vst.msk [vmem:[#allocation2 + $0x168] sm:$0x1] %vm694, %v2512
        %v2529 = vld [vmem:[#allocation2 + $0xf] sm:$0x1]
        %v2530 = vld [vmem:[#allocation2 + $0x27] sm:$0x1]
        %v2531 = vld [vmem:[#allocation2 + $0x3f] sm:$0x1]
        %v2532 = vld [vmem:[#allocation2 + $0x57] sm:$0x1]
        %v2533 = vld [vmem:[#allocation2 + $0x6f] sm:$0x1]
        %v2534 = vld [vmem:[#allocation2 + $0x87] sm:$0x1]
        %v2535 = vld [vmem:[#allocation2 + $0x9f] sm:$0x1]
        %v2536 = vld [vmem:[#allocation2 + $0xb7] sm:$0x1]
        %v2537 = vld [vmem:[#allocation2 + $0xcf] sm:$0x1]
        %v2538 = vld [vmem:[#allocation2 + $0xe7] sm:$0x1]
        %v2539 = vld [vmem:[#allocation2 + $0xff] sm:$0x1]
        %v2540 = vld [vmem:[#allocation2 + $0x117] sm:$0x1]
        %v2541 = vld [vmem:[#allocation2 + $0x12f] sm:$0x1]
        %v2542 = vld [vmem:[#allocation2 + $0x147] sm:$0x1]
        %v2543 = vld [vmem:[#allocation2 + $0x15f] sm:$0x1]
        %v2544 = vld [vmem:[#allocation2 + $0x177] sm:$0x1]
        %2545 = vst.msk [vmem:[#allocation2 + $0x11] sm:$0x1] %vm694, %v2529
        %2546 = vst.msk [vmem:[#allocation2 + $0x29] sm:$0x1] %vm694, %v2530
        %2547 = vst.msk [vmem:[#allocation2 + $0x41] sm:$0x1] %vm694, %v2531
        %2548 = vst.msk [vmem:[#allocation2 + $0x59] sm:$0x1] %vm694, %v2532
        %2549 = vst.msk [vmem:[#allocation2 + $0x71] sm:$0x1] %vm694, %v2533
        %2550 = vst.msk [vmem:[#allocation2 + $0x89] sm:$0x1] %vm694, %v2534
        %2551 = vst.msk [vmem:[#allocation2 + $0xa1] sm:$0x1] %vm694, %v2535
        %2552 = vst.msk [vmem:[#allocation2 + $0xb9] sm:$0x1] %vm694, %v2536
        %2553 = vst.msk [vmem:[#allocation2 + $0xd1] sm:$0x1] %vm694, %v2537
        %2554 = vst.msk [vmem:[#allocation2 + $0xe9] sm:$0x1] %vm694, %v2538
        %2555 = vst.msk [vmem:[#allocation2 + $0x101] sm:$0x1] %vm694, %v2539
        %2556 = vst.msk [vmem:[#allocation2 + $0x119] sm:$0x1] %vm694, %v2540
        %2557 = vst.msk [vmem:[#allocation2 + $0x131] sm:$0x1] %vm694, %v2541
        %2558 = vst.msk [vmem:[#allocation2 + $0x149] sm:$0x1] %vm694, %v2542
        %2559 = vst.msk [vmem:[#allocation2 + $0x161] sm:$0x1] %vm694, %v2543
        %2560 = vst.msk [vmem:[#allocation2 + $0x179] sm:$0x1] %vm694, %v2544
        %v2561 = vld [vmem:[#allocation2] sm:$0xff]
        %v2562 = vld [vmem:[#allocation2 + $0x8] sm:$0xff]
        %v2563 = vld [vmem:[#allocation2 + $0x18] sm:$0xff]
        %v2564 = vld [vmem:[#allocation2 + $0x20] sm:$0xff]
        %v2565 = vld [vmem:[#allocation2 + $0x30] sm:$0xff]
        %v2566 = vld [vmem:[#allocation2 + $0x38] sm:$0xff]
        %v2567 = vld [vmem:[#allocation2 + $0x48] sm:$0xff]
        %v2568 = vld [vmem:[#allocation2 + $0x50] sm:$0xff]
        %v2569 = vld [vmem:[#allocation2 + $0x60] sm:$0xff]
        %v2570 = vld [vmem:[#allocation2 + $0x68] sm:$0xff]
        %v2571 = vld [vmem:[#allocation2 + $0x78] sm:$0xff]
        %v2572 = vld [vmem:[#allocation2 + $0x80] sm:$0xff]
        %v2573 = vld [vmem:[#allocation2 + $0x90] sm:$0xff]
        %v2574 = vld [vmem:[#allocation2 + $0x98] sm:$0xff]
        %v2575 = vld [vmem:[#allocation2 + $0xa8] sm:$0xff]
        %v2576 = vld [vmem:[#allocation2 + $0xb0] sm:$0xff]
        %v2577 = vld [vmem:[#allocation2 + $0xc0] sm:$0xff]
        %v2578 = vld [vmem:[#allocation2 + $0xc8] sm:$0xff]
        %v2579 = vld [vmem:[#allocation2 + $0xd8] sm:$0xff]
        %v2580 = vld [vmem:[#allocation2 + $0xe0] sm:$0xff]
        %v2581 = vld [vmem:[#allocation2 + $0xf0] sm:$0xff]
        %v2582 = vld [vmem:[#allocation2 + $0xf8] sm:$0xff]
        %v2583 = vld [vmem:[#allocation2 + $0x108] sm:$0xff]
        %v2584 = vld [vmem:[#allocation2 + $0x110] sm:$0xff]
        %v2585 = vld [vmem:[#allocation2 + $0x120] sm:$0xff]
        %v2586 = vld [vmem:[#allocation2 + $0x128] sm:$0xff]
        %v2587 = vld [vmem:[#allocation2 + $0x138] sm:$0xff]
        %v2588 = vld [vmem:[#allocation2 + $0x140] sm:$0xff]
        %v2589 = vld [vmem:[#allocation2 + $0x150] sm:$0xff]
        %v2590 = vld [vmem:[#allocation2 + $0x158] sm:$0xff]
        %v2591 = vld [vmem:[#allocation2 + $0x168] sm:$0xff]
        %v2592 = vld [vmem:[#allocation2 + $0x170] sm:$0xff]
        %v2593 = vld [vmem:[%s3] sm:$0xff]
        %v2594 = vld [vmem:[%s3 + $0x8] sm:$0xff]
        %v2595 = vld [vmem:[%s3 + $0x10] sm:$0xff]
        %v2596 = vld [vmem:[%s3 + $0x18] sm:$0xff]
        %v2597 = vld [vmem:[%s3 + $0x20] sm:$0xff]
        %v2598 = vld [vmem:[%s3 + $0x28] sm:$0xff]
        %v2599 = vld [vmem:[%s3 + $0x30] sm:$0xff]
        %v2600 = vld [vmem:[%s3 + $0x38] sm:$0xff]
        %v2601 = vld [vmem:[%s3 + $0x40] sm:$0xff]
        %v2602 = vld [vmem:[%s3 + $0x48] sm:$0xff]
        %v2603 = vld [vmem:[%s3 + $0x50] sm:$0xff]
        %v2604 = vld [vmem:[%s3 + $0x58] sm:$0xff]
        %v2605 = vld [vmem:[#allocation2 + $0x1] sm:$0xff]
        %v2606 = vld [vmem:[#allocation2 + $0x9] sm:$0xff]
        %v2607 = vld [vmem:[#allocation2 + $0x19] sm:$0xff]
        %v2608 = vld [vmem:[#allocation2 + $0x21] sm:$0xff]
        %v2609 = vld [vmem:[#allocation2 + $0x31] sm:$0xff]
        %v2610 = vld [vmem:[#allocation2 + $0x39] sm:$0xff]
        %v2611 = vld [vmem:[#allocation2 + $0x49] sm:$0xff]
        %v2612 = vld [vmem:[#allocation2 + $0x51] sm:$0xff]
        %v2613 = vld [vmem:[#allocation2 + $0x61] sm:$0xff]
        %v2614 = vld [vmem:[#allocation2 + $0x69] sm:$0xff]
        %v2615 = vld [vmem:[#allocation2 + $0x79] sm:$0xff]
        %v2616 = vld [vmem:[#allocation2 + $0x81] sm:$0xff]
        %v2617 = vld [vmem:[#allocation2 + $0x91] sm:$0xff]
        %v2618 = vld [vmem:[#allocation2 + $0x99] sm:$0xff]
        %v2619 = vld [vmem:[#allocation2 + $0xa9] sm:$0xff]
        %v2620 = vld [vmem:[#allocation2 + $0xb1] sm:$0xff]
        %v2621 = vld [vmem:[#allocation2 + $0xc1] sm:$0xff]
        %v2622 = vld [vmem:[#allocation2 + $0xc9] sm:$0xff]
        %v2623 = vld [vmem:[#allocation2 + $0xd9] sm:$0xff]
        %v2624 = vld [vmem:[#allocation2 + $0xe1] sm:$0xff]
        %v2625 = vld [vmem:[#allocation2 + $0xf1] sm:$0xff]
        %v2626 = vld [vmem:[#allocation2 + $0xf9] sm:$0xff]
        %v2627 = vld [vmem:[#allocation2 + $0x109] sm:$0xff]
        %v2628 = vld [vmem:[#allocation2 + $0x111] sm:$0xff]
        %v2629 = vld [vmem:[#allocation2 + $0x121] sm:$0xff]
        %v2630 = vld [vmem:[#allocation2 + $0x129] sm:$0xff]
        %v2631 = vld [vmem:[#allocation2 + $0x139] sm:$0xff]
        %v2632 = vld [vmem:[#allocation2 + $0x141] sm:$0xff]
        %v2633 = vld [vmem:[#allocation2 + $0x151] sm:$0xff]
        %v2634 = vld [vmem:[#allocation2 + $0x159] sm:$0xff]
        %v2635 = vld [vmem:[#allocation2 + $0x169] sm:$0xff]
        %v2636 = vld [vmem:[#allocation2 + $0x171] sm:$0xff]
        %s2637 = scalar_lea.vmem %s3, 96
        %v2638 = vld [vmem:[%s2637] sm:$0xff]
        %v2639 = vld [vmem:[%s2637 + $0x8] sm:$0xff]
        %v2640 = vld [vmem:[%s2637 + $0x10] sm:$0xff]
        %v2641 = vld [vmem:[%s2637 + $0x18] sm:$0xff]
        %v2642 = vld [vmem:[%s2637 + $0x20] sm:$0xff]
        %v2643 = vld [vmem:[%s2637 + $0x28] sm:$0xff]
        %v2644 = vld [vmem:[%s2637 + $0x30] sm:$0xff]
        %v2645 = vld [vmem:[%s2637 + $0x38] sm:$0xff]
        %v2646 = vld [vmem:[%s2637 + $0x40] sm:$0xff]
        %v2647 = vld [vmem:[%s2637 + $0x48] sm:$0xff]
        %v2648 = vld [vmem:[%s2637 + $0x50] sm:$0xff]
        %v2649 = vld [vmem:[%s2637 + $0x58] sm:$0xff]
        %v2651 = vsel %vm832, %v2605, 0
        %v2654 = vsel %vm832, %v2606, 0
        %v2657 = vsel %vm832, %v2607, 0
        %v2660 = vsel %vm832, %v2608, 0
        %v2663 = vsel %vm832, %v2609, 0
        %v2666 = vsel %vm832, %v2610, 0
        %v2669 = vsel %vm832, %v2611, 0
        %v2672 = vsel %vm832, %v2612, 0
        %v2675 = vsel %vm832, %v2613, 0
        %v2678 = vsel %vm832, %v2614, 0
        %v2681 = vsel %vm832, %v2615, 0
        %v2684 = vsel %vm832, %v2616, 0
        %v2687 = vsel %vm832, %v2617, 0
        %v2690 = vsel %vm832, %v2618, 0
        %v2693 = vsel %vm832, %v2619, 0
        %v2696 = vsel %vm832, %v2620, 0
        %v2699 = vsel %vm832, %v2621, 0
        %v2702 = vsel %vm832, %v2622, 0
        %v2705 = vsel %vm832, %v2623, 0
        %v2708 = vsel %vm832, %v2624, 0
        %v2711 = vsel %vm832, %v2625, 0
        %v2714 = vsel %vm832, %v2626, 0
        %v2717 = vsel %vm832, %v2627, 0
        %v2720 = vsel %vm832, %v2628, 0
        %v2723 = vsel %vm832, %v2629, 0
        %v2726 = vsel %vm832, %v2630, 0
        %v2729 = vsel %vm832, %v2631, 0
        %v2732 = vsel %vm832, %v2632, 0
        %v2735 = vsel %vm832, %v2633, 0
        %v2738 = vsel %vm832, %v2634, 0
        %v2741 = vsel %vm832, %v2635, 0
        %v2744 = vsel %vm832, %v2636, 0
        %2746 = vmatprep.subr.mxu0 0.0
        %2747 = vmatpush1.msra.mxu0 %v2638
        %2748 = vmatprep.subr.mxu0 0.0
        %2749 = vmatpush1.msra.mxu0 %v2639
        %2750 = vmatprep.subr.mxu0 0.0
        %2751 = vmatpush1.msra.mxu0 %v2640
        %2752 = vmatprep.subr.mxu0 0.0
        %2753 = vmatpush1.msra.mxu0 %v2641
        %2754 = vmatprep.subr.mxu0 0.0
        %2755 = vmatpush1.msra.mxu0 %v2642
        %2756 = vmatprep.subr.mxu0 0.0
        %2757 = vmatpush1.msra.mxu0 %v2643
        %2758 = vmatprep.subr.mxu0 0.0
        %2759 = vmatpush1.msra.mxu0 %v2644
        %2760 = vmatprep.subr.mxu0 0.0
        %2761 = vmatpush1.msra.mxu0 %v2645
        %2762 = vmatprep.subr.mxu0 0.0
        %2763 = vmatpush1.msra.mxu0 %v2646
        %2764 = vmatprep.subr.mxu0 0.0
        %2765 = vmatpush1.msra.mxu0 %v2647
        %2766 = vmatprep.subr.mxu0 0.0
        %2767 = vmatpush1.msra.mxu0 %v2648
        %2768 = vmatprep.subr.mxu0 0.0
        %2769 = vmatpush1.msra.mxu0 %v2649
        %2770 = vmatprep.subr.mxu0 0.0
        %2771 = vmatpush1.msra.mxu0 0.0
        %2772 = vmatprep.subr.mxu0 0.0
        %2773 = vmatpush1.msra.mxu0 0.0
        %2774 = vmatprep.subr.mxu0 0.0
        %2775 = vmatpush1.msra.mxu0 0.0
        %2776 = vmatprep.subr.mxu0 0.0
        %2777 = vmatpush1.msra.mxu0 0.0
        %2778 = vmatprep.subr.mxu0 0.0
        %2779 = vmatpush1.msra.mxu0 0.0
        %2780 = vmatprep.subr.mxu0 0.0
        %2781 = vmatpush1.msra.mxu0 0.0
        %2782 = vmatprep.subr.mxu0 0.0
        %2783 = vmatpush1.msra.mxu0 0.0
        %2784 = vmatprep.subr.mxu0 0.0
        %2785 = vmatpush1.msra.mxu0 0.0
        %2786 = vmatprep.subr.mxu0 0.0
        %2787 = vmatpush1.msra.mxu0 0.0
        %2788 = vmatprep.subr.mxu0 0.0
        %2789 = vmatpush1.msra.mxu0 0.0
        %2790 = vmatprep.subr.mxu0 0.0
        %2791 = vmatpush1.msra.mxu0 0.0
        %2792 = vmatprep.subr.mxu0 0.0
        %2793 = vmatpush1.msra.mxu0 0.0
        %2794 = vmatprep.subr.mxu0 0.0
        %2795 = vmatpush1.msra.mxu0 0.0
        %2796 = vmatprep.subr.mxu0 0.0
        %2797 = vmatpush1.msra.mxu0 0.0
        %2798 = vmatprep.subr.mxu0 0.0
        %2799 = vmatpush1.msra.mxu0 0.0
        %2800 = vmatprep.subr.mxu0 0.0
        %2801 = vmatpush1.msra.mxu0 0.0
        %2802 = vmatprep.subr.mxu0 0.0
        %2803 = vmatpush1.msra.mxu0 0.0
        %2804 = vmatprep.subr.mxu0 0.0
        %2805 = vmatpush1.msra.mxu0 0.0
        %2806 = vmatprep.subr.mxu0 0.0
        %2807 = vmatpush1.msra.mxu0 0.0
        %2808 = vmatprep.subr.mxu0 0.0
        %2809 = vmatpush1.msra.mxu0 0.0
        %2810 = vmatprep.mubr.f32.mxu0 0.0
        %2811 = vmatmul.mubr.f32.gmra.mrb[0].mxu0 %v2651
        %v2812 = vpop.f32.mrb[0].mxu0
        %v2813 = vadd.f32 0.0, %v2812
        %v2814 = vpop.f32.mrb[0].mxu0
        %2815 = vmatprep.mubr.f32.mxu0 0.0
        %2816 = vmatmul.mubr.f32.gmra.mrb[0].mxu0 %v2654
        %v2817 = vpop.f32.mrb[0].mxu0
        %v2818 = vadd.f32 0.0, %v2817
        %v2819 = vpop.f32.mrb[0].mxu0
        %2820 = vmatprep.mubr.f32.mxu0 0.0
        %2821 = vmatmul.mubr.f32.gmra.mrb[0].mxu0 %v2657
        %v2822 = vpop.f32.mrb[0].mxu0
        %v2823 = vadd.f32 0.0, %v2822
        %v2824 = vpop.f32.mrb[0].mxu0
        %2825 = vmatprep.mubr.f32.mxu0 0.0
        %2826 = vmatmul.mubr.f32.gmra.mrb[0].mxu0 %v2660
        %v2827 = vpop.f32.mrb[0].mxu0
        %v2828 = vadd.f32 0.0, %v2827
        %v2829 = vpop.f32.mrb[0].mxu0
        %2830 = vmatprep.mubr.f32.mxu0 0.0
        %2831 = vmatmul.mubr.f32.gmra.mrb[0].mxu0 %v2663
        %v2832 = vpop.f32.mrb[0].mxu0
        %v2833 = vadd.f32 0.0, %v2832
        %v2834 = vpop.f32.mrb[0].mxu0
        %2835 = vmatprep.mubr.f32.mxu0 0.0
        %2836 = vmatmul.mubr.f32.gmra.mrb[0].mxu0 %v2666
        %v2837 = vpop.f32.mrb[0].mxu0
        %v2838 = vadd.f32 0.0, %v2837
        %v2839 = vpop.f32.mrb[0].mxu0
        %2840 = vmatprep.mubr.f32.mxu0 0.0
        %2841 = vmatmul.mubr.f32.gmra.mrb[0].mxu0 %v2669
        %v2842 = vpop.f32.mrb[0].mxu0
        %v2843 = vadd.f32 0.0, %v2842
        %v2844 = vpop.f32.mrb[0].mxu0
        %2845 = vmatprep.mubr.f32.mxu0 0.0
        %2846 = vmatmul.mubr.f32.gmra.mrb[0].mxu0 %v2672
        %v2847 = vpop.f32.mrb[0].mxu0
        %v2848 = vadd.f32 0.0, %v2847
        %v2849 = vpop.f32.mrb[0].mxu0
        %2850 = vmatprep.mubr.f32.mxu0 0.0
        %2851 = vmatmul.mubr.f32.gmra.mrb[0].mxu0 %v2675
        %v2852 = vpop.f32.mrb[0].mxu0
        %v2853 = vadd.f32 0.0, %v2852
        %v2854 = vpop.f32.mrb[0].mxu0
        %2855 = vmatprep.mubr.f32.mxu0 0.0
        %2856 = vmatmul.mubr.f32.gmra.mrb[0].mxu0 %v2678
        %v2857 = vpop.f32.mrb[0].mxu0
        %v2858 = vadd.f32 0.0, %v2857
        %v2859 = vpop.f32.mrb[0].mxu0
        %2860 = vmatprep.mubr.f32.mxu0 0.0
        %2861 = vmatmul.mubr.f32.gmra.mrb[0].mxu0 %v2681
        %v2862 = vpop.f32.mrb[0].mxu0
        %v2863 = vadd.f32 0.0, %v2862
        %v2864 = vpop.f32.mrb[0].mxu0
        %2865 = vmatprep.mubr.f32.mxu0 0.0
        %2866 = vmatmul.mubr.f32.gmra.mrb[0].mxu0 %v2684
        %v2867 = vpop.f32.mrb[0].mxu0
        %v2868 = vadd.f32 0.0, %v2867
        %v2869 = vpop.f32.mrb[0].mxu0
        %2870 = vmatprep.mubr.f32.mxu0 0.0
        %2871 = vmatmul.mubr.f32.gmra.mrb[0].mxu0 %v2687
        %v2872 = vpop.f32.mrb[0].mxu0
        %v2873 = vadd.f32 0.0, %v2872
        %v2874 = vpop.f32.mrb[0].mxu0
        %2875 = vmatprep.mubr.f32.mxu0 0.0
        %2876 = vmatmul.mubr.f32.gmra.mrb[0].mxu0 %v2690
        %v2877 = vpop.f32.mrb[0].mxu0
        %v2878 = vadd.f32 0.0, %v2877
        %v2879 = vpop.f32.mrb[0].mxu0
        %2880 = vmatprep.mubr.f32.mxu0 0.0
        %2881 = vmatmul.mubr.f32.gmra.mrb[0].mxu0 %v2693
        %v2882 = vpop.f32.mrb[0].mxu0
        %v2883 = vadd.f32 0.0, %v2882
        %v2884 = vpop.f32.mrb[0].mxu0
        %2885 = vmatprep.mubr.f32.mxu0 0.0
        %2886 = vmatmul.mubr.f32.gmra.mrb[0].mxu0 %v2696
        %v2887 = vpop.f32.mrb[0].mxu0
        %v2888 = vadd.f32 0.0, %v2887
        %v2889 = vpop.f32.mrb[0].mxu0
        %2890 = vmatprep.mubr.f32.mxu0 0.0
        %2891 = vmatmul.mubr.f32.gmra.mrb[0].mxu0 %v2699
        %v2892 = vpop.f32.mrb[0].mxu0
        %v2893 = vadd.f32 0.0, %v2892
        %v2894 = vpop.f32.mrb[0].mxu0
        %2895 = vmatprep.mubr.f32.mxu0 0.0
        %2896 = vmatmul.mubr.f32.gmra.mrb[0].mxu0 %v2702
        %v2897 = vpop.f32.mrb[0].mxu0
        %v2898 = vadd.f32 0.0, %v2897
        %v2899 = vpop.f32.mrb[0].mxu0
        %2900 = vmatprep.mubr.f32.mxu0 0.0
        %2901 = vmatmul.mubr.f32.gmra.mrb[0].mxu0 %v2705
        %v2902 = vpop.f32.mrb[0].mxu0
        %v2903 = vadd.f32 0.0, %v2902
        %v2904 = vpop.f32.mrb[0].mxu0
        %2905 = vmatprep.mubr.f32.mxu0 0.0
        %2906 = vmatmul.mubr.f32.gmra.mrb[0].mxu0 %v2708
        %v2907 = vpop.f32.mrb[0].mxu0
        %v2908 = vadd.f32 0.0, %v2907
        %v2909 = vpop.f32.mrb[0].mxu0
        %2910 = vmatprep.mubr.f32.mxu0 0.0
        %2911 = vmatmul.mubr.f32.gmra.mrb[0].mxu0 %v2711
        %v2912 = vpop.f32.mrb[0].mxu0
        %v2913 = vadd.f32 0.0, %v2912
        %v2914 = vpop.f32.mrb[0].mxu0
        %2915 = vmatprep.mubr.f32.mxu0 0.0
        %2916 = vmatmul.mubr.f32.gmra.mrb[0].mxu0 %v2714
        %v2917 = vpop.f32.mrb[0].mxu0
        %v2918 = vadd.f32 0.0, %v2917
        %v2919 = vpop.f32.mrb[0].mxu0
        %2920 = vmatprep.mubr.f32.mxu0 0.0
        %2921 = vmatmul.mubr.f32.gmra.mrb[0].mxu0 %v2717
        %v2922 = vpop.f32.mrb[0].mxu0
        %v2923 = vadd.f32 0.0, %v2922
        %v2924 = vpop.f32.mrb[0].mxu0
        %2925 = vmatprep.mubr.f32.mxu0 0.0
        %2926 = vmatmul.mubr.f32.gmra.mrb[0].mxu0 %v2720
        %v2927 = vpop.f32.mrb[0].mxu0
        %v2928 = vadd.f32 0.0, %v2927
        %v2929 = vpop.f32.mrb[0].mxu0
        %2930 = vmatprep.mubr.f32.mxu0 0.0
        %2931 = vmatmul.mubr.f32.gmra.mrb[0].mxu0 %v2723
        %v2932 = vpop.f32.mrb[0].mxu0
        %v2933 = vadd.f32 0.0, %v2932
        %v2934 = vpop.f32.mrb[0].mxu0
        %2935 = vmatprep.mubr.f32.mxu0 0.0
        %2936 = vmatmul.mubr.f32.gmra.mrb[0].mxu0 %v2726
        %v2937 = vpop.f32.mrb[0].mxu0
        %v2938 = vadd.f32 0.0, %v2937
        %v2939 = vpop.f32.mrb[0].mxu0
        %2940 = vmatprep.mubr.f32.mxu0 0.0
        %2941 = vmatmul.mubr.f32.gmra.mrb[0].mxu0 %v2729
        %v2942 = vpop.f32.mrb[0].mxu0
        %v2943 = vadd.f32 0.0, %v2942
        %v2944 = vpop.f32.mrb[0].mxu0
        %2945 = vmatprep.mubr.f32.mxu0 0.0
        %2946 = vmatmul.mubr.f32.gmra.mrb[0].mxu0 %v2732
        %v2947 = vpop.f32.mrb[0].mxu0
        %v2948 = vadd.f32 0.0, %v2947
        %v2949 = vpop.f32.mrb[0].mxu0
        %2950 = vmatprep.mubr.f32.mxu0 0.0
        %2951 = vmatmul.mubr.f32.gmra.mrb[0].mxu0 %v2735
        %v2952 = vpop.f32.mrb[0].mxu0
        %v2953 = vadd.f32 0.0, %v2952
        %v2954 = vpop.f32.mrb[0].mxu0
        %2955 = vmatprep.mubr.f32.mxu0 0.0
        %2956 = vmatmul.mubr.f32.gmra.mrb[0].mxu0 %v2738
        %v2957 = vpop.f32.mrb[0].mxu0
        %v2958 = vadd.f32 0.0, %v2957
        %v2959 = vpop.f32.mrb[0].mxu0
        %2960 = vmatprep.mubr.f32.mxu0 0.0
        %2961 = vmatmul.mubr.f32.gmra.mrb[0].mxu0 %v2741
        %v2962 = vpop.f32.mrb[0].mxu0
        %v2963 = vadd.f32 0.0, %v2962
        %v2964 = vpop.f32.mrb[0].mxu0
        %2965 = vmatprep.mubr.f32.mxu0 0.0
        %2966 = vmatmul.mubr.f32.gmra.mrb[0].mxu0 %v2744
        %v2967 = vpop.f32.mrb[0].mxu0
        %v2968 = vadd.f32 0.0, %v2967
        %v2969 = vpop.f32.mrb[0].mxu0
        %2970 = vdwg.mxu0
        %v2972 = vsel %vm832, %v2561, 0
        %v2975 = vsel %vm832, %v2562, 0
        %v2978 = vsel %vm832, %v2563, 0
        %v2981 = vsel %vm832, %v2564, 0
        %v2984 = vsel %vm832, %v2565, 0
        %v2987 = vsel %vm832, %v2566, 0
        %v2990 = vsel %vm832, %v2567, 0
        %v2993 = vsel %vm832, %v2568, 0
        %v2996 = vsel %vm832, %v2569, 0
        %v2999 = vsel %vm832, %v2570, 0
        %v3002 = vsel %vm832, %v2571, 0
        %v3005 = vsel %vm832, %v2572, 0
        %v3008 = vsel %vm832, %v2573, 0
        %v3011 = vsel %vm832, %v2574, 0
        %v3014 = vsel %vm832, %v2575, 0
        %v3017 = vsel %vm832, %v2576, 0
        %v3020 = vsel %vm832, %v2577, 0
        %v3023 = vsel %vm832, %v2578, 0
        %v3026 = vsel %vm832, %v2579, 0
        %v3029 = vsel %vm832, %v2580, 0
        %v3032 = vsel %vm832, %v2581, 0
        %v3035 = vsel %vm832, %v2582, 0
        %v3038 = vsel %vm832, %v2583, 0
        %v3041 = vsel %vm832, %v2584, 0
        %v3044 = vsel %vm832, %v2585, 0
        %v3047 = vsel %vm832, %v2586, 0
        %v3050 = vsel %vm832, %v2587, 0
        %v3053 = vsel %vm832, %v2588, 0
        %v3056 = vsel %vm832, %v2589, 0
        %v3059 = vsel %vm832, %v2590, 0
        %v3062 = vsel %vm832, %v2591, 0
        %v3065 = vsel %vm832, %v2592, 0
        %3067 = vmatprep.subr.mxu0 0.0
        %3068 = vmatpush1.msra.mxu0 %v2593
        %3069 = vmatprep.subr.mxu0 0.0
        %3070 = vmatpush1.msra.mxu0 %v2594
        %3071 = vmatprep.subr.mxu0 0.0
        %3072 = vmatpush1.msra.mxu0 %v2595
        %3073 = vmatprep.subr.mxu0 0.0
        %3074 = vmatpush1.msra.mxu0 %v2596
        %3075 = vmatprep.subr.mxu0 0.0
        %3076 = vmatpush1.msra.mxu0 %v2597
        %3077 = vmatprep.subr.mxu0 0.0
        %3078 = vmatpush1.msra.mxu0 %v2598
        %3079 = vmatprep.subr.mxu0 0.0
        %3080 = vmatpush1.msra.mxu0 %v2599
        %3081 = vmatprep.subr.mxu0 0.0
        %3082 = vmatpush1.msra.mxu0 %v2600
        %3083 = vmatprep.subr.mxu0 0.0
        %3084 = vmatpush1.msra.mxu0 %v2601
        %3085 = vmatprep.subr.mxu0 0.0
        %3086 = vmatpush1.msra.mxu0 %v2602
        %3087 = vmatprep.subr.mxu0 0.0
        %3088 = vmatpush1.msra.mxu0 %v2603
        %3089 = vmatprep.subr.mxu0 0.0
        %3090 = vmatpush1.msra.mxu0 %v2604
        %3091 = vmatprep.subr.mxu0 0.0
        %3092 = vmatpush1.msra.mxu0 0.0
        %3093 = vmatprep.subr.mxu0 0.0
        %3094 = vmatpush1.msra.mxu0 0.0
        %3095 = vmatprep.subr.mxu0 0.0
        %3096 = vmatpush1.msra.mxu0 0.0
        %3097 = vmatprep.subr.mxu0 0.0
        %3098 = vmatpush1.msra.mxu0 0.0
        %3099 = vmatprep.subr.mxu0 0.0
        %3100 = vmatpush1.msra.mxu0 0.0
        %3101 = vmatprep.subr.mxu0 0.0
        %3102 = vmatpush1.msra.mxu0 0.0
        %3103 = vmatprep.subr.mxu0 0.0
        %3104 = vmatpush1.msra.mxu0 0.0
        %3105 = vmatprep.subr.mxu0 0.0
        %3106 = vmatpush1.msra.mxu0 0.0
        %3107 = vmatprep.subr.mxu0 0.0
        %3108 = vmatpush1.msra.mxu0 0.0
        %3109 = vmatprep.subr.mxu0 0.0
        %3110 = vmatpush1.msra.mxu0 0.0
        %3111 = vmatprep.subr.mxu0 0.0
        %3112 = vmatpush1.msra.mxu0 0.0
        %3113 = vmatprep.subr.mxu0 0.0
        %3114 = vmatpush1.msra.mxu0 0.0
        %3115 = vmatprep.subr.mxu0 0.0
        %3116 = vmatpush1.msra.mxu0 0.0
        %3117 = vmatprep.subr.mxu0 0.0
        %3118 = vmatpush1.msra.mxu0 0.0
        %3119 = vmatprep.subr.mxu0 0.0
        %3120 = vmatpush1.msra.mxu0 0.0
        %3121 = vmatprep.subr.mxu0 0.0
        %3122 = vmatpush1.msra.mxu0 0.0
        %3123 = vmatprep.subr.mxu0 0.0
        %3124 = vmatpush1.msra.mxu0 0.0
        %3125 = vmatprep.subr.mxu0 0.0
        %3126 = vmatpush1.msra.mxu0 0.0
        %3127 = vmatprep.subr.mxu0 0.0
        %3128 = vmatpush1.msra.mxu0 0.0
        %3129 = vmatprep.subr.mxu0 0.0
        %3130 = vmatpush1.msra.mxu0 0.0
        %3131 = vmatprep.mubr.f32.mxu0 0.0
        %3132 = vmatmul.mubr.f32.gmra.mrb[0].mxu0 %v2972
        %v3133 = vpop.f32.mrb[0].mxu0
        %v3134 = vadd.f32 %v2813, %v3133
        %v3135 = vpop.f32.mrb[0].mxu0
        %3136 = vmatprep.mubr.f32.mxu0 0.0
        %3137 = vmatmul.mubr.f32.gmra.mrb[0].mxu0 %v2975
        %v3138 = vpop.f32.mrb[0].mxu0
        %v3139 = vadd.f32 %v2818, %v3138
        %v3140 = vpop.f32.mrb[0].mxu0
        %3141 = vmatprep.mubr.f32.mxu0 0.0
        %3142 = vmatmul.mubr.f32.gmra.mrb[0].mxu0 %v2978
        %v3143 = vpop.f32.mrb[0].mxu0
        %v3144 = vadd.f32 %v2823, %v3143
        %v3145 = vpop.f32.mrb[0].mxu0
        %3146 = vmatprep.mubr.f32.mxu0 0.0
        %3147 = vmatmul.mubr.f32.gmra.mrb[0].mxu0 %v2981
        %v3148 = vpop.f32.mrb[0].mxu0
        %v3149 = vadd.f32 %v2828, %v3148
        %v3150 = vpop.f32.mrb[0].mxu0
        %3151 = vmatprep.mubr.f32.mxu0 0.0
        %3152 = vmatmul.mubr.f32.gmra.mrb[0].mxu0 %v2984
        %v3153 = vpop.f32.mrb[0].mxu0
        %v3154 = vadd.f32 %v2833, %v3153
        %v3155 = vpop.f32.mrb[0].mxu0
        %3156 = vmatprep.mubr.f32.mxu0 0.0
        %3157 = vmatmul.mubr.f32.gmra.mrb[0].mxu0 %v2987
        %v3158 = vpop.f32.mrb[0].mxu0
        %v3159 = vadd.f32 %v2838, %v3158
        %v3160 = vpop.f32.mrb[0].mxu0
        %3161 = vmatprep.mubr.f32.mxu0 0.0
        %3162 = vmatmul.mubr.f32.gmra.mrb[0].mxu0 %v2990
        %v3163 = vpop.f32.mrb[0].mxu0
        %v3164 = vadd.f32 %v2843, %v3163
        %v3165 = vpop.f32.mrb[0].mxu0
        %3166 = vmatprep.mubr.f32.mxu0 0.0
        %3167 = vmatmul.mubr.f32.gmra.mrb[0].mxu0 %v2993
        %v3168 = vpop.f32.mrb[0].mxu0
        %v3169 = vadd.f32 %v2848, %v3168
        %v3170 = vpop.f32.mrb[0].mxu0
        %3171 = vmatprep.mubr.f32.mxu0 0.0
        %3172 = vmatmul.mubr.f32.gmra.mrb[0].mxu0 %v2996
        %v3173 = vpop.f32.mrb[0].mxu0
        %v3174 = vadd.f32 %v2853, %v3173
        %v3175 = vpop.f32.mrb[0].mxu0
        %3176 = vmatprep.mubr.f32.mxu0 0.0
        %3177 = vmatmul.mubr.f32.gmra.mrb[0].mxu0 %v2999
        %v3178 = vpop.f32.mrb[0].mxu0
        %v3179 = vadd.f32 %v2858, %v3178
        %v3180 = vpop.f32.mrb[0].mxu0
        %3181 = vmatprep.mubr.f32.mxu0 0.0
        %3182 = vmatmul.mubr.f32.gmra.mrb[0].mxu0 %v3002
        %v3183 = vpop.f32.mrb[0].mxu0
        %v3184 = vadd.f32 %v2863, %v3183
        %v3185 = vpop.f32.mrb[0].mxu0
        %3186 = vmatprep.mubr.f32.mxu0 0.0
        %3187 = vmatmul.mubr.f32.gmra.mrb[0].mxu0 %v3005
        %v3188 = vpop.f32.mrb[0].mxu0
        %v3189 = vadd.f32 %v2868, %v3188
        %v3190 = vpop.f32.mrb[0].mxu0
        %3191 = vmatprep.mubr.f32.mxu0 0.0
        %3192 = vmatmul.mubr.f32.gmra.mrb[0].mxu0 %v3008
        %v3193 = vpop.f32.mrb[0].mxu0
        %v3194 = vadd.f32 %v2873, %v3193
        %v3195 = vpop.f32.mrb[0].mxu0
        %3196 = vmatprep.mubr.f32.mxu0 0.0
        %3197 = vmatmul.mubr.f32.gmra.mrb[0].mxu0 %v3011
        %v3198 = vpop.f32.mrb[0].mxu0
        %v3199 = vadd.f32 %v2878, %v3198
        %v3200 = vpop.f32.mrb[0].mxu0
        %3201 = vmatprep.mubr.f32.mxu0 0.0
        %3202 = vmatmul.mubr.f32.gmra.mrb[0].mxu0 %v3014
        %v3203 = vpop.f32.mrb[0].mxu0
        %v3204 = vadd.f32 %v2883, %v3203
        %v3205 = vpop.f32.mrb[0].mxu0
        %3206 = vmatprep.mubr.f32.mxu0 0.0
        %3207 = vmatmul.mubr.f32.gmra.mrb[0].mxu0 %v3017
        %v3208 = vpop.f32.mrb[0].mxu0
        %v3209 = vadd.f32 %v2888, %v3208
        %v3210 = vpop.f32.mrb[0].mxu0
        %3211 = vmatprep.mubr.f32.mxu0 0.0
        %3212 = vmatmul.mubr.f32.gmra.mrb[0].mxu0 %v3020
        %v3213 = vpop.f32.mrb[0].mxu0
        %v3214 = vadd.f32 %v2893, %v3213
        %v3215 = vpop.f32.mrb[0].mxu0
        %3216 = vmatprep.mubr.f32.mxu0 0.0
        %3217 = vmatmul.mubr.f32.gmra.mrb[0].mxu0 %v3023
        %v3218 = vpop.f32.mrb[0].mxu0
        %v3219 = vadd.f32 %v2898, %v3218
        %v3220 = vpop.f32.mrb[0].mxu0
        %3221 = vmatprep.mubr.f32.mxu0 0.0
        %3222 = vmatmul.mubr.f32.gmra.mrb[0].mxu0 %v3026
        %v3223 = vpop.f32.mrb[0].mxu0
        %v3224 = vadd.f32 %v2903, %v3223
        %v3225 = vpop.f32.mrb[0].mxu0
        %3226 = vmatprep.mubr.f32.mxu0 0.0
        %3227 = vmatmul.mubr.f32.gmra.mrb[0].mxu0 %v3029
        %v3228 = vpop.f32.mrb[0].mxu0
        %v3229 = vadd.f32 %v2908, %v3228
        %v3230 = vpop.f32.mrb[0].mxu0
        %3231 = vmatprep.mubr.f32.mxu0 0.0
        %3232 = vmatmul.mubr.f32.gmra.mrb[0].mxu0 %v3032
        %v3233 = vpop.f32.mrb[0].mxu0
        %v3234 = vadd.f32 %v2913, %v3233
        %v3235 = vpop.f32.mrb[0].mxu0
        %3236 = vmatprep.mubr.f32.mxu0 0.0
        %3237 = vmatmul.mubr.f32.gmra.mrb[0].mxu0 %v3035
        %v3238 = vpop.f32.mrb[0].mxu0
        %v3239 = vadd.f32 %v2918, %v3238
        %v3240 = vpop.f32.mrb[0].mxu0
        %3241 = vmatprep.mubr.f32.mxu0 0.0
        %3242 = vmatmul.mubr.f32.gmra.mrb[0].mxu0 %v3038
        %v3243 = vpop.f32.mrb[0].mxu0
        %v3244 = vadd.f32 %v2923, %v3243
        %v3245 = vpop.f32.mrb[0].mxu0
        %3246 = vmatprep.mubr.f32.mxu0 0.0
        %3247 = vmatmul.mubr.f32.gmra.mrb[0].mxu0 %v3041
        %v3248 = vpop.f32.mrb[0].mxu0
        %v3249 = vadd.f32 %v2928, %v3248
        %v3250 = vpop.f32.mrb[0].mxu0
        %3251 = vmatprep.mubr.f32.mxu0 0.0
        %3252 = vmatmul.mubr.f32.gmra.mrb[0].mxu0 %v3044
        %v3253 = vpop.f32.mrb[0].mxu0
        %v3254 = vadd.f32 %v2933, %v3253
        %v3255 = vpop.f32.mrb[0].mxu0
        %3256 = vmatprep.mubr.f32.mxu0 0.0
        %3257 = vmatmul.mubr.f32.gmra.mrb[0].mxu0 %v3047
        %v3258 = vpop.f32.mrb[0].mxu0
        %v3259 = vadd.f32 %v2938, %v3258
        %v3260 = vpop.f32.mrb[0].mxu0
        %3261 = vmatprep.mubr.f32.mxu0 0.0
        %3262 = vmatmul.mubr.f32.gmra.mrb[0].mxu0 %v3050
        %v3263 = vpop.f32.mrb[0].mxu0
        %v3264 = vadd.f32 %v2943, %v3263
        %v3265 = vpop.f32.mrb[0].mxu0
        %3266 = vmatprep.mubr.f32.mxu0 0.0
        %3267 = vmatmul.mubr.f32.gmra.mrb[0].mxu0 %v3053
        %v3268 = vpop.f32.mrb[0].mxu0
        %v3269 = vadd.f32 %v2948, %v3268
        %v3270 = vpop.f32.mrb[0].mxu0
        %3271 = vmatprep.mubr.f32.mxu0 0.0
        %3272 = vmatmul.mubr.f32.gmra.mrb[0].mxu0 %v3056
        %v3273 = vpop.f32.mrb[0].mxu0
        %v3274 = vadd.f32 %v2953, %v3273
        %v3275 = vpop.f32.mrb[0].mxu0
        %3276 = vmatprep.mubr.f32.mxu0 0.0
        %3277 = vmatmul.mubr.f32.gmra.mrb[0].mxu0 %v3059
        %v3278 = vpop.f32.mrb[0].mxu0
        %v3279 = vadd.f32 %v2958, %v3278
        %v3280 = vpop.f32.mrb[0].mxu0
        %3281 = vmatprep.mubr.f32.mxu0 0.0
        %3282 = vmatmul.mubr.f32.gmra.mrb[0].mxu0 %v3062
        %v3283 = vpop.f32.mrb[0].mxu0
        %v3284 = vadd.f32 %v2963, %v3283
        %v3285 = vpop.f32.mrb[0].mxu0
        %3286 = vmatprep.mubr.f32.mxu0 0.0
        %3287 = vmatmul.mubr.f32.gmra.mrb[0].mxu0 %v3065
        %v3288 = vpop.f32.mrb[0].mxu0
        %v3289 = vadd.f32 %v2968, %v3288
        %v3290 = vpop.f32.mrb[0].mxu0
        %3291 = vdwg.mxu0
        %v3292 = vld [vmem:[#allocation2 + $0x2] sm:$0xff]
        %v3293 = vld [vmem:[#allocation2 + $0xa] sm:$0xff]
        %v3294 = vld [vmem:[#allocation2 + $0x1a] sm:$0xff]
        %v3295 = vld [vmem:[#allocation2 + $0x22] sm:$0xff]
        %v3296 = vld [vmem:[#allocation2 + $0x32] sm:$0xff]
        %v3297 = vld [vmem:[#allocation2 + $0x3a] sm:$0xff]
        %v3298 = vld [vmem:[#allocation2 + $0x4a] sm:$0xff]
        %v3299 = vld [vmem:[#allocation2 + $0x52] sm:$0xff]
        %v3300 = vld [vmem:[#allocation2 + $0x62] sm:$0xff]
        %v3301 = vld [vmem:[#allocation2 + $0x6a] sm:$0xff]
        %v3302 = vld [vmem:[#allocation2 + $0x7a] sm:$0xff]
        %v3303 = vld [vmem:[#allocation2 + $0x82] sm:$0xff]
        %v3304 = vld [vmem:[#allocation2 + $0x92] sm:$0xff]
        %v3305 = vld [vmem:[#allocation2 + $0x9a] sm:$0xff]
        %v3306 = vld [vmem:[#allocation2 + $0xaa] sm:$0xff]
        %v3307 = vld [vmem:[#allocation2 + $0xb2] sm:$0xff]
        %v3308 = vld [vmem:[#allocation2 + $0xc2] sm:$0xff]
        %v3309 = vld [vmem:[#allocation2 + $0xca] sm:$0xff]
        %v3310 = vld [vmem:[#allocation2 + $0xda] sm:$0xff]
        %v3311 = vld [vmem:[#allocation2 + $0xe2] sm:$0xff]
        %v3312 = vld [vmem:[#allocation2 + $0xf2] sm:$0xff]
        %v3313 = vld [vmem:[#allocation2 + $0xfa] sm:$0xff]
        %v3314 = vld [vmem:[#allocation2 + $0x10a] sm:$0xff]
        %v3315 = vld [vmem:[#allocation2 + $0x112] sm:$0xff]
        %v3316 = vld [vmem:[#allocation2 + $0x122] sm:$0xff]
        %v3317 = vld [vmem:[#allocation2 + $0x12a] sm:$0xff]
        %v3318 = vld [vmem:[#allocation2 + $0x13a] sm:$0xff]
        %v3319 = vld [vmem:[#allocation2 + $0x142] sm:$0xff]
        %v3320 = vld [vmem:[#allocation2 + $0x152] sm:$0xff]
        %v3321 = vld [vmem:[#allocation2 + $0x15a] sm:$0xff]
        %v3322 = vld [vmem:[#allocation2 + $0x16a] sm:$0xff]
        %v3323 = vld [vmem:[#allocation2 + $0x172] sm:$0xff]
        %s3324 = scalar_lea.vmem %s3, 192
        %v3325 = vld [vmem:[%s3324] sm:$0xff]
        %v3326 = vld [vmem:[%s3324 + $0x8] sm:$0xff]
        %v3327 = vld [vmem:[%s3324 + $0x10] sm:$0xff]
        %v3328 = vld [vmem:[%s3324 + $0x18] sm:$0xff]
        %v3329 = vld [vmem:[%s3324 + $0x20] sm:$0xff]
        %v3330 = vld [vmem:[%s3324 + $0x28] sm:$0xff]
        %v3331 = vld [vmem:[%s3324 + $0x30] sm:$0xff]
        %v3332 = vld [vmem:[%s3324 + $0x38] sm:$0xff]
        %v3333 = vld [vmem:[%s3324 + $0x40] sm:$0xff]
        %v3334 = vld [vmem:[%s3324 + $0x48] sm:$0xff]
        %v3335 = vld [vmem:[%s3324 + $0x50] sm:$0xff]
        %v3336 = vld [vmem:[%s3324 + $0x58] sm:$0xff]
        %v3338 = vsel %vm832, %v3292, 0
        %v3341 = vsel %vm832, %v3293, 0
        %v3344 = vsel %vm832, %v3294, 0
        %v3347 = vsel %vm832, %v3295, 0
        %v3350 = vsel %vm832, %v3296, 0
        %v3353 = vsel %vm832, %v3297, 0
        %v3356 = vsel %vm832, %v3298, 0
        %v3359 = vsel %vm832, %v3299, 0
        %v3362 = vsel %vm832, %v3300, 0
        %v3365 = vsel %vm832, %v3301, 0
        %v3368 = vsel %vm832, %v3302, 0
        %v3371 = vsel %vm832, %v3303, 0
        %v3374 = vsel %vm832, %v3304, 0
        %v3377 = vsel %vm832, %v3305, 0
        %v3380 = vsel %vm832, %v3306, 0
        %v3383 = vsel %vm832, %v3307, 0
        %v3386 = vsel %vm832, %v3308, 0
        %v3389 = vsel %vm832, %v3309, 0
        %v3392 = vsel %vm832, %v3310, 0
        %v3395 = vsel %vm832, %v3311, 0
        %v3398 = vsel %vm832, %v3312, 0
        %v3401 = vsel %vm832, %v3313, 0
        %v3404 = vsel %vm832, %v3314, 0
        %v3407 = vsel %vm832, %v3315, 0
        %v3410 = vsel %vm832, %v3316, 0
        %v3413 = vsel %vm832, %v3317, 0
        %v3416 = vsel %vm832, %v3318, 0
        %v3419 = vsel %vm832, %v3319, 0
        %v3422 = vsel %vm832, %v3320, 0
        %v3425 = vsel %vm832, %v3321, 0
        %v3428 = vsel %vm832, %v3322, 0
        %v3431 = vsel %vm832, %v3323, 0
        %3433 = vmatprep.subr.mxu0 0.0
        %3434 = vmatpush1.msra.mxu0 %v3325
        %3435 = vmatprep.subr.mxu0 0.0
        %3436 = vmatpush1.msra.mxu0 %v3326
        %3437 = vmatprep.subr.mxu0 0.0
        %3438 = vmatpush1.msra.mxu0 %v3327
        %3439 = vmatprep.subr.mxu0 0.0
        %3440 = vmatpush1.msra.mxu0 %v3328
        %3441 = vmatprep.subr.mxu0 0.0
        %3442 = vmatpush1.msra.mxu0 %v3329
        %3443 = vmatprep.subr.mxu0 0.0
        %3444 = vmatpush1.msra.mxu0 %v3330
        %3445 = vmatprep.subr.mxu0 0.0
        %3446 = vmatpush1.msra.mxu0 %v3331
        %3447 = vmatprep.subr.mxu0 0.0
        %3448 = vmatpush1.msra.mxu0 %v3332
        %3449 = vmatprep.subr.mxu0 0.0
        %3450 = vmatpush1.msra.mxu0 %v3333
        %3451 = vmatprep.subr.mxu0 0.0
        %3452 = vmatpush1.msra.mxu0 %v3334
        %3453 = vmatprep.subr.mxu0 0.0
        %3454 = vmatpush1.msra.mxu0 %v3335
        %3455 = vmatprep.subr.mxu0 0.0
        %3456 = vmatpush1.msra.mxu0 %v3336
        %3457 = vmatprep.subr.mxu0 0.0
        %3458 = vmatpush1.msra.mxu0 0.0
        %3459 = vmatprep.subr.mxu0 0.0
        %3460 = vmatpush1.msra.mxu0 0.0
        %3461 = vmatprep.subr.mxu0 0.0
        %3462 = vmatpush1.msra.mxu0 0.0
        %3463 = vmatprep.subr.mxu0 0.0
        %3464 = vmatpush1.msra.mxu0 0.0
        %3465 = vmatprep.subr.mxu0 0.0
        %3466 = vmatpush1.msra.mxu0 0.0
        %3467 = vmatprep.subr.mxu0 0.0
        %3468 = vmatpush1.msra.mxu0 0.0
        %3469 = vmatprep.subr.mxu0 0.0
        %3470 = vmatpush1.msra.mxu0 0.0
        %3471 = vmatprep.subr.mxu0 0.0
        %3472 = vmatpush1.msra.mxu0 0.0
        %3473 = vmatprep.subr.mxu0 0.0
        %3474 = vmatpush1.msra.mxu0 0.0
        %3475 = vmatprep.subr.mxu0 0.0
        %3476 = vmatpush1.msra.mxu0 0.0
        %3477 = vmatprep.subr.mxu0 0.0
        %3478 = vmatpush1.msra.mxu0 0.0
        %3479 = vmatprep.subr.mxu0 0.0
        %3480 = vmatpush1.msra.mxu0 0.0
        %3481 = vmatprep.subr.mxu0 0.0
        %3482 = vmatpush1.msra.mxu0 0.0
        %3483 = vmatprep.subr.mxu0 0.0
        %3484 = vmatpush1.msra.mxu0 0.0
        %3485 = vmatprep.subr.mxu0 0.0
        %3486 = vmatpush1.msra.mxu0 0.0
        %3487 = vmatprep.subr.mxu0 0.0
        %3488 = vmatpush1.msra.mxu0 0.0
        %3489 = vmatprep.subr.mxu0 0.0
        %3490 = vmatpush1.msra.mxu0 0.0
        %3491 = vmatprep.subr.mxu0 0.0
        %3492 = vmatpush1.msra.mxu0 0.0
        %3493 = vmatprep.subr.mxu0 0.0
        %3494 = vmatpush1.msra.mxu0 0.0
        %3495 = vmatprep.subr.mxu0 0.0
        %3496 = vmatpush1.msra.mxu0 0.0
        %3497 = vmatprep.mubr.f32.mxu0 0.0
        %3498 = vmatmul.mubr.f32.gmra.mrb[0].mxu0 %v3338
        %v3499 = vpop.f32.mrb[0].mxu0
        %v3500 = vadd.f32 0.0, %v3499
        %v3501 = vpop.f32.mrb[0].mxu0
        %3502 = vmatprep.mubr.f32.mxu0 0.0
        %3503 = vmatmul.mubr.f32.gmra.mrb[0].mxu0 %v3341
        %v3504 = vpop.f32.mrb[0].mxu0
        %v3505 = vadd.f32 0.0, %v3504
        %v3506 = vpop.f32.mrb[0].mxu0
        %3507 = vmatprep.mubr.f32.mxu0 0.0
        %3508 = vmatmul.mubr.f32.gmra.mrb[0].mxu0 %v3344
        %v3509 = vpop.f32.mrb[0].mxu0
        %v3510 = vadd.f32 0.0, %v3509
        %v3511 = vpop.f32.mrb[0].mxu0
        %3512 = vmatprep.mubr.f32.mxu0 0.0
        %3513 = vmatmul.mubr.f32.gmra.mrb[0].mxu0 %v3347
        %v3514 = vpop.f32.mrb[0].mxu0
        %v3515 = vadd.f32 0.0, %v3514
        %v3516 = vpop.f32.mrb[0].mxu0
        %3517 = vmatprep.mubr.f32.mxu0 0.0
        %3518 = vmatmul.mubr.f32.gmra.mrb[0].mxu0 %v3350
        %v3519 = vpop.f32.mrb[0].mxu0
        %v3520 = vadd.f32 0.0, %v3519
        %v3521 = vpop.f32.mrb[0].mxu0
        %3522 = vmatprep.mubr.f32.mxu0 0.0
        %3523 = vmatmul.mubr.f32.gmra.mrb[0].mxu0 %v3353
        %v3524 = vpop.f32.mrb[0].mxu0
        %v3525 = vadd.f32 0.0, %v3524
        %v3526 = vpop.f32.mrb[0].mxu0
        %3527 = vmatprep.mubr.f32.mxu0 0.0
        %3528 = vmatmul.mubr.f32.gmra.mrb[0].mxu0 %v3356
        %v3529 = vpop.f32.mrb[0].mxu0
        %v3530 = vadd.f32 0.0, %v3529
        %v3531 = vpop.f32.mrb[0].mxu0
        %3532 = vmatprep.mubr.f32.mxu0 0.0
        %3533 = vmatmul.mubr.f32.gmra.mrb[0].mxu0 %v3359
        %v3534 = vpop.f32.mrb[0].mxu0
        %v3535 = vadd.f32 0.0, %v3534
        %v3536 = vpop.f32.mrb[0].mxu0
        %3537 = vmatprep.mubr.f32.mxu0 0.0
        %3538 = vmatmul.mubr.f32.gmra.mrb[0].mxu0 %v3362
        %v3539 = vpop.f32.mrb[0].mxu0
        %v3540 = vadd.f32 0.0, %v3539
        %v3541 = vpop.f32.mrb[0].mxu0
        %3542 = vmatprep.mubr.f32.mxu0 0.0
        %3543 = vmatmul.mubr.f32.gmra.mrb[0].mxu0 %v3365
        %v3544 = vpop.f32.mrb[0].mxu0
        %v3545 = vadd.f32 0.0, %v3544
        %v3546 = vpop.f32.mrb[0].mxu0
        %3547 = vmatprep.mubr.f32.mxu0 0.0
        %3548 = vmatmul.mubr.f32.gmra.mrb[0].mxu0 %v3368
        %v3549 = vpop.f32.mrb[0].mxu0
        %v3550 = vadd.f32 0.0, %v3549
        %v3551 = vpop.f32.mrb[0].mxu0
        %3552 = vmatprep.mubr.f32.mxu0 0.0
        %3553 = vmatmul.mubr.f32.gmra.mrb[0].mxu0 %v3371
        %v3554 = vpop.f32.mrb[0].mxu0
        %v3555 = vadd.f32 0.0, %v3554
        %v3556 = vpop.f32.mrb[0].mxu0
        %3557 = vmatprep.mubr.f32.mxu0 0.0
        %3558 = vmatmul.mubr.f32.gmra.mrb[0].mxu0 %v3374
        %v3559 = vpop.f32.mrb[0].mxu0
        %v3560 = vadd.f32 0.0, %v3559
        %v3561 = vpop.f32.mrb[0].mxu0
        %3562 = vmatprep.mubr.f32.mxu0 0.0
        %3563 = vmatmul.mubr.f32.gmra.mrb[0].mxu0 %v3377
        %v3564 = vpop.f32.mrb[0].mxu0
        %v3565 = vadd.f32 0.0, %v3564
        %v3566 = vpop.f32.mrb[0].mxu0
        %3567 = vmatprep.mubr.f32.mxu0 0.0
        %3568 = vmatmul.mubr.f32.gmra.mrb[0].mxu0 %v3380
        %v3569 = vpop.f32.mrb[0].mxu0
        %v3570 = vadd.f32 0.0, %v3569
        %v3571 = vpop.f32.mrb[0].mxu0
        %3572 = vmatprep.mubr.f32.mxu0 0.0
        %3573 = vmatmul.mubr.f32.gmra.mrb[0].mxu0 %v3383
        %v3574 = vpop.f32.mrb[0].mxu0
        %v3575 = vadd.f32 0.0, %v3574
        %v3576 = vpop.f32.mrb[0].mxu0
        %3577 = vmatprep.mubr.f32.mxu0 0.0
        %3578 = vmatmul.mubr.f32.gmra.mrb[0].mxu0 %v3386
        %v3579 = vpop.f32.mrb[0].mxu0
        %v3580 = vadd.f32 0.0, %v3579
        %v3581 = vpop.f32.mrb[0].mxu0
        %3582 = vmatprep.mubr.f32.mxu0 0.0
        %3583 = vmatmul.mubr.f32.gmra.mrb[0].mxu0 %v3389
        %v3584 = vpop.f32.mrb[0].mxu0
        %v3585 = vadd.f32 0.0, %v3584
        %v3586 = vpop.f32.mrb[0].mxu0
        %3587 = vmatprep.mubr.f32.mxu0 0.0
        %3588 = vmatmul.mubr.f32.gmra.mrb[0].mxu0 %v3392
        %v3589 = vpop.f32.mrb[0].mxu0
        %v3590 = vadd.f32 0.0, %v3589
        %v3591 = vpop.f32.mrb[0].mxu0
        %3592 = vmatprep.mubr.f32.mxu0 0.0
        %3593 = vmatmul.mubr.f32.gmra.mrb[0].mxu0 %v3395
        %v3594 = vpop.f32.mrb[0].mxu0
        %v3595 = vadd.f32 0.0, %v3594
        %v3596 = vpop.f32.mrb[0].mxu0
        %3597 = vmatprep.mubr.f32.mxu0 0.0
        %3598 = vmatmul.mubr.f32.gmra.mrb[0].mxu0 %v3398
        %v3599 = vpop.f32.mrb[0].mxu0
        %v3600 = vadd.f32 0.0, %v3599
        %v3601 = vpop.f32.mrb[0].mxu0
        %3602 = vmatprep.mubr.f32.mxu0 0.0
        %3603 = vmatmul.mubr.f32.gmra.mrb[0].mxu0 %v3401
        %v3604 = vpop.f32.mrb[0].mxu0
        %v3605 = vadd.f32 0.0, %v3604
        %v3606 = vpop.f32.mrb[0].mxu0
        %3607 = vmatprep.mubr.f32.mxu0 0.0
        %3608 = vmatmul.mubr.f32.gmra.mrb[0].mxu0 %v3404
        %v3609 = vpop.f32.mrb[0].mxu0
        %v3610 = vadd.f32 0.0, %v3609
        %v3611 = vpop.f32.mrb[0].mxu0
        %3612 = vmatprep.mubr.f32.mxu0 0.0
        %3613 = vmatmul.mubr.f32.gmra.mrb[0].mxu0 %v3407
        %v3614 = vpop.f32.mrb[0].mxu0
        %v3615 = vadd.f32 0.0, %v3614
        %v3616 = vpop.f32.mrb[0].mxu0
        %3617 = vmatprep.mubr.f32.mxu0 0.0
        %3618 = vmatmul.mubr.f32.gmra.mrb[0].mxu0 %v3410
        %v3619 = vpop.f32.mrb[0].mxu0
        %v3620 = vadd.f32 0.0, %v3619
        %v3621 = vpop.f32.mrb[0].mxu0
        %3622 = vmatprep.mubr.f32.mxu0 0.0
        %3623 = vmatmul.mubr.f32.gmra.mrb[0].mxu0 %v3413
        %v3624 = vpop.f32.mrb[0].mxu0
        %v3625 = vadd.f32 0.0, %v3624
        %v3626 = vpop.f32.mrb[0].mxu0
        %3627 = vmatprep.mubr.f32.mxu0 0.0
        %3628 = vmatmul.mubr.f32.gmra.mrb[0].mxu0 %v3416
        %v3629 = vpop.f32.mrb[0].mxu0
        %v3630 = vadd.f32 0.0, %v3629
        %v3631 = vpop.f32.mrb[0].mxu0
        %3632 = vmatprep.mubr.f32.mxu0 0.0
        %3633 = vmatmul.mubr.f32.gmra.mrb[0].mxu0 %v3419
        %v3634 = vpop.f32.mrb[0].mxu0
        %v3635 = vadd.f32 0.0, %v3634
        %v3636 = vpop.f32.mrb[0].mxu0
        %3637 = vmatprep.mubr.f32.mxu0 0.0
        %3638 = vmatmul.mubr.f32.gmra.mrb[0].mxu0 %v3422
        %v3639 = vpop.f32.mrb[0].mxu0
        %v3640 = vadd.f32 0.0, %v3639
        %v3641 = vpop.f32.mrb[0].mxu0
        %3642 = vmatprep.mubr.f32.mxu0 0.0
        %3643 = vmatmul.mubr.f32.gmra.mrb[0].mxu0 %v3425
        %v3644 = vpop.f32.mrb[0].mxu0
        %v3645 = vadd.f32 0.0, %v3644
        %v3646 = vpop.f32.mrb[0].mxu0
        %3647 = vmatprep.mubr.f32.mxu0 0.0
        %3648 = vmatmul.mubr.f32.gmra.mrb[0].mxu0 %v3428
        %v3649 = vpop.f32.mrb[0].mxu0
        %v3650 = vadd.f32 0.0, %v3649
        %v3651 = vpop.f32.mrb[0].mxu0
        %3652 = vmatprep.mubr.f32.mxu0 0.0
        %3653 = vmatmul.mubr.f32.gmra.mrb[0].mxu0 %v3431
        %v3654 = vpop.f32.mrb[0].mxu0
        %v3655 = vadd.f32 0.0, %v3654
        %v3656 = vpop.f32.mrb[0].mxu0
        %3657 = vdwg.mxu0
        %v3658 = vadd.f32 %v3134, %v3500
        %v3659 = vadd.f32 %v3139, %v3505
        %v3660 = vadd.f32 %v3144, %v3510
        %v3661 = vadd.f32 %v3149, %v3515
        %v3662 = vadd.f32 %v3154, %v3520
        %v3663 = vadd.f32 %v3159, %v3525
        %v3664 = vadd.f32 %v3164, %v3530
        %v3665 = vadd.f32 %v3169, %v3535
        %v3666 = vadd.f32 %v3174, %v3540
        %v3667 = vadd.f32 %v3179, %v3545
        %v3668 = vadd.f32 %v3184, %v3550
        %v3669 = vadd.f32 %v3189, %v3555
        %v3670 = vadd.f32 %v3194, %v3560
        %v3671 = vadd.f32 %v3199, %v3565
        %v3672 = vadd.f32 %v3204, %v3570
        %v3673 = vadd.f32 %v3209, %v3575
        %v3674 = vadd.f32 %v3214, %v3580
        %v3675 = vadd.f32 %v3219, %v3585
        %v3676 = vadd.f32 %v3224, %v3590
        %v3677 = vadd.f32 %v3229, %v3595
        %v3678 = vadd.f32 %v3234, %v3600
        %v3679 = vadd.f32 %v3239, %v3605
        %v3680 = vadd.f32 %v3244, %v3610
        %v3681 = vadd.f32 %v3249, %v3615
        %v3682 = vadd.f32 %v3254, %v3620
        %v3683 = vadd.f32 %v3259, %v3625
        %v3684 = vadd.f32 %v3264, %v3630
        %v3685 = vadd.f32 %v3269, %v3635
        %v3686 = vadd.f32 %v3274, %v3640
        %v3687 = vadd.f32 %v3279, %v3645
        %v3688 = vadd.f32 %v3284, %v3650
        %v3689 = vadd.f32 %v3289, %v3655
        %v3690 = vld [vmem:[%s4] sm:$0x1]
        %v3692 = vlaneseq
        %v3693 = vshrl.u32 %v3692, 7
        %v3694 = vsub.s32 0, %v3693
        %v3695 = vrot.slane %v3690, %v3694
        %v3697 = vadd.f32 %v3658, %v3695
        %v3698 = vadd.f32 %v3659, %v3695
        %v3699 = vadd.f32 %v3660, %v3695
        %v3700 = vadd.f32 %v3661, %v3695
        %v3701 = vadd.f32 %v3662, %v3695
        %v3702 = vadd.f32 %v3663, %v3695
        %v3703 = vadd.f32 %v3664, %v3695
        %v3704 = vadd.f32 %v3665, %v3695
        %v3705 = vadd.f32 %v3666, %v3695
        %v3706 = vadd.f32 %v3667, %v3695
        %v3707 = vadd.f32 %v3668, %v3695
        %v3708 = vadd.f32 %v3669, %v3695
        %v3709 = vadd.f32 %v3670, %v3695
        %v3710 = vadd.f32 %v3671, %v3695
        %v3711 = vadd.f32 %v3672, %v3695
        %v3712 = vadd.f32 %v3673, %v3695
        %v3713 = vadd.f32 %v3674, %v3695
        %v3714 = vadd.f32 %v3675, %v3695
        %v3715 = vadd.f32 %v3676, %v3695
        %v3716 = vadd.f32 %v3677, %v3695
        %v3717 = vadd.f32 %v3678, %v3695
        %v3718 = vadd.f32 %v3679, %v3695
        %v3719 = vadd.f32 %v3680, %v3695
        %v3720 = vadd.f32 %v3681, %v3695
        %v3721 = vadd.f32 %v3682, %v3695
        %v3722 = vadd.f32 %v3683, %v3695
        %v3723 = vadd.f32 %v3684, %v3695
        %v3724 = vadd.f32 %v3685, %v3695
        %v3725 = vadd.f32 %v3686, %v3695
        %v3726 = vadd.f32 %v3687, %v3695
        %v3727 = vadd.f32 %v3688, %v3695
        %v3728 = vadd.f32 %v3689, %v3695
        %v3729 = vsel %vm226, %v3697, 0.0
        %v3730 = vsel %vm226, %v3698, 0.0
        %v3731 = vadd.f32 %v3729, %v3730
        %v3732 = vsel %vm226, %v3699, 0.0
        %v3733 = vadd.f32 %v3731, %v3732
        %v3734 = vsel %vm226, %v3700, 0.0
        %v3735 = vadd.f32 %v3733, %v3734
        %v3736 = vsel %vm226, %v3701, 0.0
        %v3737 = vadd.f32 %v3735, %v3736
        %v3738 = vsel %vm226, %v3702, 0.0
        %v3739 = vadd.f32 %v3737, %v3738
        %v3740 = vsel %vm226, %v3703, 0.0
        %v3741 = vadd.f32 %v3739, %v3740
        %v3742 = vsel %vm226, %v3704, 0.0
        %v3743 = vadd.f32 %v3741, %v3742
        %v3744 = vsel %vm226, %v3705, 0.0
        %v3745 = vadd.f32 %v3743, %v3744
        %v3746 = vsel %vm226, %v3706, 0.0
        %v3747 = vadd.f32 %v3745, %v3746
        %v3748 = vsel %vm226, %v3707, 0.0
        %v3749 = vadd.f32 %v3747, %v3748
        %v3750 = vsel %vm226, %v3708, 0.0
        %v3751 = vadd.f32 %v3749, %v3750
        %v3752 = vsel %vm226, %v3709, 0.0
        %v3753 = vadd.f32 %v3751, %v3752
        %v3754 = vsel %vm226, %v3710, 0.0
        %v3755 = vadd.f32 %v3753, %v3754
        %v3756 = vsel %vm226, %v3711, 0.0
        %v3757 = vadd.f32 %v3755, %v3756
        %v3758 = vsel %vm226, %v3712, 0.0
        %v3759 = vadd.f32 %v3757, %v3758
        %v3760 = vsel %vm226, %v3713, 0.0
        %v3761 = vadd.f32 %v3759, %v3760
        %v3762 = vsel %vm226, %v3714, 0.0
        %v3763 = vadd.f32 %v3761, %v3762
        %v3764 = vsel %vm226, %v3715, 0.0
        %v3765 = vadd.f32 %v3763, %v3764
        %v3766 = vsel %vm226, %v3716, 0.0
        %v3767 = vadd.f32 %v3765, %v3766
        %v3768 = vsel %vm226, %v3717, 0.0
        %v3769 = vadd.f32 %v3767, %v3768
        %v3770 = vsel %vm226, %v3718, 0.0
        %v3771 = vadd.f32 %v3769, %v3770
        %v3772 = vsel %vm226, %v3719, 0.0
        %v3773 = vadd.f32 %v3771, %v3772
        %v3774 = vsel %vm226, %v3720, 0.0
        %v3775 = vadd.f32 %v3773, %v3774
        %v3776 = vsel %vm226, %v3721, 0.0
        %v3777 = vadd.f32 %v3775, %v3776
        %v3778 = vsel %vm226, %v3722, 0.0
        %v3779 = vadd.f32 %v3777, %v3778
        %v3780 = vsel %vm226, %v3723, 0.0
        %v3781 = vadd.f32 %v3779, %v3780
        %v3782 = vsel %vm226, %v3724, 0.0
        %v3783 = vadd.f32 %v3781, %v3782
        %v3784 = vsel %vm226, %v3725, 0.0
        %v3785 = vadd.f32 %v3783, %v3784
        %v3786 = vsel %vm226, %v3726, 0.0
        %v3787 = vadd.f32 %v3785, %v3786
        %v3788 = vsel %vm226, %v3727, 0.0
        %v3789 = vadd.f32 %v3787, %v3788
        %v3790 = vsel %vm226, %v3728, 0.0
        %v3791 = vadd.f32 %v3789, %v3790
        %v3792 = vrot.slane %v3791, 4
        %v3793 = vadd.f32 %v3791, %v3792
        %v3794 = vrot.slane %v3793, 2
        %v3795 = vadd.f32 %v3793, %v3794
        %v3796 = vrot.slane %v3795, 1
        %v3797 = vadd.f32 %v3795, %v3796
        %v3798 = vmul.f32 %v3797, %v1981
        %v3799 = vsub.f32 %v3697, %v3798
        %v3800 = vsub.f32 %v3698, %v3798
        %v3801 = vsub.f32 %v3699, %v3798
        %v3802 = vsub.f32 %v3700, %v3798
        %v3803 = vsub.f32 %v3701, %v3798
        %v3804 = vsub.f32 %v3702, %v3798
        %v3805 = vsub.f32 %v3703, %v3798
        %v3806 = vsub.f32 %v3704, %v3798
        %v3807 = vsub.f32 %v3705, %v3798
        %v3808 = vsub.f32 %v3706, %v3798
        %v3809 = vsub.f32 %v3707, %v3798
        %v3810 = vsub.f32 %v3708, %v3798
        %v3811 = vsub.f32 %v3709, %v3798
        %v3812 = vsub.f32 %v3710, %v3798
        %v3813 = vsub.f32 %v3711, %v3798
        %v3814 = vsub.f32 %v3712, %v3798
        %v3815 = vsub.f32 %v3713, %v3798
        %v3816 = vsub.f32 %v3714, %v3798
        %v3817 = vsub.f32 %v3715, %v3798
        %v3818 = vsub.f32 %v3716, %v3798
        %v3819 = vsub.f32 %v3717, %v3798
        %v3820 = vsub.f32 %v3718, %v3798
        %v3821 = vsub.f32 %v3719, %v3798
        %v3822 = vsub.f32 %v3720, %v3798
        %v3823 = vsub.f32 %v3721, %v3798
        %v3824 = vsub.f32 %v3722, %v3798
        %v3825 = vsub.f32 %v3723, %v3798
        %v3826 = vsub.f32 %v3724, %v3798
        %v3827 = vsub.f32 %v3725, %v3798
        %v3828 = vsub.f32 %v3726, %v3798
        %v3829 = vsub.f32 %v3727, %v3798
        %v3830 = vsub.f32 %v3728, %v3798
        %v3831 = vmul.f32 %v3799, %v3799
        %v3832 = vmul.f32 %v3800, %v3800
        %v3833 = vmul.f32 %v3801, %v3801
        %v3834 = vmul.f32 %v3802, %v3802
        %v3835 = vmul.f32 %v3803, %v3803
        %v3836 = vmul.f32 %v3804, %v3804
        %v3837 = vmul.f32 %v3805, %v3805
        %v3838 = vmul.f32 %v3806, %v3806
        %v3839 = vmul.f32 %v3807, %v3807
        %v3840 = vmul.f32 %v3808, %v3808
        %v3841 = vmul.f32 %v3809, %v3809
        %v3842 = vmul.f32 %v3810, %v3810
        %v3843 = vmul.f32 %v3811, %v3811
        %v3844 = vmul.f32 %v3812, %v3812
        %v3845 = vmul.f32 %v3813, %v3813
        %v3846 = vmul.f32 %v3814, %v3814
        %v3847 = vmul.f32 %v3815, %v3815
        %v3848 = vmul.f32 %v3816, %v3816
        %v3849 = vmul.f32 %v3817, %v3817
        %v3850 = vmul.f32 %v3818, %v3818
        %v3851 = vmul.f32 %v3819, %v3819
        %v3852 = vmul.f32 %v3820, %v3820
        %v3853 = vmul.f32 %v3821, %v3821
        %v3854 = vmul.f32 %v3822, %v3822
        %v3855 = vmul.f32 %v3823, %v3823
        %v3856 = vmul.f32 %v3824, %v3824
        %v3857 = vmul.f32 %v3825, %v3825
        %v3858 = vmul.f32 %v3826, %v3826
        %v3859 = vmul.f32 %v3827, %v3827
        %v3860 = vmul.f32 %v3828, %v3828
        %v3861 = vmul.f32 %v3829, %v3829
        %v3862 = vmul.f32 %v3830, %v3830
        %v3863 = vsel %vm226, %v3831, 0.0
        %v3864 = vsel %vm226, %v3832, 0.0
        %v3865 = vadd.f32 %v3863, %v3864
        %v3866 = vsel %vm226, %v3833, 0.0
        %v3867 = vadd.f32 %v3865, %v3866
        %v3868 = vsel %vm226, %v3834, 0.0
        %v3869 = vadd.f32 %v3867, %v3868
        %v3870 = vsel %vm226, %v3835, 0.0
        %v3871 = vadd.f32 %v3869, %v3870
        %v3872 = vsel %vm226, %v3836, 0.0
        %v3873 = vadd.f32 %v3871, %v3872
        %v3874 = vsel %vm226, %v3837, 0.0
        %v3875 = vadd.f32 %v3873, %v3874
        %v3876 = vsel %vm226, %v3838, 0.0
        %v3877 = vadd.f32 %v3875, %v3876
        %v3878 = vsel %vm226, %v3839, 0.0
        %v3879 = vadd.f32 %v3877, %v3878
        %v3880 = vsel %vm226, %v3840, 0.0
        %v3881 = vadd.f32 %v3879, %v3880
        %v3882 = vsel %vm226, %v3841, 0.0
        %v3883 = vadd.f32 %v3881, %v3882
        %v3884 = vsel %vm226, %v3842, 0.0
        %v3885 = vadd.f32 %v3883, %v3884
        %v3886 = vsel %vm226, %v3843, 0.0
        %v3887 = vadd.f32 %v3885, %v3886
        %v3888 = vsel %vm226, %v3844, 0.0
        %v3889 = vadd.f32 %v3887, %v3888
        %v3890 = vsel %vm226, %v3845, 0.0
        %v3891 = vadd.f32 %v3889, %v3890
        %v3892 = vsel %vm226, %v3846, 0.0
        %v3893 = vadd.f32 %v3891, %v3892
        %v3894 = vsel %vm226, %v3847, 0.0
        %v3895 = vadd.f32 %v3893, %v3894
        %v3896 = vsel %vm226, %v3848, 0.0
        %v3897 = vadd.f32 %v3895, %v3896
        %v3898 = vsel %vm226, %v3849, 0.0
        %v3899 = vadd.f32 %v3897, %v3898
        %v3900 = vsel %vm226, %v3850, 0.0
        %v3901 = vadd.f32 %v3899, %v3900
        %v3902 = vsel %vm226, %v3851, 0.0
        %v3903 = vadd.f32 %v3901, %v3902
        %v3904 = vsel %vm226, %v3852, 0.0
        %v3905 = vadd.f32 %v3903, %v3904
        %v3906 = vsel %vm226, %v3853, 0.0
        %v3907 = vadd.f32 %v3905, %v3906
        %v3908 = vsel %vm226, %v3854, 0.0
        %v3909 = vadd.f32 %v3907, %v3908
        %v3910 = vsel %vm226, %v3855, 0.0
        %v3911 = vadd.f32 %v3909, %v3910
        %v3912 = vsel %vm226, %v3856, 0.0
        %v3913 = vadd.f32 %v3911, %v3912
        %v3914 = vsel %vm226, %v3857, 0.0
        %v3915 = vadd.f32 %v3913, %v3914
        %v3916 = vsel %vm226, %v3858, 0.0
        %v3917 = vadd.f32 %v3915, %v3916
        %v3918 = vsel %vm226, %v3859, 0.0
        %v3919 = vadd.f32 %v3917, %v3918
        %v3920 = vsel %vm226, %v3860, 0.0
        %v3921 = vadd.f32 %v3919, %v3920
        %v3922 = vsel %vm226, %v3861, 0.0
        %v3923 = vadd.f32 %v3921, %v3922
        %v3924 = vsel %vm226, %v3862, 0.0
        %v3925 = vadd.f32 %v3923, %v3924
        %v3926 = vrot.slane %v3925, 4
        %v3927 = vadd.f32 %v3925, %v3926
        %v3928 = vrot.slane %v3927, 2
        %v3929 = vadd.f32 %v3927, %v3928
        %v3930 = vrot.slane %v3929, 1
        %v3931 = vadd.f32 %v3929, %v3930
        %v3932 = vmul.f32 %v3931, %v1981
        %v3933 = vadd.f32 %v3932, 1e-05
        %v3934 = vrsqrt.pop %v3933
        %v3935 = vmul.f32 %v3799, %v3934
        %v3936 = vmul.f32 %v3800, %v3934
        %v3937 = vmul.f32 %v3801, %v3934
        %v3938 = vmul.f32 %v3802, %v3934
        %v3939 = vmul.f32 %v3803, %v3934
        %v3940 = vmul.f32 %v3804, %v3934
        %v3941 = vmul.f32 %v3805, %v3934
        %v3942 = vmul.f32 %v3806, %v3934
        %v3943 = vmul.f32 %v3807, %v3934
        %v3944 = vmul.f32 %v3808, %v3934
        %v3945 = vmul.f32 %v3809, %v3934
        %v3946 = vmul.f32 %v3810, %v3934
        %v3947 = vmul.f32 %v3811, %v3934
        %v3948 = vmul.f32 %v3812, %v3934
        %v3949 = vmul.f32 %v3813, %v3934
        %v3950 = vmul.f32 %v3814, %v3934
        %v3951 = vmul.f32 %v3815, %v3934
        %v3952 = vmul.f32 %v3816, %v3934
        %v3953 = vmul.f32 %v3817, %v3934
        %v3954 = vmul.f32 %v3818, %v3934
        %v3955 = vmul.f32 %v3819, %v3934
        %v3956 = vmul.f32 %v3820, %v3934
        %v3957 = vmul.f32 %v3821, %v3934
        %v3958 = vmul.f32 %v3822, %v3934
        %v3959 = vmul.f32 %v3823, %v3934
        %v3960 = vmul.f32 %v3824, %v3934
        %v3961 = vmul.f32 %v3825, %v3934
        %v3962 = vmul.f32 %v3826, %v3934
        %v3963 = vmul.f32 %v3827, %v3934
        %v3964 = vmul.f32 %v3828, %v3934
        %v3965 = vmul.f32 %v3829, %v3934
        %v3966 = vmul.f32 %v3830, %v3934
        %v3967 = vld [vmem:[%s222] sm:$0xff]
        %v3968 = vld [vmem:[%s222 + $0x8] sm:$0xff]
        %v3969 = vld [vmem:[%s222 + $0x10] sm:$0xff]
        %v3970 = vld [vmem:[%s222 + $0x18] sm:$0xff]
        %v3971 = vld [vmem:[%s222 + $0x20] sm:$0xff]
        %v3972 = vld [vmem:[%s222 + $0x28] sm:$0xff]
        %v3973 = vld [vmem:[%s222 + $0x30] sm:$0xff]
        %v3974 = vld [vmem:[%s222 + $0x38] sm:$0xff]
        %v3975 = vld [vmem:[%s222 + $0x40] sm:$0xff]
        %v3976 = vld [vmem:[%s222 + $0x48] sm:$0xff]
        %v3977 = vld [vmem:[%s222 + $0x50] sm:$0xff]
        %v3978 = vld [vmem:[%s222 + $0x58] sm:$0xff]
        %v3979 = vld [vmem:[%s222 + $0x60] sm:$0xff]
        %v3980 = vld [vmem:[%s222 + $0x68] sm:$0xff]
        %v3981 = vld [vmem:[%s222 + $0x70] sm:$0xff]
        %v3982 = vld [vmem:[%s222 + $0x78] sm:$0xff]
        %v3983 = vld [vmem:[%s222 + $0x80] sm:$0xff]
        %v3984 = vld [vmem:[%s222 + $0x88] sm:$0xff]
        %v3985 = vld [vmem:[%s222 + $0x90] sm:$0xff]
        %v3986 = vld [vmem:[%s222 + $0x98] sm:$0xff]
        %v3987 = vld [vmem:[%s222 + $0xa0] sm:$0xff]
        %v3988 = vld [vmem:[%s222 + $0xa8] sm:$0xff]
        %v3989 = vld [vmem:[%s222 + $0xb0] sm:$0xff]
        %v3990 = vld [vmem:[%s222 + $0xb8] sm:$0xff]
        %v3991 = vld [vmem:[%s222 + $0xc0] sm:$0xff]
        %v3992 = vld [vmem:[%s222 + $0xc8] sm:$0xff]
        %v3993 = vld [vmem:[%s222 + $0xd0] sm:$0xff]
        %v3994 = vld [vmem:[%s222 + $0xd8] sm:$0xff]
        %v3995 = vld [vmem:[%s222 + $0xe0] sm:$0xff]
        %v3996 = vld [vmem:[%s222 + $0xe8] sm:$0xff]
        %v3997 = vld [vmem:[%s222 + $0xf0] sm:$0xff]
        %v3998 = vld [vmem:[%s222 + $0xf8] sm:$0xff]
        %v3999 = vadd.f32 %v3935, %v3967
        %v4000 = vadd.f32 %v3936, %v3968
        %v4001 = vadd.f32 %v3937, %v3969
        %v4002 = vadd.f32 %v3938, %v3970
        %v4003 = vadd.f32 %v3939, %v3971
        %v4004 = vadd.f32 %v3940, %v3972
        %v4005 = vadd.f32 %v3941, %v3973
        %v4006 = vadd.f32 %v3942, %v3974
        %v4007 = vadd.f32 %v3943, %v3975
        %v4008 = vadd.f32 %v3944, %v3976
        %v4009 = vadd.f32 %v3945, %v3977
        %v4010 = vadd.f32 %v3946, %v3978
        %v4011 = vadd.f32 %v3947, %v3979
        %v4012 = vadd.f32 %v3948, %v3980
        %v4013 = vadd.f32 %v3949, %v3981
        %v4014 = vadd.f32 %v3950, %v3982
        %v4015 = vadd.f32 %v3951, %v3983
        %v4016 = vadd.f32 %v3952, %v3984
        %v4017 = vadd.f32 %v3953, %v3985
        %v4018 = vadd.f32 %v3954, %v3986
        %v4019 = vadd.f32 %v3955, %v3987
        %v4020 = vadd.f32 %v3956, %v3988
        %v4021 = vadd.f32 %v3957, %v3989
        %v4022 = vadd.f32 %v3958, %v3990
        %v4023 = vadd.f32 %v3959, %v3991
        %v4024 = vadd.f32 %v3960, %v3992
        %v4025 = vadd.f32 %v3961, %v3993
        %v4026 = vadd.f32 %v3962, %v3994
        %v4027 = vadd.f32 %v3963, %v3995
        %v4028 = vadd.f32 %v3964, %v3996
        %v4029 = vadd.f32 %v3965, %v3997
        %v4030 = vadd.f32 %v3966, %v3998
        %4031 = vst.msk [vmem:[%s217] sm:$0xff] %vm226, %v3999
        %4032 = vst.msk [vmem:[%s217 + $0x8] sm:$0xff] %vm226, %v4000
        %4033 = vst.msk [vmem:[%s217 + $0x10] sm:$0xff] %vm226, %v4001
        %4034 = vst.msk [vmem:[%s217 + $0x18] sm:$0xff] %vm226, %v4002
        %4035 = vst.msk [vmem:[%s217 + $0x20] sm:$0xff] %vm226, %v4003
        %4036 = vst.msk [vmem:[%s217 + $0x28] sm:$0xff] %vm226, %v4004
        %4037 = vst.msk [vmem:[%s217 + $0x30] sm:$0xff] %vm226, %v4005
        %4038 = vst.msk [vmem:[%s217 + $0x38] sm:$0xff] %vm226, %v4006
        %4039 = vst.msk [vmem:[%s217 + $0x40] sm:$0xff] %vm226, %v4007
        %4040 = vst.msk [vmem:[%s217 + $0x48] sm:$0xff] %vm226, %v4008
        %4041 = vst.msk [vmem:[%s217 + $0x50] sm:$0xff] %vm226, %v4009
        %4042 = vst.msk [vmem:[%s217 + $0x58] sm:$0xff] %vm226, %v4010
        %4043 = vst.msk [vmem:[%s217 + $0x60] sm:$0xff] %vm226, %v4011
        %4044 = vst.msk [vmem:[%s217 + $0x68] sm:$0xff] %vm226, %v4012
        %4045 = vst.msk [vmem:[%s217 + $0x70] sm:$0xff] %vm226, %v4013
        %4046 = vst.msk [vmem:[%s217 + $0x78] sm:$0xff] %vm226, %v4014
        %4047 = vst.msk [vmem:[%s217 + $0x80] sm:$0xff] %vm226, %v4015
        %4048 = vst.msk [vmem:[%s217 + $0x88] sm:$0xff] %vm226, %v4016
        %4049 = vst.msk [vmem:[%s217 + $0x90] sm:$0xff] %vm226, %v4017
        %4050 = vst.msk [vmem:[%s217 + $0x98] sm:$0xff] %vm226, %v4018
        %4051 = vst.msk [vmem:[%s217 + $0xa0] sm:$0xff] %vm226, %v4019
        %4052 = vst.msk [vmem:[%s217 + $0xa8] sm:$0xff] %vm226, %v4020
        %4053 = vst.msk [vmem:[%s217 + $0xb0] sm:$0xff] %vm226, %v4021
        %4054 = vst.msk [vmem:[%s217 + $0xb8] sm:$0xff] %vm226, %v4022
        %4055 = vst.msk [vmem:[%s217 + $0xc0] sm:$0xff] %vm226, %v4023
        %4056 = vst.msk [vmem:[%s217 + $0xc8] sm:$0xff] %vm226, %v4024
        %4057 = vst.msk [vmem:[%s217 + $0xd0] sm:$0xff] %vm226, %v4025
        %4058 = vst.msk [vmem:[%s217 + $0xd8] sm:$0xff] %vm226, %v4026
        %4059 = vst.msk [vmem:[%s217 + $0xe0] sm:$0xff] %vm226, %v4027
        %4060 = vst.msk [vmem:[%s217 + $0xe8] sm:$0xff] %vm226, %v4028
        %4061 = vst.msk [vmem:[%s217 + $0xf0] sm:$0xff] %vm226, %v4029
        %4062 = vst.msk [vmem:[%s217 + $0xf8] sm:$0xff] %vm226, %v4030
        %s4063 = sand.u32 %s137, 1
        %s4064 = scalar_lea.sflag [#allocation4], %s4063
        %s4065 = sand.u32 %s137, 1
        %s4066 = smul.addr %s4065, 256
        %s4067 = scalar_lea.vmem [#allocation3], %s4066
        // Predicated region
        $region41: #{residual_block.1} parent=39 // pred_check
          %p4068 = pneg %p147
        $region42: #{residual_block.1} parent=39 // pred_check_branch
          %4070 = sbr.rel (%p4068) target = $region44
        $region43: #{residual_block.1} parent=39 // pred_region
          %s4072 = ssub.s32 4096, 4096
          %4073 = vsyncadd %s4064, %s4072
          %s4074 = smul.addr %s19, 32
          %s4075 = smul.addr %s4074, 128
          %s4076 = scalar_lea.hbm %s5, %s4075
          %s4077 = sshll.u32 %s4067, 4
          %s4078 = int_to_ptr.vmem [resolvable:$true] %s4077
          %4083 = dma.vmem_to_hbm [thread:$0]  %s4078, 4096, %s4076, %s4064, 128, 128, 8
        $region44: #{residual_block.1} parent=39 // pred_fallthru
          _
      $region40: #{residual_block.1} parent=5 // pred_fallthru
        _
      %p4084 = scmp.le.s32.totalorder 2, %s14
      // Predicated region
      $region45: #{residual_block.1} parent=5 // pred_check
        %p4085 = pneg %p4084
      $region46: #{residual_block.1} parent=5 // pred_check_branch
        %4087 = sbr.rel (%p4085) target = $region48
      $region47: #{residual_block.1} parent=5 // pred_region
        %s4088 = ssub.s32 %s14, 2
        // Predicated region
        $region49: #{residual_block.1} parent=47 // pred_check
          %p4089 = pneg %p153
        $region50: #{residual_block.1} parent=47 // pred_check_branch
          %4091 = sbr.rel (%p4089) target = $region52
        $region51: #{residual_block.1} parent=47 // pred_region
          %s4092 = sand.u32 %s138, 1
          %s4093 = scalar_lea.sflag [#allocation4], %s4092
          %s4094 = sand.u32 %s138, 1
          %s4095 = smul.addr %s4094, 256
          %s4096 = scalar_lea.vmem [#allocation3], %s4095
          %4097 = dma.done %s4093, 4096
        $region52: #{residual_block.1} parent=47 // pred_fallthru
          _
      $region48: #{residual_block.1} parent=5 // pred_fallthru
        _
    $region6: #{residual_block.1} parent=1 // loop_footer
      %s18 = sadd.s32 1, %s14
    $region7: #{residual_block.1} parent=1 // loop_footer_branch
      %13 = sbr.rel target = $region3
    $region8: #{residual_block.1} parent=1 // loop_exit
      _
    %4098 = vsyncpa [#allocation4], 1
    %s4099 = scalar_lea.sflag [#allocation4], 1
    %4100 = vsyncpa %s4099, 1

</llo_original>
